<compile_context>
chip_gen: v7x
topology: tpu7x:2x2x1
jax: 0.10.0
libtpu: 0.0.40
codegen_flags: <defaults>
</compile_context>

<pallas_src>
import functools

import jax
import jax.numpy as jnp
from jax.experimental import pallas as pl
from jax.experimental.pallas import tpu as pltpu

_LANE = 128
_VMEM_LIMIT = 48 * 1024 * 1024   # v7x-safe (64 MiB phys per TC), roomy on v5e/v6e


def _round_up(x, m):
    return (x + m - 1) // m * m


# ----------------------------------------------------------------------------
# Kernel 1: the `transfer` Sequential
#   conv1x1(s_n -> mid) + BN + ReLU
#   conv3x3(mid -> mid, pad=1) + BN + ReLU
#   conv1x1(mid -> t_n) + BN + ReLU
# BN scale is pre-folded into the weights; only the shift is applied here.
# Layout: NHWC (channels on the 128-lane axis, W on sublanes).
# ----------------------------------------------------------------------------
def _transfer_kernel(src_ref, w1_ref, b1_ref, w3_ref, b2_ref, w2_ref, b3_ref,
                     out_ref, pad_ref, *, use_im2col, mxu_dtype):
    bb, H, W, Cs = src_ref.shape
    Cm = w1_ref.shape[1]
    Ct = w2_ref.shape[1]
    rows = bb * H * W

    # --- stage 1: 1x1 conv == per-row matmul over channels (bf16 MXU, f32 acc)
    x = src_ref[...].astype(mxu_dtype).reshape(rows, Cs)   # src already bf16
    x1 = jnp.dot(x, w1_ref[...], preferred_element_type=jnp.float32)
    x1 = jnp.maximum(x1 + b1_ref[...], 0.0)

    # --- stage 2: 3x3 conv (padding=1).
    # Zero only the 1-element halo of the scratch; write the interior once.
    # (Re-zeroed every grid step on purpose: scratch is per-core and grid steps
    #  may start at a nonzero program_id on the second megacore TC.)
    zeros_row = jnp.zeros((bb, 1, W + 2, Cm), jnp.float32)
    zeros_col = jnp.zeros((bb, H + 2, 1, Cm), jnp.float32)
    pad_ref[:, 0:1, :, :] = zeros_row
    pad_ref[:, H + 1:H + 2, :, :] = zeros_row
    pad_ref[:, :, 0:1, :] = zeros_col
    pad_ref[:, :, W + 1:W + 2, :] = zeros_col
    pad_ref[:, 1:H + 1, 1:W + 1, :] = x1.reshape(bb, H, W, Cm)

    taps = [pad_ref[:, kh:kh + H, kw:kw + W, :]
            for kh in range(3) for kw in range(3)]
    if use_im2col:
        # Small Cm: build one lane-aligned (rows, 9*Cm) operand and do a single
        # matmul so the MXU contraction depth is filled.
        xcat = jnp.concatenate(taps, axis=-1).reshape(rows, 9 * Cm)
        acc = jnp.dot(xcat.astype(mxu_dtype), w3_ref[...],
                      preferred_element_type=jnp.float32)
    else:
        # Large Cm: 9 accumulating matmuls already have K >= 256.
        acc = jnp.zeros((rows, Cm), jnp.float32)
        for t in range(9):
            acc = acc + jnp.dot(taps[t].reshape(rows, Cm).astype(mxu_dtype),
                                w3_ref[t * Cm:(t + 1) * Cm, :],
                                preferred_element_type=jnp.float32)
    x2 = jnp.maximum(acc + b2_ref[...], 0.0)

    # --- stage 3: 1x1 conv + shift + ReLU
    x3 = jnp.dot(x2.astype(mxu_dtype), w2_ref[...],
                 preferred_element_type=jnp.float32)
    x3 = jnp.maximum(x3 + b3_ref[...], 0.0)
    out_ref[...] = x3.reshape(bb, H, W, Ct).astype(out_ref.dtype)


def _pick_batch_block(B, H, W, Cs, Cm, Ct, use_im2col,
                      budget_bytes=20 * 1024 * 1024):
    """Pick a batch tile targeting >=1024 matmul rows while fitting a VMEM
    budget that is safe on v7x's 64 MiB VMEM (double-buffered in/out + temps)."""
    def est_bytes(bb):
        rows = bb * H * W
        act = 2 * rows * (Cs * 2 + Ct * 4)                  # bf16 in / f32 out, x2 bufs
        k_taps = 9 * Cm if use_im2col else 2 * Cm           # im2col concat vs tap+acc
        tmp = rows * (Cm + k_taps + Cm + Ct) * 4            # x1, 3x3 temps, x2, x3
        tmp += bb * (H + 2) * (W + 2) * Cm * 4              # halo-padded scratch
        wts = 2 * 2 * (Cs * Cm + 9 * Cm * Cm + Cm * Ct)     # bf16 weights, x2 buffers
        return act + tmp + wts

    bb = max(1, min(B, max(1, 1024 // max(1, H * W))))
    while bb > 1 and est_bytes(bb) > budget_bytes:
        bb -= 1
    while bb > 1 and B % bb:
        bb -= 1
    return bb


def transfer_pallas(source_nhwc, kp, *, mxu_dtype=jnp.bfloat16, batch_block=None):
    """source_nhwc: (B, H, W, Cs_pad) bf16 -> (B, H, W, Ct_pad) f32."""
    B, H, W, Cs = source_nhwc.shape
    Cm = kp["w1"].shape[1]
    Ct = kp["w2"].shape[1]
    use_im2col = Cm < 256
    bb = batch_block or _pick_batch_block(B, H, W, Cs, Cm, Ct, use_im2col)
    bb = max(1, min(bb, B))
    kernel = functools.partial(_transfer_kernel, use_im2col=use_im2col,
                               mxu_dtype=mxu_dtype)

    def _full(a):
        return pl.BlockSpec(a.shape, lambda i, a=a: (0,) * a.ndim)

    return pl.pallas_call(
        kernel,
        out_shape=jax.ShapeDtypeStruct((B, H, W, Ct), jnp.float32),
        grid=(pl.cdiv(B, bb),),
        in_specs=[
            pl.BlockSpec((bb, H, W, Cs), lambda i: (i, 0, 0, 0)),
            _full(kp["w1"]), _full(kp["b1"]), _full(kp["w3"]),
            _full(kp["b2"]), _full(kp["w2"]), _full(kp["b3"]),
        ],
        out_specs=pl.BlockSpec((bb, H, W, Ct), lambda i: (i, 0, 0, 0)),
        scratch_shapes=[pltpu.VMEM((bb, H + 2, W + 2, Cm), jnp.float32)],
        compiler_params=pltpu.CompilerParams(
            dimension_semantics=("parallel",),
            vmem_limit_bytes=_VMEM_LIMIT,
        ),
    )(source_nhwc, kp["w1"], kp["b1"], kp["w3"], kp["b2"], kp["w2"], kp["b3"])


# ----------------------------------------------------------------------------
# Kernel 2: teacher classifier (Linear) on the NHWC-flattened transfer output.
# Weights are column-permuted to NHWC flatten order and padded to 128 lanes, so
# the kernel's output block is lane-dense and no NCHW transpose is needed.
# ----------------------------------------------------------------------------
def _classifier_kernel(x_ref, w_ref, b_ref, o_ref, acc_ref, *, mxu_dtype):
    f = pl.program_id(1)

    @pl.when(f == 0)
    def _init():
        acc_ref[...] = jnp.zeros_like(acc_ref)

    acc_ref[...] += jnp.dot(x_ref[...].astype(mxu_dtype), w_ref[...],
                            preferred_element_type=jnp.float32)

    @pl.when(f == pl.num_programs(1) - 1)
    def _finish():
        o_ref[...] = (acc_ref[...] + b_ref[...]).astype(o_ref.dtype)


def _pick_f_block(F, max_elems=2048):
    fb = min(F, max_elems)
    fb = max(_LANE, (fb // _LANE) * _LANE)
    while fb > _LANE and F % fb:
        fb -= _LANE
    if F % fb:
        fb = F
    return fb


def _pick_b_block(B, cap=256):
    """Big batch block => classifier weight is streamed from HBM once, not once
    per small batch tile.  Block's sublane dim must be a multiple of 8 or full."""
    if B <= cap:
        return B
    bbc = (cap // 8) * 8
    while bbc >= 8 and B % bbc:
        bbc -= 8
    return bbc if bbc >= 8 else B


def classifier_pallas(x_flat, w, b, *, mxu_dtype=jnp.bfloat16,
                      f_block=None, batch_block=None):
    """x_flat: (B, F) f32, w: (F, Kpad) bf16, b: (1, Kpad) f32 -> (B, Kpad) f32."""
    B, F = x_flat.shape
    Kp = w.shape[1]
    bbc = batch_block or _pick_b_block(B)
    bbc = max(1, min(bbc, B))
    fb = f_block or _pick_f_block(F)
    kernel = functools.partial(_classifier_kernel, mxu_dtype=mxu_dtype)
    return pl.pallas_call(
        kernel,
        out_shape=jax.ShapeDtypeStruct((B, Kp), jnp.float32),
        grid=(pl.cdiv(B, bbc), F // fb),
        in_specs=[
            pl.BlockSpec((bbc, fb), lambda i, j: (i, j)),
            pl.BlockSpec((fb, Kp), lambda i, j: (j, 0)),
            pl.BlockSpec((1, Kp), lambda i, j: (0, 0)),
        ],
        out_specs=pl.BlockSpec((bbc, Kp), lambda i, j: (i, 0)),
        scratch_shapes=[pltpu.VMEM((bbc, Kp), jnp.float32)],
        compiler_params=pltpu.CompilerParams(
            dimension_semantics=("parallel", "arbitrary"),
            vmem_limit_bytes=_VMEM_LIMIT,
        ),
    )(x_flat, w, b)


# ----------------------------------------------------------------------------
# Trace-time parameter preparation: fold BN scale into conv weights, transpose
# into (in, out) layouts, zero-pad channel dims to 128 lanes, cast to bf16.
# ----------------------------------------------------------------------------
def _fold_bn(bn, eps=1e-5):
    gamma, beta, mean, var = bn
    scale = gamma / jnp.sqrt(var + eps)
    return scale, beta - mean * scale


def prepare_transfer_params(raw, *, mxu_dtype=jnp.bfloat16, eps=1e-5):
    mid, s_n = raw["w1"].shape
    t_n = raw["w2"].shape[0]
    Cs, Cm, Ct = (_round_up(s_n, _LANE), _round_up(mid, _LANE),
                  _round_up(t_n, _LANE))

    s1, sh1 = _fold_bn(raw["bn1"], eps)
    s2, sh2 = _fold_bn(raw["bn2"], eps)
    s3, sh3 = _fold_bn(raw["bn3"], eps)

    w1 = jnp.pad(raw["w1"].T * s1[None, :], ((0, Cs - s_n), (0, Cm - mid)))
    # (out, in, kh, kw) -> (kh, kw, in, out), scale over out, pad, flatten taps.
    w3 = jnp.transpose(raw["w3"], (2, 3, 1, 0)) * s2[None, None, None, :]
    w3 = jnp.pad(w3, ((0, 0), (0, 0), (0, Cm - mid), (0, Cm - mid)))
    w2 = jnp.pad(raw["w2"].T * s3[None, :], ((0, Cm - mid), (0, Ct - t_n)))

    return dict(
        w1=w1.astype(mxu_dtype),
        b1=jnp.pad(sh1, (0, Cm - mid)).reshape(1, Cm).astype(jnp.float32),
        w3=w3.reshape(9 * Cm, Cm).astype(mxu_dtype),
        b2=jnp.pad(sh2, (0, Cm - mid)).reshape(1, Cm).astype(jnp.float32),
        w2=w2.astype(mxu_dtype),
        b3=jnp.pad(sh3, (0, Ct - t_n)).reshape(1, Ct).astype(jnp.float32),
    )


def prepare_classifier_params(cls_w, cls_b, t_n, t_H, t_W, *,
                              mxu_dtype=jnp.bfloat16):
    K = cls_w.shape[0]
    Ct = _round_up(t_n, _LANE)
    Kp = _round_up(K, _LANE)
    w = cls_w.reshape(K, t_n, t_H, t_W)
    w = jnp.transpose(w, (2, 3, 1, 0))                 # NHWC flatten order (h,w,c)
    w = jnp.pad(w, ((0, 0), (0, 0), (0, Ct - t_n), (0, Kp - K)))
    w = w.reshape(t_H * t_W * Ct, Kp).astype(mxu_dtype)
    b = jnp.pad(cls_b, (0, Kp - K)).reshape(1, Kp).astype(jnp.float32)
    return w, b


# ----------------------------------------------------------------------------
# SimKD forward (glue: adaptive pooling, layout transposes, channel padding)
# ----------------------------------------------------------------------------
def simkd_forward_pallas(feat_s, feat_t, cls_w, cls_b, raw_params, *,
                         mxu_dtype=jnp.bfloat16, batch_block=None):
    """feat_s: (B, s_n, s_H, s_H) NCHW, feat_t: (B, t_n, t_H, t_H) NCHW."""
    B, s_n, s_H, _ = feat_s.shape
    _, t_n, t_H, t_W = feat_t.shape
    num_classes = cls_w.shape[0]

    # adaptive_avg_pool2d(feat_s, (t_H, t_H)) for the divisible case.
    # TODO(synk): non-divisible adaptive pooling (s_H % t_H != 0) not implemented.
    # (XLA fuses pool + transpose + pad + bf16 cast into one pass over feat_s, so
    #  fusing it into the kernel would not reduce HBM traffic.)
    k = s_H // t_H
    source = feat_s.reshape(B, s_n, t_H, k, t_W, k).mean(axis=(3, 5))
    source_nhwc = jnp.transpose(source, (0, 2, 3, 1))

    Cs = _round_up(s_n, _LANE)
    if Cs > s_n:
        source_nhwc = jnp.pad(source_nhwc,
                              ((0, 0), (0, 0), (0, 0), (0, Cs - s_n)))
    # Feed the kernel bf16 directly: halves the HBM read, identical matmul math.
    source_nhwc = source_nhwc.astype(mxu_dtype)

    kp = prepare_transfer_params(raw_params, mxu_dtype=mxu_dtype)
    trans_nhwc = transfer_pallas(source_nhwc, kp, mxu_dtype=mxu_dtype,
                                 batch_block=batch_block)      # (B, H, W, Ct_pad)

    # Returned feature in PyTorch NCHW layout (padded channels sliced off).
    trans_feat_s = jnp.transpose(trans_nhwc[..., :t_n], (0, 3, 1, 2))
    trans_feat_t = feat_t

    # cls_t on the NHWC output directly (PyTorch NCHW-flatten semantics are
    # reproduced by the column permutation of the weights).
    wc, bc = prepare_classifier_params(cls_w, cls_b, t_n, t_H, t_W,
                                       mxu_dtype=mxu_dtype)
    pred_full = classifier_pallas(trans_nhwc.reshape(B, -1), wc, bc,
                                  mxu_dtype=mxu_dtype)
    pred_feat_s = pred_full[:, :num_classes]
    return trans_feat_s, trans_feat_t, pred_feat_s


# ----------------------------------------------------------------------------
# Pure-JAX f32 reference (mirrors the PyTorch module in eval mode)
# ----------------------------------------------------------------------------
def _bn_eval(x, bn, eps=1e-5):
    gamma, beta, mean, var = bn
    scale = gamma / jnp.sqrt(var + eps)
    shift = beta - mean * scale
    return x * scale[None, :, None, None] + shift[None, :, None, None]


def simkd_reference(feat_s, feat_t, cls_w, cls_b, raw):
    B, s_n, s_H, _ = feat_s.shape
    t_H = feat_t.shape[2]
    k = s_H // t_H
    src = feat_s.reshape(B, s_n, t_H, k, t_H, k).mean(axis=(3, 5))
    x = jnp.einsum("bchw,oc->bohw", src, raw["w1"])
    x = jax.nn.relu(_bn_eval(x, raw["bn1"]))
    x = jax.lax.conv_general_dilated(x, raw["w3"], (1, 1), "SAME",
                                     dimension_numbers=("NCHW", "OIHW", "NCHW"))
    x = jax.nn.relu(_bn_eval(x, raw["bn2"]))
    x = jnp.einsum("bchw,oc->bohw", x, raw["w2"])
    x = jax.nn.relu(_bn_eval(x, raw["bn3"]))
    pred = x.reshape(B, -1) @ cls_w.T + cls_b
    return x, feat_t, pred


# ----------------------------------------------------------------------------
# Deterministic parameter initialization (shapes from SimKD.__init__)
# ----------------------------------------------------------------------------
def init_raw_params(key, s_n, t_n, factor):
    mid = t_n // factor
    ks = iter(jax.random.split(key, 32))

    def bn(c):
        return (jax.random.uniform(next(ks), (c,), minval=0.5, maxval=1.5),
                0.1 * jax.random.normal(next(ks), (c,)),
                0.1 * jax.random.normal(next(ks), (c,)),
                jax.random.uniform(next(ks), (c,), minval=0.5, maxval=1.5))

    return dict(
        w1=0.1 * jax.random.normal(next(ks), (mid, s_n)),        # conv1x1 (out,in)
        bn1=bn(mid),
        w3=0.1 * jax.random.normal(next(ks), (mid, mid, 3, 3)),  # conv3x3 OIHW
        bn2=bn(mid),
        w2=0.1 * jax.random.normal(next(ks), (t_n, mid)),        # conv1x1 (out,in)
        bn3=bn(t_n),
    )


def _check_close(name, got, want, atol=0.1, rtol=0.05):
    err = float(jnp.max(jnp.abs(got - want)))
    bound = atol + rtol * float(jnp.max(jnp.abs(want)))
    assert err <= bound, f"{name}: max|diff|={err:.4f} > bound {bound:.4f}"


if __name__ == "__main__":
    # Small, forward-consistent shapes.
    B = 2
    s_n, t_n, factor = 16, 32, 2
    s_H, t_H = 16, 8
    num_classes = 10

    key = jax.random.PRNGKey(0)
    k_fs, k_ft, k_w, k_b, k_p = jax.random.split(key, 5)

    feat_s = jax.random.normal(k_fs, (B, s_n, s_H, s_H), dtype=jnp.float32)
    feat_t = jax.random.normal(k_ft, (B, t_n, t_H, t_H), dtype=jnp.float32)

    # cls_t: Linear(t_n * t_H * t_H -> num_classes) in PyTorch (out,in) layout.
    feat_dim = t_n * t_H * t_H
    cls_w = (0.05 * jax.random.normal(k_w, (num_classes, feat_dim))).astype(jnp.float32)
    cls_b = (0.05 * jax.random.normal(k_b, (num_classes,))).astype(jnp.float32)

    raw = init_raw_params(k_p, s_n, t_n, factor)

    # batch_block=1 -> grid of 2 steps, exercising pipelining / parallel axis.
    fwd = jax.jit(functools.partial(simkd_forward_pallas, batch_block=1))
    trans_feat_s, trans_feat_t, pred_feat_s = fwd(feat_s, feat_t, cls_w, cls_b, raw)
    jax.block_until_ready((trans_feat_s, trans_feat_t, pred_feat_s))

    assert trans_feat_s.shape == (B, t_n, t_H, t_H)
    assert trans_feat_t.shape == (B, t_n, t_H, t_H)
    assert pred_feat_s.shape == (B, num_classes)

    # Loose check vs. f32 reference (kernel uses bf16 MXU operands, f32 accum).
    ref_s, ref_t, ref_p = simkd_reference(feat_s, feat_t, cls_w, cls_b, raw)
    _check_close("trans_feat_s", trans_feat_s, ref_s)
    _check_close("pred_feat_s", pred_feat_s, ref_p)
    assert bool(jnp.array_equal(trans_feat_t, ref_t))

    print("KERNEL_OK")
</pallas_src>

<mosaic_0001>
module attributes {stable_mosaic.version = 11 : i64} {
  func.func @_transfer_kernel(%arg0: i32, %arg1: memref<1x8x8x128xbf16, #tpu.memory_space<vmem>>, %arg2: memref<128x128xbf16, #tpu.memory_space<vmem>>, %arg3: memref<1x128xf32, #tpu.memory_space<vmem>>, %arg4: memref<1152x128xbf16, #tpu.memory_space<vmem>>, %arg5: memref<1x128xf32, #tpu.memory_space<vmem>>, %arg6: memref<128x128xbf16, #tpu.memory_space<vmem>>, %arg7: memref<1x128xf32, #tpu.memory_space<vmem>>, %arg8: memref<1x8x8x128xf32, #tpu.memory_space<vmem>>, %arg9: memref<1x10x10x128xf32, #tpu.memory_space<vmem>>) attributes {dimension_semantics = [#tpu.dimension_semantics<parallel>], iteration_bounds = array<i64: 2>, scalar_prefetch = 0 : i64, scratch_operands = 1 : i64, tpu.core_type = #tpu.core_type<tc>, window_params = [{transform_indices = @transform_0, window_bounds = array<i64: 1, 8, 8, 128>}, {pipeline_mode = #tpu.pipeline_mode<synchronous>, transform_indices = @transform_1, window_bounds = array<i64: 128, 128>}, {pipeline_mode = #tpu.pipeline_mode<synchronous>, transform_indices = @transform_2, window_bounds = array<i64: 1, 128>}, {pipeline_mode = #tpu.pipeline_mode<synchronous>, transform_indices = @transform_3, window_bounds = array<i64: 1152, 128>}, {pipeline_mode = #tpu.pipeline_mode<synchronous>, transform_indices = @transform_4, window_bounds = array<i64: 1, 128>}, {pipeline_mode = #tpu.pipeline_mode<synchronous>, transform_indices = @transform_5, window_bounds = array<i64: 128, 128>}, {pipeline_mode = #tpu.pipeline_mode<synchronous>, transform_indices = @transform_6, window_bounds = array<i64: 1, 128>}, {transform_indices = @transform_7, window_bounds = array<i64: 1, 8, 8, 128>}]} {
    %c0 = arith.constant 0 : index
    %c0_0 = arith.constant 0 : index
    %c0_1 = arith.constant 0 : index
    %c0_2 = arith.constant 0 : index
    %0 = vector.load %arg1[%c0, %c0_0, %c0_1, %c0_2] : memref<1x8x8x128xbf16, #tpu.memory_space<vmem>>, vector<1x8x8x128xbf16>
    %1 = vector.shape_cast %0 : vector<1x8x8x128xbf16> to vector<64x128xbf16>
    %c0_3 = arith.constant 0 : index
    %c0_4 = arith.constant 0 : index
    %2 = vector.load %arg2[%c0_3, %c0_4] : memref<128x128xbf16, #tpu.memory_space<vmem>>, vector<128x128xbf16>
    %cst = arith.constant dense<0.000000e+00> : vector<64x128xf32>
    %3 = tpu.matmul %1, %2, %cst {dimension_numbers = #tpu.dot_dimension_numbers<[1], [0], [0], [1], [0, 0, 1, 1], [], []>} : vector<64x128xbf16>, vector<128x128xbf16>, vector<64x128xf32> -> vector<64x128xf32>
    %c0_5 = arith.constant 0 : index
    %c0_6 = arith.constant 0 : index
    %4 = vector.load %arg3[%c0_5, %c0_6] : memref<1x128xf32, #tpu.memory_space<vmem>>, vector<1x128xf32>
    %5 = vector.broadcast %4 : vector<1x128xf32> to vector<64x128xf32>
    %6 = arith.addf %3, %5 : vector<64x128xf32>
    %cst_7 = arith.constant 0.000000e+00 : f32
    %7 = vector.broadcast %cst_7 : f32 to vector<64x128xf32>
    %8 = arith.maximumf %6, %7 : vector<64x128xf32>
    %cst_8 = arith.constant 0.000000e+00 : f32
    %9 = vector.broadcast %cst_8 : f32 to vector<1x1x10x128xf32>
    %cst_9 = arith.constant 0.000000e+00 : f32
    %10 = vector.broadcast %cst_9 : f32 to vector<1x10x1x128xf32>
    %c0_10 = arith.constant 0 : index
    %c0_11 = arith.constant 0 : index
    %c0_12 = arith.constant 0 : index
    %c0_13 = arith.constant 0 : index
    %11 = vector.load %arg9[%c0_10, %c0_11, %c0_12, %c0_13] : memref<1x10x10x128xf32, #tpu.memory_space<vmem>>, vector<1x1x10x128xf32>
    tpu.vector_store %arg9[%c0_10, %c0_11, %c0_12, %c0_13], %9 {strides = array<i32>} : memref<1x10x10x128xf32, #tpu.memory_space<vmem>>, vector<1x1x10x128xf32>,
    %c0_14 = arith.constant 0 : index
    %c9 = arith.constant 9 : index
    %c0_15 = arith.constant 0 : index
    %c0_16 = arith.constant 0 : index
    %12 = vector.load %arg9[%c0_14, %c9, %c0_15, %c0_16] : memref<1x10x10x128xf32, #tpu.memory_space<vmem>>, vector<1x1x10x128xf32>
    tpu.vector_store %arg9[%c0_14, %c9, %c0_15, %c0_16], %9 {strides = array<i32>} : memref<1x10x10x128xf32, #tpu.memory_space<vmem>>, vector<1x1x10x128xf32>,
    %c0_17 = arith.constant 0 : index
    %c0_18 = arith.constant 0 : index
    %c0_19 = arith.constant 0 : index
    %c0_20 = arith.constant 0 : index
    %13 = vector.load %arg9[%c0_17, %c0_18, %c0_19, %c0_20] : memref<1x10x10x128xf32, #tpu.memory_space<vmem>>, vector<1x10x1x128xf32>
    tpu.vector_store %arg9[%c0_17, %c0_18, %c0_19, %c0_20], %10 {strides = array<i32>} : memref<1x10x10x128xf32, #tpu.memory_space<vmem>>, vector<1x10x1x128xf32>,
    %c0_21 = arith.constant 0 : index
    %c0_22 = arith.constant 0 : index
    %c9_23 = arith.constant 9 : index
    %c0_24 = arith.constant 0 : index
    %14 = vector.load %arg9[%c0_21, %c0_22, %c9_23, %c0_24] : memref<1x10x10x128xf32, #tpu.memory_space<vmem>>, vector<1x10x1x128xf32>
    tpu.vector_store %arg9[%c0_21, %c0_22, %c9_23, %c0_24], %10 {strides = array<i32>} : memref<1x10x10x128xf32, #tpu.memory_space<vmem>>, vector<1x10x1x128xf32>,
    %15 = vector.shape_cast %8 : vector<64x128xf32> to vector<1x8x8x128xf32>
    %c0_25 = arith.constant 0 : index
    %c1 = arith.constant 1 : index
    %c1_26 = arith.constant 1 : index
    %c0_27 = arith.constant 0 : index
    %16 = vector.load %arg9[%c0_25, %c1, %c1_26, %c0_27] : memref<1x10x10x128xf32, #tpu.memory_space<vmem>>, vector<1x8x8x128xf32>
    tpu.vector_store %arg9[%c0_25, %c1, %c1_26, %c0_27], %15 {strides = array<i32>} : memref<1x10x10x128xf32, #tpu.memory_space<vmem>>, vector<1x8x8x128xf32>,
    %c0_28 = arith.constant 0 : index
    %c0_29 = arith.constant 0 : index
    %c0_30 = arith.constant 0 : index
    %c0_31 = arith.constant 0 : index
    %17 = vector.load %arg9[%c0_28, %c0_29, %c0_30, %c0_31] : memref<1x10x10x128xf32, #tpu.memory_space<vmem>>, vector<1x8x8x128xf32>
    %c0_32 = arith.constant 0 : index
    %c0_33 = arith.constant 0 : index
    %c1_34 = arith.constant 1 : index
    %c0_35 = arith.constant 0 : index
    %18 = vector.load %arg9[%c0_32, %c0_33, %c1_34, %c0_35] : memref<1x10x10x128xf32, #tpu.memory_space<vmem>>, vector<1x8x8x128xf32>
    %c0_36 = arith.constant 0 : index
    %c0_37 = arith.constant 0 : index
    %c2 = arith.constant 2 : index
    %c0_38 = arith.constant 0 : index
    %19 = vector.load %arg9[%c0_36, %c0_37, %c2, %c0_38] : memref<1x10x10x128xf32, #tpu.memory_space<vmem>>, vector<1x8x8x128xf32>
    %c0_39 = arith.constant 0 : index
    %c1_40 = arith.constant 1 : index
    %c0_41 = arith.constant 0 : index
    %c0_42 = arith.constant 0 : index
    %20 = vector.load %arg9[%c0_39, %c1_40, %c0_41, %c0_42] : memref<1x10x10x128xf32, #tpu.memory_space<vmem>>, vector<1x8x8x128xf32>
    %c0_43 = arith.constant 0 : index
    %c1_44 = arith.constant 1 : index
    %c1_45 = arith.constant 1 : index
    %c0_46 = arith.constant 0 : index
    %21 = vector.load %arg9[%c0_43, %c1_44, %c1_45, %c0_46] : memref<1x10x10x128xf32, #tpu.memory_space<vmem>>, vector<1x8x8x128xf32>
    %c0_47 = arith.constant 0 : index
    %c1_48 = arith.constant 1 : index
    %c2_49 = arith.constant 2 : index
    %c0_50 = arith.constant 0 : index
    %22 = vector.load %arg9[%c0_47, %c1_48, %c2_49, %c0_50] : memref<1x10x10x128xf32, #tpu.memory_space<vmem>>, vector<1x8x8x128xf32>
    %c0_51 = arith.constant 0 : index
    %c2_52 = arith.constant 2 : index
    %c0_53 = arith.constant 0 : index
    %c0_54 = arith.constant 0 : index
    %23 = vector.load %arg9[%c0_51, %c2_52, %c0_53, %c0_54] : memref<1x10x10x128xf32, #tpu.memory_space<vmem>>, vector<1x8x8x128xf32>
    %c0_55 = arith.constant 0 : index
    %c2_56 = arith.constant 2 : index
    %c1_57 = arith.constant 1 : index
    %c0_58 = arith.constant 0 : index
    %24 = vector.load %arg9[%c0_55, %c2_56, %c1_57, %c0_58] : memref<1x10x10x128xf32, #tpu.memory_space<vmem>>, vector<1x8x8x128xf32>
    %c0_59 = arith.constant 0 : index
    %c2_60 = arith.constant 2 : index
    %c2_61 = arith.constant 2 : index
    %c0_62 = arith.constant 0 : index
    %25 = vector.load %arg9[%c0_59, %c2_60, %c2_61, %c0_62] : memref<1x10x10x128xf32, #tpu.memory_space<vmem>>, vector<1x8x8x128xf32>
    %26 = tpu.concatenate %17, %18, %19, %20, %21, %22, %23, %24, %25 in 3 : vector<1x8x8x128xf32>, vector<1x8x8x128xf32>, vector<1x8x8x128xf32>, vector<1x8x8x128xf32>, vector<1x8x8x128xf32>, vector<1x8x8x128xf32>, vector<1x8x8x128xf32>, vector<1x8x8x128xf32>, vector<1x8x8x128xf32> -> vector<1x8x8x1152xf32>
    %27 = vector.shape_cast %26 : vector<1x8x8x1152xf32> to vector<64x1152xf32>
    %28 = arith.truncf %27 : vector<64x1152xf32> to vector<64x1152xbf16>
    %c0_63 = arith.constant 0 : index
    %c0_64 = arith.constant 0 : index
    %29 = vector.load %arg4[%c0_63, %c0_64] : memref<1152x128xbf16, #tpu.memory_space<vmem>>, vector<1152x128xbf16>
    %cst_65 = arith.constant dense<0.000000e+00> : vector<64x128xf32>
    %30 = tpu.matmul %28, %29, %cst_65 {dimension_numbers = #tpu.dot_dimension_numbers<[1], [0], [0], [1], [0, 0, 1, 1], [], []>} : vector<64x1152xbf16>, vector<1152x128xbf16>, vector<64x128xf32> -> vector<64x128xf32>
    %c0_66 = arith.constant 0 : index
    %c0_67 = arith.constant 0 : index
    %31 = vector.load %arg5[%c0_66, %c0_67] : memref<1x128xf32, #tpu.memory_space<vmem>>, vector<1x128xf32>
    %32 = vector.broadcast %31 : vector<1x128xf32> to vector<64x128xf32>
    %33 = arith.addf %30, %32 : vector<64x128xf32>
    %cst_68 = arith.constant 0.000000e+00 : f32
    %34 = vector.broadcast %cst_68 : f32 to vector<64x128xf32>
    %35 = arith.maximumf %33, %34 : vector<64x128xf32>
    %36 = arith.truncf %35 : vector<64x128xf32> to vector<64x128xbf16>
    %c0_69 = arith.constant 0 : index
    %c0_70 = arith.constant 0 : index
    %37 = vector.load %arg6[%c0_69, %c0_70] : memref<128x128xbf16, #tpu.memory_space<vmem>>, vector<128x128xbf16>
    %cst_71 = arith.constant dense<0.000000e+00> : vector<64x128xf32>
    %38 = tpu.matmul %36, %37, %cst_71 {dimension_numbers = #tpu.dot_dimension_numbers<[1], [0], [0], [1], [0, 0, 1, 1], [], []>} : vector<64x128xbf16>, vector<128x128xbf16>, vector<64x128xf32> -> vector<64x128xf32>
    %c0_72 = arith.constant 0 : index
    %c0_73 = arith.constant 0 : index
    %39 = vector.load %arg7[%c0_72, %c0_73] : memref<1x128xf32, #tpu.memory_space<vmem>>, vector<1x128xf32>
    %40 = vector.broadcast %39 : vector<1x128xf32> to vector<64x128xf32>
    %41 = arith.addf %38, %40 : vector<64x128xf32>
    %cst_74 = arith.constant 0.000000e+00 : f32
    %42 = vector.broadcast %cst_74 : f32 to vector<64x128xf32>
    %43 = arith.maximumf %41, %42 : vector<64x128xf32>
    %44 = vector.shape_cast %43 : vector<64x128xf32> to vector<1x8x8x128xf32>
    %c0_75 = arith.constant 0 : index
    %c0_76 = arith.constant 0 : index
    %c0_77 = arith.constant 0 : index
    %c0_78 = arith.constant 0 : index
    %45 = vector.load %arg8[%c0_75, %c0_76, %c0_77, %c0_78] : memref<1x8x8x128xf32, #tpu.memory_space<vmem>>, vector<1x8x8x128xf32>
    tpu.vector_store %arg8[%c0_75, %c0_76, %c0_77, %c0_78], %44 {strides = array<i32>} : memref<1x8x8x128xf32, #tpu.memory_space<vmem>>, vector<1x8x8x128xf32>,
    return
  }
  func.func @transform_0(%arg0: i32) -> (i32, i32, i32, i32) {
    %c0_i32 = arith.constant 0 : i32
    %c0_i32_0 = arith.constant 0 : i32
    %c0_i32_1 = arith.constant 0 : i32
    %c0_i32_2 = arith.constant 0 : i32
    return %arg0, %c0_i32, %c0_i32_0, %c0_i32_1 : i32, i32, i32, i32
  }
  func.func @transform_1(%arg0: i32) -> (i32, i32) {
    %c0_i32 = arith.constant 0 : i32
    %c0_i32_0 = arith.constant 0 : i32
    %c0_i32_1 = arith.constant 0 : i32
    return %c0_i32, %c0_i32_0 : i32, i32
  }
  func.func @transform_2(%arg0: i32) -> (i32, i32) {
    %c0_i32 = arith.constant 0 : i32
    %c0_i32_0 = arith.constant 0 : i32
    %c0_i32_1 = arith.constant 0 : i32
    return %c0_i32, %c0_i32_0 : i32, i32
  }
  func.func @transform_3(%arg0: i32) -> (i32, i32) {
    %c0_i32 = arith.constant 0 : i32
    %c0_i32_0 = arith.constant 0 : i32
    %c0_i32_1 = arith.constant 0 : i32
    return %c0_i32, %c0_i32_0 : i32, i32
  }
  func.func @transform_4(%arg0: i32) -> (i32, i32) {
    %c0_i32 = arith.constant 0 : i32
    %c0_i32_0 = arith.constant 0 : i32
    %c0_i32_1 = arith.constant 0 : i32
    return %c0_i32, %c0_i32_0 : i32, i32
  }
  func.func @transform_5(%arg0: i32) -> (i32, i32) {
    %c0_i32 = arith.constant 0 : i32
    %c0_i32_0 = arith.constant 0 : i32
    %c0_i32_1 = arith.constant 0 : i32
    return %c0_i32, %c0_i32_0 : i32, i32
  }
  func.func @transform_6(%arg0: i32) -> (i32, i32) {
    %c0_i32 = arith.constant 0 : i32
    %c0_i32_0 = arith.constant 0 : i32
    %c0_i32_1 = arith.constant 0 : i32
    return %c0_i32, %c0_i32_0 : i32, i32
  }
  func.func @transform_7(%arg0: i32) -> (i32, i32, i32, i32) {
    %c0_i32 = arith.constant 0 : i32
    %c0_i32_0 = arith.constant 0 : i32
    %c0_i32_1 = arith.constant 0 : i32
    %c0_i32_2 = arith.constant 0 : i32
    return %arg0, %c0_i32, %c0_i32_0, %c0_i32_1 : i32, i32, i32, i32
  }
}

module attributes {stable_mosaic.version = 11 : i64} {
  func.func @_classifier_kernel(%arg0: i32, %arg1: i32, %arg2: memref<2x2048xf32, #tpu.memory_space<vmem>>, %arg3: memref<2048x128xbf16, #tpu.memory_space<vmem>>, %arg4: memref<1x128xf32, #tpu.memory_space<vmem>>, %arg5: memref<2x128xf32, #tpu.memory_space<vmem>>, %arg6: memref<2x128xf32, #tpu.memory_space<vmem>>) attributes {dimension_semantics = [#tpu.dimension_semantics<parallel>, #tpu.dimension_semantics<arbitrary>], iteration_bounds = array<i64: 1, 4>, scalar_prefetch = 0 : i64, scratch_operands = 1 : i64, tpu.core_type = #tpu.core_type<tc>, window_params = [{transform_indices = @transform_0, window_bounds = array<i64: 2, 2048>}, {transform_indices = @transform_1, window_bounds = array<i64: 2048, 128>}, {pipeline_mode = #tpu.pipeline_mode<synchronous>, transform_indices = @transform_2, window_bounds = array<i64: 1, 128>}, {transform_indices = @transform_3, window_bounds = array<i64: 2, 128>}]} {
    %c0_i32 = arith.constant 0 : i32
    %0 = arith.cmpi eq, %arg1, %c0_i32 : i32
    %1 = arith.extui %0 : i1 to i32
    %c0_i32_0 = arith.constant 0 : i32
    %2 = arith.cmpi ne, %1, %c0_i32_0 : i32
    scf.if %2 {
      %cst_9 = arith.constant 0.000000e+00 : f32
      %13 = vector.broadcast %cst_9 : f32 to vector<2x128xf32>
      %c0_10 = arith.constant 0 : index
      %c0_11 = arith.constant 0 : index
      %14 = vector.load %arg6[%c0_10, %c0_11] : memref<2x128xf32, #tpu.memory_space<vmem>>, vector<2x128xf32>
      tpu.vector_store %arg6[%c0_10, %c0_11], %13 {strides = array<i32>} : memref<2x128xf32, #tpu.memory_space<vmem>>, vector<2x128xf32>,
    } else {
    }
    %c0 = arith.constant 0 : index
    %c0_1 = arith.constant 0 : index
    %3 = vector.load %arg6[%c0, %c0_1] : memref<2x128xf32, #tpu.memory_space<vmem>>, vector<2x128xf32>
    %c0_2 = arith.constant 0 : index
    %c0_3 = arith.constant 0 : index
    %4 = vector.load %arg2[%c0_2, %c0_3] : memref<2x2048xf32, #tpu.memory_space<vmem>>, vector<2x2048xf32>
    %5 = arith.truncf %4 : vector<2x2048xf32> to vector<2x2048xbf16>
    %c0_4 = arith.constant 0 : index
    %c0_5 = arith.constant 0 : index
    %6 = vector.load %arg3[%c0_4, %c0_5] : memref<2048x128xbf16, #tpu.memory_space<vmem>>, vector<2048x128xbf16>
    %cst = arith.constant dense<0.000000e+00> : vector<2x128xf32>
    %7 = tpu.matmul %5, %6, %cst {dimension_numbers = #tpu.dot_dimension_numbers<[1], [0], [0], [1], [0, 0, 1, 1], [], []>} : vector<2x2048xbf16>, vector<2048x128xbf16>, vector<2x128xf32> -> vector<2x128xf32>
    %8 = arith.addf %3, %7 : vector<2x128xf32>
    %c0_6 = arith.constant 0 : index
    %c0_7 = arith.constant 0 : index
    %9 = vector.load %arg6[%c0_6, %c0_7] : memref<2x128xf32, #tpu.memory_space<vmem>>, vector<2x128xf32>
    tpu.vector_store %arg6[%c0_6, %c0_7], %8 {strides = array<i32>} : memref<2x128xf32, #tpu.memory_space<vmem>>, vector<2x128xf32>,
    %c3_i32 = arith.constant 3 : i32
    %10 = arith.cmpi eq, %arg1, %c3_i32 : i32
    %11 = arith.extui %10 : i1 to i32
    %c0_i32_8 = arith.constant 0 : i32
    %12 = arith.cmpi ne, %11, %c0_i32_8 : i32
    scf.if %12 {
      %c0_9 = arith.constant 0 : index
      %c0_10 = arith.constant 0 : index
      %13 = vector.load %arg6[%c0_9, %c0_10] : memref<2x128xf32, #tpu.memory_space<vmem>>, vector<2x128xf32>
      %c0_11 = arith.constant 0 : index
      %c0_12 = arith.constant 0 : index
      %14 = vector.load %arg4[%c0_11, %c0_12] : memref<1x128xf32, #tpu.memory_space<vmem>>, vector<1x128xf32>
      %15 = vector.broadcast %14 : vector<1x128xf32> to vector<2x128xf32>
      %16 = arith.addf %13, %15 : vector<2x128xf32>
      %c0_13 = arith.constant 0 : index
      %c0_14 = arith.constant 0 : index
      %17 = vector.load %arg5[%c0_13, %c0_14] : memref<2x128xf32, #tpu.memory_space<vmem>>, vector<2x128xf32>
      tpu.vector_store %arg5[%c0_13, %c0_14], %16 {strides = array<i32>} : memref<2x128xf32, #tpu.memory_space<vmem>>, vector<2x128xf32>,
    } else {
    }
    return
  }
  func.func @transform_0(%arg0: i32, %arg1: i32) -> (i32, i32) {
    %c0_i32 = arith.constant 0 : i32
    return %arg0, %arg1 : i32, i32
  }
  func.func @transform_1(%arg0: i32, %arg1: i32) -> (i32, i32) {
    %c0_i32 = arith.constant 0 : i32
    %c0_i32_0 = arith.constant 0 : i32
    return %arg1, %c0_i32 : i32, i32
  }
  func.func @transform_2(%arg0: i32, %arg1: i32) -> (i32, i32) {
    %c0_i32 = arith.constant 0 : i32
    %c0_i32_0 = arith.constant 0 : i32
    %c0_i32_1 = arith.constant 0 : i32
    return %c0_i32, %c0_i32_0 : i32, i32
  }
  func.func @transform_3(%arg0: i32, %arg1: i32) -> (i32, i32) {
    %c0_i32 = arith.constant 0 : i32
    %c0_i32_0 = arith.constant 0 : i32
    return %arg0, %c0_i32 : i32, i32
  }
}

</mosaic_0001>

<llo_original>
// kernel: simkd_forward_pallas.2
$region0: #{simkd_forward_pallas.2}
  #allocation0 [shape = 'u32[]', space=smem, size = 0x4, offset = 0x4, fixed_abs, tag = 'smem constant byte address 0x4 - core index']
  #allocation1 [shape = 'u32[144,128]{1,0:T(1,128)}', space=vmem, size = 0x12000, scoped, tag = 'internal scratch']
  #allocation2 [shape = 'f32[1,10,10,128]{3,2,1,0:T(8,128)}', space=vmem, size = 0x14000, scoped, tag = 'scratch operand']
  %s0 = inlined_call_operand.vmem [shape: bf16[2,8,8,128], index: 0, kind: input, shape index: {}]
  %s1 = inlined_call_operand.vmem [shape: bf16[128,128], index: 1, kind: input, shape index: {}]
  %s2 = inlined_call_operand.vmem [shape: f32[1,128], index: 2, kind: input, shape index: {}]
  %s3 = inlined_call_operand.vmem [shape: bf16[1152,128], index: 3, kind: input, shape index: {}]
  %s4 = inlined_call_operand.vmem [shape: f32[1,128], index: 4, kind: input, shape index: {}]
  %s5 = inlined_call_operand.vmem [shape: bf16[128,128], index: 5, kind: input, shape index: {}]
  %s6 = inlined_call_operand.vmem [shape: f32[1,128], index: 6, kind: input, shape index: {}]
  %s7 = inlined_call_operand.vmem [shape: f32[2,8,8,128], index: 7, kind: output, shape index: {}]
  %s8 = sld [smem:[#allocation0]]
  $region61: #{simkd_forward_pallas.2} parent=0
    _
  %s10 = ssub.s32 1, %s8
  %s11 = scalar_select 0, %s10, %s8
  loop: start=0, step=1, limit=4
  $region2: #{simkd_forward_pallas.2} parent=0 // loop_pre_header
    _
  $region3: #{simkd_forward_pallas.2} parent=0 // loop_header
    %s13 = sphi 0, %s17
    %p14 = scmp.ge.s32.totalorder %s13, 4
    %s23 = sphi 0, %s25
    %s26 = sphi 0, %s23
    %s27 = sphi 0, %s26
    %s43 = sphi 0, %s27
    %s47 = sphi 0, %s47
    %s49 = sphi 0, %s47
    %s50 = sphi 0, %s49
    %s64 = sphi 0, %s50
    %s68 = sphi 0, %s68
    %s70 = sphi 0, %s68
    %s71 = sphi 0, %s70
    %s85 = sphi 0, %s71
    %s89 = sphi 0, %s89
    %s91 = sphi 0, %s89
    %s92 = sphi 0, %s91
    %s106 = sphi 0, %s92
    %s110 = sphi 0, %s110
    %s112 = sphi 0, %s110
    %s113 = sphi 0, %s112
    %s127 = sphi 0, %s113
    %s131 = sphi 0, %s131
    %s133 = sphi 0, %s131
    %s134 = sphi 0, %s133
    %s148 = sphi 0, %s134
    %s152 = sphi 0, %s152
    %s154 = sphi 0, %s152
    %s155 = sphi 0, %s154
    %s169 = sphi 0, %s155
    %s175 = sphi 0, %s177
    %s178 = sphi 0, %s175
    %s179 = sphi 0, %s178
    %s195 = sphi 0, %s179
  $region4: #{simkd_forward_pallas.2} parent=0 // loop_header_branch
    %16 = sbr.rel (%p14) target = $region8
  $region5: #{simkd_forward_pallas.2} parent=0 // loop_body
    %s18 = ssub.s32 %s13, 1
    %s19 = ssub.s32 %s13, 2
    %s20 = sadd.s32 %s13, 1
    %s21 = ssub.s32 %s13, %s20
    %p22 = scmp.eq.s32.totalorder %s21, 0
    %s24 = sadd.s32 %s23, 1
    %s25 = scalar_select %p22, %s23, %s24
    %p28 = pneg %p22
    %p29 = scmp.eq.s32.totalorder %s13, 1
    %p30 = por %p28, %p29
    %p31 = scmp.ne.s32.totalorder %s23, %s26
    %p32 = scmp.eq.s32.totalorder %s13, 0
    %p33 = por %p31, %p32
    %p34 = scmp.ne.s32.totalorder %s23, %s26
    %p35 = scmp.eq.s32.totalorder %s18, 1
    %p36 = por %p34, %p35
    %p37 = scmp.ne.s32.totalorder %s26, %s27
    %p38 = scmp.eq.s32.totalorder %s18, 0
    %p39 = por %p37, %p38
    %p40 = scmp.ne.s32.totalorder %s26, %s27
    %p41 = scmp.eq.s32.totalorder %s19, 1
    %p42 = por %p40, %p41
    %p44 = scmp.ne.s32.totalorder %s27, %s43
    %p45 = scmp.eq.s32.totalorder %s19, 0
    %p46 = por %p44, %p45
    %s48 = sadd.s32 %s47, 1
    %p51 = scmp.eq.s32.totalorder %s13, 1
    %p52 = scmp.ne.s32.totalorder %s47, %s49
    %p53 = scmp.eq.s32.totalorder %s13, 0
    %p54 = por %p52, %p53
    %p55 = scmp.ne.s32.totalorder %s47, %s49
    %p56 = scmp.eq.s32.totalorder %s18, 1
    %p57 = por %p55, %p56
    %p58 = scmp.ne.s32.totalorder %s49, %s50
    %p59 = scmp.eq.s32.totalorder %s18, 0
    %p60 = por %p58, %p59
    %p61 = scmp.ne.s32.totalorder %s49, %s50
    %p62 = scmp.eq.s32.totalorder %s19, 1
    %p63 = por %p61, %p62
    %p65 = scmp.ne.s32.totalorder %s50, %s64
    %p66 = scmp.eq.s32.totalorder %s19, 0
    %p67 = por %p65, %p66
    %s69 = sadd.s32 %s68, 1
    %p72 = scmp.eq.s32.totalorder %s13, 1
    %p73 = scmp.ne.s32.totalorder %s68, %s70
    %p74 = scmp.eq.s32.totalorder %s13, 0
    %p75 = por %p73, %p74
    %p76 = scmp.ne.s32.totalorder %s68, %s70
    %p77 = scmp.eq.s32.totalorder %s18, 1
    %p78 = por %p76, %p77
    %p79 = scmp.ne.s32.totalorder %s70, %s71
    %p80 = scmp.eq.s32.totalorder %s18, 0
    %p81 = por %p79, %p80
    %p82 = scmp.ne.s32.totalorder %s70, %s71
    %p83 = scmp.eq.s32.totalorder %s19, 1
    %p84 = por %p82, %p83
    %p86 = scmp.ne.s32.totalorder %s71, %s85
    %p87 = scmp.eq.s32.totalorder %s19, 0
    %p88 = por %p86, %p87
    %s90 = sadd.s32 %s89, 1
    %p93 = scmp.eq.s32.totalorder %s13, 1
    %p94 = scmp.ne.s32.totalorder %s89, %s91
    %p95 = scmp.eq.s32.totalorder %s13, 0
    %p96 = por %p94, %p95
    %p97 = scmp.ne.s32.totalorder %s89, %s91
    %p98 = scmp.eq.s32.totalorder %s18, 1
    %p99 = por %p97, %p98
    %p100 = scmp.ne.s32.totalorder %s91, %s92
    %p101 = scmp.eq.s32.totalorder %s18, 0
    %p102 = por %p100, %p101
    %p103 = scmp.ne.s32.totalorder %s91, %s92
    %p104 = scmp.eq.s32.totalorder %s19, 1
    %p105 = por %p103, %p104
    %p107 = scmp.ne.s32.totalorder %s92, %s106
    %p108 = scmp.eq.s32.totalorder %s19, 0
    %p109 = por %p107, %p108
    %s111 = sadd.s32 %s110, 1
    %p114 = scmp.eq.s32.totalorder %s13, 1
    %p115 = scmp.ne.s32.totalorder %s110, %s112
    %p116 = scmp.eq.s32.totalorder %s13, 0
    %p117 = por %p115, %p116
    %p118 = scmp.ne.s32.totalorder %s110, %s112
    %p119 = scmp.eq.s32.totalorder %s18, 1
    %p120 = por %p118, %p119
    %p121 = scmp.ne.s32.totalorder %s112, %s113
    %p122 = scmp.eq.s32.totalorder %s18, 0
    %p123 = por %p121, %p122
    %p124 = scmp.ne.s32.totalorder %s112, %s113
    %p125 = scmp.eq.s32.totalorder %s19, 1
    %p126 = por %p124, %p125
    %p128 = scmp.ne.s32.totalorder %s113, %s127
    %p129 = scmp.eq.s32.totalorder %s19, 0
    %p130 = por %p128, %p129
    %s132 = sadd.s32 %s131, 1
    %p135 = scmp.eq.s32.totalorder %s13, 1
    %p136 = scmp.ne.s32.totalorder %s131, %s133
    %p137 = scmp.eq.s32.totalorder %s13, 0
    %p138 = por %p136, %p137
    %p139 = scmp.ne.s32.totalorder %s131, %s133
    %p140 = scmp.eq.s32.totalorder %s18, 1
    %p141 = por %p139, %p140
    %p142 = scmp.ne.s32.totalorder %s133, %s134
    %p143 = scmp.eq.s32.totalorder %s18, 0
    %p144 = por %p142, %p143
    %p145 = scmp.ne.s32.totalorder %s133, %s134
    %p146 = scmp.eq.s32.totalorder %s19, 1
    %p147 = por %p145, %p146
    %p149 = scmp.ne.s32.totalorder %s134, %s148
    %p150 = scmp.eq.s32.totalorder %s19, 0
    %p151 = por %p149, %p150
    %s153 = sadd.s32 %s152, 1
    %p156 = scmp.eq.s32.totalorder %s13, 1
    %p157 = scmp.ne.s32.totalorder %s152, %s154
    %p158 = scmp.eq.s32.totalorder %s13, 0
    %p159 = por %p157, %p158
    %p160 = scmp.ne.s32.totalorder %s152, %s154
    %p161 = scmp.eq.s32.totalorder %s18, 1
    %p162 = por %p160, %p161
    %p163 = scmp.ne.s32.totalorder %s154, %s155
    %p164 = scmp.eq.s32.totalorder %s18, 0
    %p165 = por %p163, %p164
    %p166 = scmp.ne.s32.totalorder %s154, %s155
    %p167 = scmp.eq.s32.totalorder %s19, 1
    %p168 = por %p166, %p167
    %p170 = scmp.ne.s32.totalorder %s155, %s169
    %p171 = scmp.eq.s32.totalorder %s19, 0
    %p172 = por %p170, %p171
    %s173 = ssub.s32 %s13, %s20
    %p174 = scmp.eq.s32.totalorder %s173, 0
    %s176 = sadd.s32 %s175, 1
    %s177 = scalar_select %p174, %s175, %s176
    %p180 = pneg %p174
    %p181 = scmp.eq.s32.totalorder %s13, 1
    %p182 = por %p180, %p181
    %p183 = scmp.ne.s32.totalorder %s175, %s178
    %p184 = scmp.eq.s32.totalorder %s13, 0
    %p185 = por %p183, %p184
    %p186 = scmp.ne.s32.totalorder %s175, %s178
    %p187 = scmp.eq.s32.totalorder %s18, 1
    %p188 = por %p186, %p187
    %p189 = scmp.ne.s32.totalorder %s178, %s179
    %p190 = scmp.eq.s32.totalorder %s18, 0
    %p191 = por %p189, %p190
    %p192 = scmp.ne.s32.totalorder %s178, %s179
    %p193 = scmp.eq.s32.totalorder %s19, 1
    %p194 = por %p192, %p193
    %p196 = scmp.ne.s32.totalorder %s179, %s195
    %p197 = scmp.eq.s32.totalorder %s19, 0
    %p198 = por %p196, %p197
    %p199 = scmp.le.s32.totalorder 1, %s13
    %p200 = scmp.lt.s32.totalorder %s13, 3
    %p201 = pnand %p199, %p200
    %p202 = pneg %p201
    // Predicated region
    $region9: #{simkd_forward_pallas.2} parent=5 // pred_check
      _
    $region10: #{simkd_forward_pallas.2} parent=5 // pred_check_branch
      %204 = sbr.rel (%p201) target = $region12
    $region11: #{simkd_forward_pallas.2} parent=5 // pred_region
      %s205 = ssub.s32 %s13, 1
      // Predicated region
      $region13: #{simkd_forward_pallas.2} parent=11 // pred_check
        %p206 = pneg %p60
      $region14: #{simkd_forward_pallas.2} parent=11 // pred_check_branch
        %208 = sbr.rel (%p206) target = $region16
      $region15: #{simkd_forward_pallas.2} parent=11 // pred_region
        _
      $region16: #{simkd_forward_pallas.2} parent=11 // pred_fallthru
        _
      // Predicated region
      $region17: #{simkd_forward_pallas.2} parent=11 // pred_check
        %p209 = pneg %p81
      $region18: #{simkd_forward_pallas.2} parent=11 // pred_check_branch
        %211 = sbr.rel (%p209) target = $region20
      $region19: #{simkd_forward_pallas.2} parent=11 // pred_region
        _
      $region20: #{simkd_forward_pallas.2} parent=11 // pred_fallthru
        _
      // Predicated region
      $region21: #{simkd_forward_pallas.2} parent=11 // pred_check
        %p212 = pneg %p102
      $region22: #{simkd_forward_pallas.2} parent=11 // pred_check_branch
        %214 = sbr.rel (%p212) target = $region24
      $region23: #{simkd_forward_pallas.2} parent=11 // pred_region
        _
      $region24: #{simkd_forward_pallas.2} parent=11 // pred_fallthru
        _
      // Predicated region
      $region25: #{simkd_forward_pallas.2} parent=11 // pred_check
        %p215 = pneg %p123
      $region26: #{simkd_forward_pallas.2} parent=11 // pred_check_branch
        %217 = sbr.rel (%p215) target = $region28
      $region27: #{simkd_forward_pallas.2} parent=11 // pred_region
        _
      $region28: #{simkd_forward_pallas.2} parent=11 // pred_fallthru
        _
      // Predicated region
      $region29: #{simkd_forward_pallas.2} parent=11 // pred_check
        %p218 = pneg %p144
      $region30: #{simkd_forward_pallas.2} parent=11 // pred_check_branch
        %220 = sbr.rel (%p218) target = $region32
      $region31: #{simkd_forward_pallas.2} parent=11 // pred_region
        _
      $region32: #{simkd_forward_pallas.2} parent=11 // pred_fallthru
        _
      // Predicated region
      $region33: #{simkd_forward_pallas.2} parent=11 // pred_check
        %p221 = pneg %p165
      $region34: #{simkd_forward_pallas.2} parent=11 // pred_check_branch
        %223 = sbr.rel (%p221) target = $region36
      $region35: #{simkd_forward_pallas.2} parent=11 // pred_region
        _
      $region36: #{simkd_forward_pallas.2} parent=11 // pred_fallthru
        _
    $region12: #{simkd_forward_pallas.2} parent=5 // pred_fallthru
      _
    %p224 = scmp.lt.s32.totalorder %s13, 2
    // Predicated region
    $region37: #{simkd_forward_pallas.2} parent=5 // pred_check
      %p225 = pneg %p224
    $region38: #{simkd_forward_pallas.2} parent=5 // pred_check_branch
      %227 = sbr.rel (%p225) target = $region40
    $region39: #{simkd_forward_pallas.2} parent=5 // pred_region
      // Predicated region
      $region41: #{simkd_forward_pallas.2} parent=39 // pred_check
        %p228 = pneg %p33
      $region42: #{simkd_forward_pallas.2} parent=39 // pred_check_branch
        %230 = sbr.rel (%p228) target = $region44
      $region43: #{simkd_forward_pallas.2} parent=39 // pred_region
        %p231 = scmp.lt.s32.totalorder %s13, 1
        %s232 = scalar_select %p231, %s13, 1
        %s233 = smul.addr %s232, 8
        %s234 = smul.addr %s233, 4
        %s235 = scalar_lea.vmem %s0, %s234
      $region44: #{simkd_forward_pallas.2} parent=39 // pred_fallthru
        _
    $region40: #{simkd_forward_pallas.2} parent=5 // pred_fallthru
      _
    %p236 = scmp.le.s32.totalorder 1, %s13
    %p237 = scmp.lt.s32.totalorder %s13, 3
    %p238 = pnand %p236, %p237
    %p239 = pneg %p238
    // Predicated region
    $region45: #{simkd_forward_pallas.2} parent=5 // pred_check
      _
    $region46: #{simkd_forward_pallas.2} parent=5 // pred_check_branch
      %241 = sbr.rel (%p238) target = $region48
    $region47: #{simkd_forward_pallas.2} parent=5 // pred_region
      %s242 = ssub.s32 %s13, 1
      %p243 = scmp.lt.s32.totalorder %s18, 1
      %s244 = scalar_select %p243, %s18, 1
      %s245 = smul.addr %s244, 8
      %s246 = smul.addr %s245, 4
      %s247 = scalar_lea.vmem %s0, %s246
      %p248 = pneg %p39
      %p249 = pneg %p36
      %p250 = pneg %p60
      %p251 = pneg %p57
      %p252 = pneg %p81
      %p253 = pneg %p78
      %p254 = pneg %p102
      %p255 = pneg %p99
      %p256 = pneg %p123
      %p257 = pneg %p120
      %p258 = pneg %p144
      %p259 = pneg %p141
      %p260 = pneg %p165
      %p261 = pneg %p162
      %p262 = pneg %p191
      %p263 = pneg %p188
      %p264 = scmp.lt.s32.totalorder %s18, 1
      %s265 = scalar_select %p264, %s18, 1
      %s266 = smul.addr %s265, 8
      %s267 = smul.addr %s266, 8
      %s268 = scalar_lea.vmem %s7, %s267
      %p269 = scmp.lt.s32.totalorder %s18, 1
      %s270 = scalar_select %p269, %s18, 1
      %s271 = smul.addr %s270, 8
      %s272 = smul.addr %s271, 4
      %s273 = scalar_lea.vmem %s0, %s272
      %p274 = scmp.lt.s32.totalorder %s18, 1
      %s275 = scalar_select %p274, %s18, 1
      %s276 = smul.addr %s275, 8
      %s277 = smul.addr %s276, 8
      %s278 = scalar_lea.vmem %s7, %s277
      %v280 = vld [vmem:[%s273] sm:$0xf]
      %v281 = vld [vmem:[%s273 + $0x4] sm:$0xf]
      %v282 = vld [vmem:[%s273 + $0x8] sm:$0xf]
      %v283 = vld [vmem:[%s273 + $0xc] sm:$0xf]
      %v284 = vld [vmem:[%s273 + $0x10] sm:$0xf]
      %v285 = vld [vmem:[%s273 + $0x14] sm:$0xf]
      %v286 = vld [vmem:[%s273 + $0x18] sm:$0xf]
      %v287 = vld [vmem:[%s273 + $0x1c] sm:$0xf]
      %v288 = vld [vmem:[%s1] sm:$0xf]
      %v289 = vld [vmem:[%s1 + $0x4] sm:$0xf]
      %v290 = vld [vmem:[%s1 + $0x8] sm:$0xf]
      %v291 = vld [vmem:[%s1 + $0xc] sm:$0xf]
      %v292 = vld [vmem:[%s1 + $0x10] sm:$0xf]
      %v293 = vld [vmem:[%s1 + $0x14] sm:$0xf]
      %v294 = vld [vmem:[%s1 + $0x18] sm:$0xf]
      %v295 = vld [vmem:[%s1 + $0x1c] sm:$0xf]
      %v296 = vld [vmem:[%s1 + $0x20] sm:$0xf]
      %v297 = vld [vmem:[%s1 + $0x24] sm:$0xf]
      %v298 = vld [vmem:[%s1 + $0x28] sm:$0xf]
      %v299 = vld [vmem:[%s1 + $0x2c] sm:$0xf]
      %v300 = vld [vmem:[%s1 + $0x30] sm:$0xf]
      %v301 = vld [vmem:[%s1 + $0x34] sm:$0xf]
      %v302 = vld [vmem:[%s1 + $0x38] sm:$0xf]
      %v303 = vld [vmem:[%s1 + $0x3c] sm:$0xf]
      %v304 = vld [vmem:[%s2] sm:$0x1]
      %v306 = vlaneseq
      %v307 = vshrl.u32 %v306, 7
      %v308 = vsub.s32 0, %v307
      %v309 = vrot.slane %v304, %v308
      %v319 = vunpack.c.l.b16 %v280
      %v320 = vunpack.c.l.b16 %v281
      %v321 = vunpack.c.l.b16 %v282
      %v322 = vunpack.c.l.b16 %v283
      %v323 = vunpack.c.l.b16 %v284
      %v324 = vunpack.c.l.b16 %v285
      %v325 = vunpack.c.l.b16 %v286
      %v326 = vunpack.c.l.b16 %v287
      %v327 = vpack.c.b16 %v320, %v319
      %v328 = vpack.c.b16 %v322, %v321
      %v329 = vpack.c.b16 %v324, %v323
      %v330 = vpack.c.b16 %v326, %v325
      %v351 = vunpack.c.l.b16 %v288
      %v352 = vunpack.c.l.b16 %v289
      %v353 = vunpack.c.l.b16 %v290
      %v354 = vunpack.c.l.b16 %v291
      %v355 = vunpack.c.l.b16 %v292
      %v356 = vunpack.c.l.b16 %v293
      %v357 = vunpack.c.l.b16 %v294
      %v358 = vunpack.c.l.b16 %v295
      %v359 = vunpack.c.l.b16 %v296
      %v360 = vunpack.c.l.b16 %v297
      %v361 = vunpack.c.l.b16 %v298
      %v362 = vunpack.c.l.b16 %v299
      %v363 = vunpack.c.l.b16 %v300
      %v364 = vunpack.c.l.b16 %v301
      %v365 = vunpack.c.l.b16 %v302
      %v366 = vunpack.c.l.b16 %v303
      %v367 = vpack.c.b16 %v352, %v351
      %v368 = vpack.c.b16 %v354, %v353
      %v369 = vpack.c.b16 %v356, %v355
      %v370 = vpack.c.b16 %v358, %v357
      %v371 = vpack.c.b16 %v360, %v359
      %v372 = vpack.c.b16 %v362, %v361
      %v373 = vpack.c.b16 %v364, %v363
      %v374 = vpack.c.b16 %v366, %v365
      %383 = vmatprep.subr.bf16.mxu0 0
      %384 = vmatpush1.bf16.msra.mxu0 %v367
      %385 = vmatprep.subr.bf16.mxu0 0
      %386 = vmatpush1.bf16.msra.mxu0 %v368
      %387 = vmatprep.subr.bf16.mxu0 0
      %388 = vmatpush1.bf16.msra.mxu0 %v369
      %389 = vmatprep.subr.bf16.mxu0 0
      %390 = vmatpush1.bf16.msra.mxu0 %v370
      %391 = vmatprep.subr.bf16.mxu0 0
      %392 = vmatpush1.bf16.msra.mxu0 %v371
      %393 = vmatprep.subr.bf16.mxu0 0
      %394 = vmatpush1.bf16.msra.mxu0 %v372
      %395 = vmatprep.subr.bf16.mxu0 0
      %396 = vmatpush1.bf16.msra.mxu0 %v373
      %397 = vmatprep.subr.bf16.mxu0 0
      %398 = vmatpush1.bf16.msra.mxu0 %v374
      %399 = vmatprep.subr.bf16.mxu0 0
      %400 = vmatpush1.bf16.msra.mxu0 0
      %401 = vmatprep.subr.bf16.mxu0 0
      %402 = vmatpush1.bf16.msra.mxu0 0
      %403 = vmatprep.subr.bf16.mxu0 0
      %404 = vmatpush1.bf16.msra.mxu0 0
      %405 = vmatprep.subr.bf16.mxu0 0
      %406 = vmatpush1.bf16.msra.mxu0 0
      %407 = vmatprep.subr.bf16.mxu0 0
      %408 = vmatpush1.bf16.msra.mxu0 0
      %409 = vmatprep.subr.bf16.mxu0 0
      %410 = vmatpush1.bf16.msra.mxu0 0
      %411 = vmatprep.subr.bf16.mxu0 0
      %412 = vmatpush1.bf16.msra.mxu0 0
      %413 = vmatprep.subr.bf16.mxu0 0
      %414 = vmatpush1.bf16.msra.mxu0 0
      %415 = vmatprep.mubr.bf16.mxu0 0
      %416 = vmatmul.mubr.bf16.gmra.mrb[0].mxu0 %v327
      %v417 = vpop.f32.mrb[0].mxu0
      %v418 = vadd.f32 %v309, %v417
      %v419 = vpop.f32.mrb[0].mxu0
      %v420 = vpop.f32.mrb[0].mxu0
      %v421 = vadd.f32 %v309, %v420
      %v422 = vpop.f32.mrb[0].mxu0
      %423 = vmatprep.mubr.bf16.mxu0 0
      %424 = vmatmul.mubr.bf16.gmra.mrb[0].mxu0 %v328
      %v425 = vpop.f32.mrb[0].mxu0
      %v426 = vadd.f32 %v309, %v425
      %v427 = vpop.f32.mrb[0].mxu0
      %v428 = vpop.f32.mrb[0].mxu0
      %v429 = vadd.f32 %v309, %v428
      %v430 = vpop.f32.mrb[0].mxu0
      %431 = vmatprep.mubr.bf16.mxu0 0
      %432 = vmatmul.mubr.bf16.gmra.mrb[0].mxu0 %v329
      %v433 = vpop.f32.mrb[0].mxu0
      %v434 = vadd.f32 %v309, %v433
      %v435 = vpop.f32.mrb[0].mxu0
      %v436 = vpop.f32.mrb[0].mxu0
      %v437 = vadd.f32 %v309, %v436
      %v438 = vpop.f32.mrb[0].mxu0
      %439 = vmatprep.mubr.bf16.mxu0 0
      %440 = vmatmul.mubr.bf16.gmra.mrb[0].mxu0 %v330
      %v441 = vpop.f32.mrb[0].mxu0
      %v442 = vadd.f32 %v309, %v441
      %v443 = vpop.f32.mrb[0].mxu0
      %v444 = vpop.f32.mrb[0].mxu0
      %v445 = vadd.f32 %v309, %v444
      %v446 = vpop.f32.mrb[0].mxu0
      %447 = vdwg.mxu0
      %v448 = vmax.f32 %v418, 0.0
      %v449 = vmax.f32 %v421, 0.0
      %v450 = vmax.f32 %v426, 0.0
      %v451 = vmax.f32 %v429, 0.0
      %v452 = vmax.f32 %v434, 0.0
      %v453 = vmax.f32 %v437, 0.0
      %v454 = vmax.f32 %v442, 0.0
      %v455 = vmax.f32 %v445, 0.0
      %456 = vst [vmem:[#allocation2] sm:$0xff] 0.0
      %457 = vst [vmem:[#allocation2 + $0x8] sm:$0x3] 0.0
      %s458 = scalar_lea.vmem [#allocation2], 144
      %459 = vst [vmem:[%s458] sm:$0xff] 0.0
      %460 = vst [vmem:[%s458 + $0x8] sm:$0x3] 0.0
      %461 = vst [vmem:[#allocation2] sm:$0x1] 0.0
      %462 = vst [vmem:[#allocation2 + $0x10] sm:$0x1] 0.0
      %463 = vst [vmem:[#allocation2 + $0x20] sm:$0x1] 0.0
      %464 = vst [vmem:[#allocation2 + $0x30] sm:$0x1] 0.0
      %465 = vst [vmem:[#allocation2 + $0x40] sm:$0x1] 0.0
      %466 = vst [vmem:[#allocation2 + $0x50] sm:$0x1] 0.0
      %467 = vst [vmem:[#allocation2 + $0x60] sm:$0x1] 0.0
      %468 = vst [vmem:[#allocation2 + $0x70] sm:$0x1] 0.0
      %469 = vst [vmem:[#allocation2 + $0x80] sm:$0x1] 0.0
      %470 = vst [vmem:[#allocation2 + $0x90] sm:$0x1] 0.0
      %471 = vst [vmem:[#allocation2 + $0x9] sm:$0x1] 0.0
      %472 = vst [vmem:[#allocation2 + $0x19] sm:$0x1] 0.0
      %473 = vst [vmem:[#allocation2 + $0x29] sm:$0x1] 0.0
      %474 = vst [vmem:[#allocation2 + $0x39] sm:$0x1] 0.0
      %475 = vst [vmem:[#allocation2 + $0x49] sm:$0x1] 0.0
      %476 = vst [vmem:[#allocation2 + $0x59] sm:$0x1] 0.0
      %477 = vst [vmem:[#allocation2 + $0x69] sm:$0x1] 0.0
      %478 = vst [vmem:[#allocation2 + $0x79] sm:$0x1] 0.0
      %479 = vst [vmem:[#allocation2 + $0x89] sm:$0x1] 0.0
      %480 = vst [vmem:[#allocation2 + $0x99] sm:$0x1] 0.0
      %s481 = scalar_lea.vmem [#allocation2], 16
      %482 = vst [vmem:[%s481 + $0x1] sm:$0xff] %v448
      %483 = vst [vmem:[%s481 + $0x11] sm:$0xff] %v449
      %484 = vst [vmem:[%s481 + $0x21] sm:$0xff] %v450
      %485 = vst [vmem:[%s481 + $0x31] sm:$0xff] %v451
      %486 = vst [vmem:[%s481 + $0x41] sm:$0xff] %v452
      %487 = vst [vmem:[%s481 + $0x51] sm:$0xff] %v453
      %488 = vst [vmem:[%s481 + $0x61] sm:$0xff] %v454
      %489 = vst [vmem:[%s481 + $0x71] sm:$0xff] %v455
      %v490 = vld [vmem:[#allocation2] sm:$0xff]
      %v491 = vld [vmem:[#allocation2 + $0x10] sm:$0xff]
      %v492 = vld [vmem:[#allocation2 + $0x20] sm:$0xff]
      %v493 = vld [vmem:[#allocation2 + $0x30] sm:$0xff]
      %v494 = vld [vmem:[#allocation2 + $0x40] sm:$0xff]
      %v495 = vld [vmem:[#allocation2 + $0x50] sm:$0xff]
      %v496 = vld [vmem:[#allocation2 + $0x60] sm:$0xff]
      %v497 = vld [vmem:[#allocation2 + $0x70] sm:$0xff]
      %v498 = vld [vmem:[#allocation2 + $0x1] sm:$0xff]
      %v499 = vld [vmem:[#allocation2 + $0x11] sm:$0xff]
      %v500 = vld [vmem:[#allocation2 + $0x21] sm:$0xff]
      %v501 = vld [vmem:[#allocation2 + $0x31] sm:$0xff]
      %v502 = vld [vmem:[#allocation2 + $0x41] sm:$0xff]
      %v503 = vld [vmem:[#allocation2 + $0x51] sm:$0xff]
      %v504 = vld [vmem:[#allocation2 + $0x61] sm:$0xff]
      %v505 = vld [vmem:[#allocation2 + $0x71] sm:$0xff]
      %v506 = vld [vmem:[#allocation2 + $0x2] sm:$0xff]
      %v507 = vld [vmem:[#allocation2 + $0x12] sm:$0xff]
      %v508 = vld [vmem:[#allocation2 + $0x22] sm:$0xff]
      %v509 = vld [vmem:[#allocation2 + $0x32] sm:$0xff]
      %v510 = vld [vmem:[#allocation2 + $0x42] sm:$0xff]
      %v511 = vld [vmem:[#allocation2 + $0x52] sm:$0xff]
      %v512 = vld [vmem:[#allocation2 + $0x62] sm:$0xff]
      %v513 = vld [vmem:[#allocation2 + $0x72] sm:$0xff]
      %v514 = vld [vmem:[%s481] sm:$0xff]
      %v515 = vld [vmem:[%s481 + $0x10] sm:$0xff]
      %v516 = vld [vmem:[%s481 + $0x20] sm:$0xff]
      %v517 = vld [vmem:[%s481 + $0x30] sm:$0xff]
      %v518 = vld [vmem:[%s481 + $0x40] sm:$0xff]
      %v519 = vld [vmem:[%s481 + $0x50] sm:$0xff]
      %v520 = vld [vmem:[%s481 + $0x60] sm:$0xff]
      %v521 = vld [vmem:[%s481 + $0x70] sm:$0xff]
      %v522 = vld [vmem:[%s481 + $0x1] sm:$0xff]
      %v523 = vld [vmem:[%s481 + $0x11] sm:$0xff]
      %v524 = vld [vmem:[%s481 + $0x21] sm:$0xff]
      %v525 = vld [vmem:[%s481 + $0x31] sm:$0xff]
      %v526 = vld [vmem:[%s481 + $0x41] sm:$0xff]
      %v527 = vld [vmem:[%s481 + $0x51] sm:$0xff]
      %v528 = vld [vmem:[%s481 + $0x61] sm:$0xff]
      %v529 = vld [vmem:[%s481 + $0x71] sm:$0xff]
      %v530 = vld [vmem:[%s481 + $0x2] sm:$0xff]
      %v531 = vld [vmem:[%s481 + $0x12] sm:$0xff]
      %v532 = vld [vmem:[%s481 + $0x22] sm:$0xff]
      %v533 = vld [vmem:[%s481 + $0x32] sm:$0xff]
      %v534 = vld [vmem:[%s481 + $0x42] sm:$0xff]
      %v535 = vld [vmem:[%s481 + $0x52] sm:$0xff]
      %v536 = vld [vmem:[%s481 + $0x62] sm:$0xff]
      %v537 = vld [vmem:[%s481 + $0x72] sm:$0xff]
      %s538 = scalar_lea.vmem [#allocation2], 32
      %v539 = vld [vmem:[%s538] sm:$0xff]
      %v540 = vld [vmem:[%s538 + $0x10] sm:$0xff]
      %v541 = vld [vmem:[%s538 + $0x20] sm:$0xff]
      %v542 = vld [vmem:[%s538 + $0x30] sm:$0xff]
      %v543 = vld [vmem:[%s538 + $0x40] sm:$0xff]
      %v544 = vld [vmem:[%s538 + $0x50] sm:$0xff]
      %v545 = vld [vmem:[%s538 + $0x60] sm:$0xff]
      %v546 = vld [vmem:[%s538 + $0x70] sm:$0xff]
      %v547 = vld [vmem:[%s538 + $0x1] sm:$0xff]
      %v548 = vld [vmem:[%s538 + $0x11] sm:$0xff]
      %v549 = vld [vmem:[%s538 + $0x21] sm:$0xff]
      %v550 = vld [vmem:[%s538 + $0x31] sm:$0xff]
      %v551 = vld [vmem:[%s538 + $0x41] sm:$0xff]
      %v552 = vld [vmem:[%s538 + $0x51] sm:$0xff]
      %v553 = vld [vmem:[%s538 + $0x61] sm:$0xff]
      %v554 = vld [vmem:[%s538 + $0x71] sm:$0xff]
      %v555 = vld [vmem:[%s538 + $0x2] sm:$0xff]
      %v556 = vld [vmem:[%s538 + $0x12] sm:$0xff]
      %v557 = vld [vmem:[%s538 + $0x22] sm:$0xff]
      %v558 = vld [vmem:[%s538 + $0x32] sm:$0xff]
      %v559 = vld [vmem:[%s538 + $0x42] sm:$0xff]
      %v560 = vld [vmem:[%s538 + $0x52] sm:$0xff]
      %v561 = vld [vmem:[%s538 + $0x62] sm:$0xff]
      %v562 = vld [vmem:[%s538 + $0x72] sm:$0xff]
      %v563 = vpack.c.bf16 %v491, %v490
      %v564 = vpack.c.bf16 %v499, %v498
      %v565 = vpack.c.bf16 %v507, %v506
      %v566 = vpack.c.bf16 %v515, %v514
      %v567 = vpack.c.bf16 %v523, %v522
      %v568 = vpack.c.bf16 %v531, %v530
      %v569 = vpack.c.bf16 %v540, %v539
      %v570 = vpack.c.bf16 %v548, %v547
      %v571 = vpack.c.bf16 %v556, %v555
      %v572 = vpack.c.bf16 %v493, %v492
      %v573 = vpack.c.bf16 %v501, %v500
      %v574 = vpack.c.bf16 %v509, %v508
      %v575 = vpack.c.bf16 %v517, %v516
      %v576 = vpack.c.bf16 %v525, %v524
      %v577 = vpack.c.bf16 %v533, %v532
      %v578 = vpack.c.bf16 %v542, %v541
      %v579 = vpack.c.bf16 %v550, %v549
      %v580 = vpack.c.bf16 %v558, %v557
      %v581 = vpack.c.bf16 %v495, %v494
      %v582 = vpack.c.bf16 %v503, %v502
      %v583 = vpack.c.bf16 %v511, %v510
      %v584 = vpack.c.bf16 %v519, %v518
      %v585 = vpack.c.bf16 %v527, %v526
      %v586 = vpack.c.bf16 %v535, %v534
      %v587 = vpack.c.bf16 %v544, %v543
      %v588 = vpack.c.bf16 %v552, %v551
      %v589 = vpack.c.bf16 %v560, %v559
      %v590 = vpack.c.bf16 %v497, %v496
      %v591 = vpack.c.bf16 %v505, %v504
      %v592 = vpack.c.bf16 %v513, %v512
      %v593 = vpack.c.bf16 %v521, %v520
      %v594 = vpack.c.bf16 %v529, %v528
      %v595 = vpack.c.bf16 %v537, %v536
      %v596 = vpack.c.bf16 %v546, %v545
      %v597 = vpack.c.bf16 %v554, %v553
      %v598 = vpack.c.bf16 %v562, %v561
      %v599 = vld [vmem:[%s3] sm:$0xf]
      %v600 = vld [vmem:[%s3 + $0x4] sm:$0xf]
      %v601 = vld [vmem:[%s3 + $0x8] sm:$0xf]
      %v602 = vld [vmem:[%s3 + $0xc] sm:$0xf]
      %v603 = vld [vmem:[%s3 + $0x10] sm:$0xf]
      %v604 = vld [vmem:[%s3 + $0x14] sm:$0xf]
      %v605 = vld [vmem:[%s3 + $0x18] sm:$0xf]
      %v606 = vld [vmem:[%s3 + $0x1c] sm:$0xf]
      %v607 = vld [vmem:[%s3 + $0x20] sm:$0xf]
      %v608 = vld [vmem:[%s3 + $0x24] sm:$0xf]
      %v609 = vld [vmem:[%s3 + $0x28] sm:$0xf]
      %v610 = vld [vmem:[%s3 + $0x2c] sm:$0xf]
      %v611 = vld [vmem:[%s3 + $0x30] sm:$0xf]
      %v612 = vld [vmem:[%s3 + $0x34] sm:$0xf]
      %v613 = vld [vmem:[%s3 + $0x38] sm:$0xf]
      %v614 = vld [vmem:[%s3 + $0x3c] sm:$0xf]
      %v615 = vld [vmem:[%s3 + $0x40] sm:$0xf]
      %v616 = vld [vmem:[%s3 + $0x44] sm:$0xf]
      %v617 = vld [vmem:[%s3 + $0x48] sm:$0xf]
      %v618 = vld [vmem:[%s3 + $0x4c] sm:$0xf]
      %v619 = vld [vmem:[%s3 + $0x50] sm:$0xf]
      %v620 = vld [vmem:[%s3 + $0x54] sm:$0xf]
      %v621 = vld [vmem:[%s3 + $0x58] sm:$0xf]
      %v622 = vld [vmem:[%s3 + $0x5c] sm:$0xf]
      %v623 = vld [vmem:[%s3 + $0x60] sm:$0xf]
      %v624 = vld [vmem:[%s3 + $0x64] sm:$0xf]
      %v625 = vld [vmem:[%s3 + $0x68] sm:$0xf]
      %v626 = vld [vmem:[%s3 + $0x6c] sm:$0xf]
      %v627 = vld [vmem:[%s3 + $0x70] sm:$0xf]
      %v628 = vld [vmem:[%s3 + $0x74] sm:$0xf]
      %v629 = vld [vmem:[%s3 + $0x78] sm:$0xf]
      %v630 = vld [vmem:[%s3 + $0x7c] sm:$0xf]
      %v631 = vld [vmem:[%s3 + $0x80] sm:$0xf]
      %v632 = vld [vmem:[%s3 + $0x84] sm:$0xf]
      %v633 = vld [vmem:[%s3 + $0x88] sm:$0xf]
      %v634 = vld [vmem:[%s3 + $0x8c] sm:$0xf]
      %v635 = vld [vmem:[%s3 + $0x90] sm:$0xf]
      %v636 = vld [vmem:[%s3 + $0x94] sm:$0xf]
      %v637 = vld [vmem:[%s3 + $0x98] sm:$0xf]
      %v638 = vld [vmem:[%s3 + $0x9c] sm:$0xf]
      %v639 = vld [vmem:[%s3 + $0xa0] sm:$0xf]
      %v640 = vld [vmem:[%s3 + $0xa4] sm:$0xf]
      %v641 = vld [vmem:[%s3 + $0xa8] sm:$0xf]
      %v642 = vld [vmem:[%s3 + $0xac] sm:$0xf]
      %v643 = vld [vmem:[%s3 + $0xb0] sm:$0xf]
      %v644 = vld [vmem:[%s3 + $0xb4] sm:$0xf]
      %v645 = vld [vmem:[%s3 + $0xb8] sm:$0xf]
      %v646 = vld [vmem:[%s3 + $0xbc] sm:$0xf]
      %v647 = vld [vmem:[%s3 + $0xc0] sm:$0xf]
      %v648 = vld [vmem:[%s3 + $0xc4] sm:$0xf]
      %v649 = vld [vmem:[%s3 + $0xc8] sm:$0xf]
      %v650 = vld [vmem:[%s3 + $0xcc] sm:$0xf]
      %v651 = vld [vmem:[%s3 + $0xd0] sm:$0xf]
      %v652 = vld [vmem:[%s3 + $0xd4] sm:$0xf]
      %v653 = vld [vmem:[%s3 + $0xd8] sm:$0xf]
      %v654 = vld [vmem:[%s3 + $0xdc] sm:$0xf]
      %v655 = vld [vmem:[%s3 + $0xe0] sm:$0xf]
      %v656 = vld [vmem:[%s3 + $0xe4] sm:$0xf]
      %v657 = vld [vmem:[%s3 + $0xe8] sm:$0xf]
      %v658 = vld [vmem:[%s3 + $0xec] sm:$0xf]
      %v659 = vld [vmem:[%s3 + $0xf0] sm:$0xf]
      %v660 = vld [vmem:[%s3 + $0xf4] sm:$0xf]
      %v661 = vld [vmem:[%s3 + $0xf8] sm:$0xf]
      %v662 = vld [vmem:[%s3 + $0xfc] sm:$0xf]
      %v663 = vld [vmem:[%s3 + $0x100] sm:$0xf]
      %v664 = vld [vmem:[%s3 + $0x104] sm:$0xf]
      %v665 = vld [vmem:[%s3 + $0x108] sm:$0xf]
      %v666 = vld [vmem:[%s3 + $0x10c] sm:$0xf]
      %v667 = vld [vmem:[%s3 + $0x110] sm:$0xf]
      %v668 = vld [vmem:[%s3 + $0x114] sm:$0xf]
      %v669 = vld [vmem:[%s3 + $0x118] sm:$0xf]
      %v670 = vld [vmem:[%s3 + $0x11c] sm:$0xf]
      %v671 = vld [vmem:[%s3 + $0x120] sm:$0xf]
      %v672 = vld [vmem:[%s3 + $0x124] sm:$0xf]
      %v673 = vld [vmem:[%s3 + $0x128] sm:$0xf]
      %v674 = vld [vmem:[%s3 + $0x12c] sm:$0xf]
      %v675 = vld [vmem:[%s3 + $0x130] sm:$0xf]
      %v676 = vld [vmem:[%s3 + $0x134] sm:$0xf]
      %v677 = vld [vmem:[%s3 + $0x138] sm:$0xf]
      %v678 = vld [vmem:[%s3 + $0x13c] sm:$0xf]
      %v679 = vld [vmem:[%s3 + $0x140] sm:$0xf]
      %v680 = vld [vmem:[%s3 + $0x144] sm:$0xf]
      %v681 = vld [vmem:[%s3 + $0x148] sm:$0xf]
      %v682 = vld [vmem:[%s3 + $0x14c] sm:$0xf]
      %v683 = vld [vmem:[%s3 + $0x150] sm:$0xf]
      %v684 = vld [vmem:[%s3 + $0x154] sm:$0xf]
      %v685 = vld [vmem:[%s3 + $0x158] sm:$0xf]
      %v686 = vld [vmem:[%s3 + $0x15c] sm:$0xf]
      %v687 = vld [vmem:[%s3 + $0x160] sm:$0xf]
      %v688 = vld [vmem:[%s3 + $0x164] sm:$0xf]
      %v689 = vld [vmem:[%s3 + $0x168] sm:$0xf]
      %v690 = vld [vmem:[%s3 + $0x16c] sm:$0xf]
      %v691 = vld [vmem:[%s3 + $0x170] sm:$0xf]
      %v692 = vld [vmem:[%s3 + $0x174] sm:$0xf]
      %v693 = vld [vmem:[%s3 + $0x178] sm:$0xf]
      %v694 = vld [vmem:[%s3 + $0x17c] sm:$0xf]
      %v695 = vld [vmem:[%s3 + $0x180] sm:$0xf]
      %v696 = vld [vmem:[%s3 + $0x184] sm:$0xf]
      %v697 = vld [vmem:[%s3 + $0x188] sm:$0xf]
      %v698 = vld [vmem:[%s3 + $0x18c] sm:$0xf]
      %v699 = vld [vmem:[%s3 + $0x190] sm:$0xf]
      %v700 = vld [vmem:[%s3 + $0x194] sm:$0xf]
      %v701 = vld [vmem:[%s3 + $0x198] sm:$0xf]
      %v702 = vld [vmem:[%s3 + $0x19c] sm:$0xf]
      %v703 = vld [vmem:[%s3 + $0x1a0] sm:$0xf]
      %v704 = vld [vmem:[%s3 + $0x1a4] sm:$0xf]
      %v705 = vld [vmem:[%s3 + $0x1a8] sm:$0xf]
      %v706 = vld [vmem:[%s3 + $0x1ac] sm:$0xf]
      %v707 = vld [vmem:[%s3 + $0x1b0] sm:$0xf]
      %v708 = vld [vmem:[%s3 + $0x1b4] sm:$0xf]
      %v709 = vld [vmem:[%s3 + $0x1b8] sm:$0xf]
      %v710 = vld [vmem:[%s3 + $0x1bc] sm:$0xf]
      %v711 = vld [vmem:[%s3 + $0x1c0] sm:$0xf]
      %v712 = vld [vmem:[%s3 + $0x1c4] sm:$0xf]
      %v713 = vld [vmem:[%s3 + $0x1c8] sm:$0xf]
      %v714 = vld [vmem:[%s3 + $0x1cc] sm:$0xf]
      %v715 = vld [vmem:[%s3 + $0x1d0] sm:$0xf]
      %v716 = vld [vmem:[%s3 + $0x1d4] sm:$0xf]
      %v717 = vld [vmem:[%s3 + $0x1d8] sm:$0xf]
      %v718 = vld [vmem:[%s3 + $0x1dc] sm:$0xf]
      %v719 = vld [vmem:[%s3 + $0x1e0] sm:$0xf]
      %v720 = vld [vmem:[%s3 + $0x1e4] sm:$0xf]
      %v721 = vld [vmem:[%s3 + $0x1e8] sm:$0xf]
      %v722 = vld [vmem:[%s3 + $0x1ec] sm:$0xf]
      %v723 = vld [vmem:[%s3 + $0x1f0] sm:$0xf]
      %v724 = vld [vmem:[%s3 + $0x1f4] sm:$0xf]
      %v725 = vld [vmem:[%s3 + $0x1f8] sm:$0xf]
      %v726 = vld [vmem:[%s3 + $0x1fc] sm:$0xf]
      %v727 = vld [vmem:[%s3 + $0x200] sm:$0xf]
      %v728 = vld [vmem:[%s3 + $0x204] sm:$0xf]
      %v729 = vld [vmem:[%s3 + $0x208] sm:$0xf]
      %v730 = vld [vmem:[%s3 + $0x20c] sm:$0xf]
      %v731 = vld [vmem:[%s3 + $0x210] sm:$0xf]
      %v732 = vld [vmem:[%s3 + $0x214] sm:$0xf]
      %v733 = vld [vmem:[%s3 + $0x218] sm:$0xf]
      %v734 = vld [vmem:[%s3 + $0x21c] sm:$0xf]
      %v735 = vld [vmem:[%s3 + $0x220] sm:$0xf]
      %v736 = vld [vmem:[%s3 + $0x224] sm:$0xf]
      %v737 = vld [vmem:[%s3 + $0x228] sm:$0xf]
      %v738 = vld [vmem:[%s3 + $0x22c] sm:$0xf]
      %v739 = vld [vmem:[%s3 + $0x230] sm:$0xf]
      %v740 = vld [vmem:[%s3 + $0x234] sm:$0xf]
      %v741 = vld [vmem:[%s3 + $0x238] sm:$0xf]
      %v742 = vld [vmem:[%s3 + $0x23c] sm:$0xf]
      %v743 = vld [vmem:[%s4] sm:$0x1]
      %v745 = vlaneseq
      %v746 = vshrl.u32 %v745, 7
      %v747 = vsub.s32 0, %v746
      %v748 = vrot.slane %v743, %v747
      %v894 = vunpack.c.l.b16 %v599
      %v895 = vunpack.c.l.b16 %v600
      %v896 = vunpack.c.l.b16 %v601
      %v897 = vunpack.c.l.b16 %v602
      %v898 = vunpack.c.l.b16 %v603
      %v899 = vunpack.c.l.b16 %v604
      %v900 = vunpack.c.l.b16 %v605
      %v901 = vunpack.c.l.b16 %v606
      %v902 = vunpack.c.l.b16 %v607
      %v903 = vunpack.c.l.b16 %v608
      %v904 = vunpack.c.l.b16 %v609
      %v905 = vunpack.c.l.b16 %v610
      %v906 = vunpack.c.l.b16 %v611
      %v907 = vunpack.c.l.b16 %v612
      %v908 = vunpack.c.l.b16 %v613
      %v909 = vunpack.c.l.b16 %v614
      %v910 = vunpack.c.l.b16 %v615
      %v911 = vunpack.c.l.b16 %v616
      %v912 = vunpack.c.l.b16 %v617
      %v913 = vunpack.c.l.b16 %v618
      %v914 = vunpack.c.l.b16 %v619
      %v915 = vunpack.c.l.b16 %v620
      %v916 = vunpack.c.l.b16 %v621
      %v917 = vunpack.c.l.b16 %v622
      %v918 = vunpack.c.l.b16 %v623
      %v919 = vunpack.c.l.b16 %v624
      %v920 = vunpack.c.l.b16 %v625
      %v921 = vunpack.c.l.b16 %v626
      %v922 = vunpack.c.l.b16 %v627
      %v923 = vunpack.c.l.b16 %v628
      %v924 = vunpack.c.l.b16 %v629
      %v925 = vunpack.c.l.b16 %v630
      %v926 = vunpack.c.l.b16 %v631
      %v927 = vunpack.c.l.b16 %v632
      %v928 = vunpack.c.l.b16 %v633
      %v929 = vunpack.c.l.b16 %v634
      %v930 = vunpack.c.l.b16 %v635
      %v931 = vunpack.c.l.b16 %v636
      %v932 = vunpack.c.l.b16 %v637
      %v933 = vunpack.c.l.b16 %v638
      %v934 = vunpack.c.l.b16 %v639
      %v935 = vunpack.c.l.b16 %v640
      %v936 = vunpack.c.l.b16 %v641
      %v937 = vunpack.c.l.b16 %v642
      %v938 = vunpack.c.l.b16 %v643
      %v939 = vunpack.c.l.b16 %v644
      %v940 = vunpack.c.l.b16 %v645
      %v941 = vunpack.c.l.b16 %v646
      %v942 = vunpack.c.l.b16 %v647
      %v943 = vunpack.c.l.b16 %v648
      %v944 = vunpack.c.l.b16 %v649
      %v945 = vunpack.c.l.b16 %v650
      %v946 = vunpack.c.l.b16 %v651
      %v947 = vunpack.c.l.b16 %v652
      %v948 = vunpack.c.l.b16 %v653
      %v949 = vunpack.c.l.b16 %v654
      %v950 = vunpack.c.l.b16 %v655
      %v951 = vunpack.c.l.b16 %v656
      %v952 = vunpack.c.l.b16 %v657
      %v953 = vunpack.c.l.b16 %v658
      %v954 = vunpack.c.l.b16 %v659
      %v955 = vunpack.c.l.b16 %v660
      %v956 = vunpack.c.l.b16 %v661
      %v957 = vunpack.c.l.b16 %v662
      %v958 = vunpack.c.l.b16 %v663
      %v959 = vunpack.c.l.b16 %v664
      %v960 = vunpack.c.l.b16 %v665
      %v961 = vunpack.c.l.b16 %v666
      %v962 = vunpack.c.l.b16 %v667
      %v963 = vunpack.c.l.b16 %v668
      %v964 = vunpack.c.l.b16 %v669
      %v965 = vunpack.c.l.b16 %v670
      %v966 = vunpack.c.l.b16 %v671
      %v967 = vunpack.c.l.b16 %v672
      %v968 = vunpack.c.l.b16 %v673
      %v969 = vunpack.c.l.b16 %v674
      %v970 = vunpack.c.l.b16 %v675
      %v971 = vunpack.c.l.b16 %v676
      %v972 = vunpack.c.l.b16 %v677
      %v973 = vunpack.c.l.b16 %v678
      %v974 = vunpack.c.l.b16 %v679
      %v975 = vunpack.c.l.b16 %v680
      %v976 = vunpack.c.l.b16 %v681
      %v977 = vunpack.c.l.b16 %v682
      %v978 = vunpack.c.l.b16 %v683
      %v979 = vunpack.c.l.b16 %v684
      %v980 = vunpack.c.l.b16 %v685
      %v981 = vunpack.c.l.b16 %v686
      %v982 = vunpack.c.l.b16 %v687
      %v983 = vunpack.c.l.b16 %v688
      %v984 = vunpack.c.l.b16 %v689
      %v985 = vunpack.c.l.b16 %v690
      %v986 = vunpack.c.l.b16 %v691
      %v987 = vunpack.c.l.b16 %v692
      %v988 = vunpack.c.l.b16 %v693
      %v989 = vunpack.c.l.b16 %v694
      %v990 = vunpack.c.l.b16 %v695
      %v991 = vunpack.c.l.b16 %v696
      %v992 = vunpack.c.l.b16 %v697
      %v993 = vunpack.c.l.b16 %v698
      %v994 = vunpack.c.l.b16 %v699
      %v995 = vunpack.c.l.b16 %v700
      %v996 = vunpack.c.l.b16 %v701
      %v997 = vunpack.c.l.b16 %v702
      %v998 = vunpack.c.l.b16 %v703
      %v999 = vunpack.c.l.b16 %v704
      %v1000 = vunpack.c.l.b16 %v705
      %v1001 = vunpack.c.l.b16 %v706
      %v1002 = vunpack.c.l.b16 %v707
      %v1003 = vunpack.c.l.b16 %v708
      %v1004 = vunpack.c.l.b16 %v709
      %v1005 = vunpack.c.l.b16 %v710
      %v1006 = vunpack.c.l.b16 %v711
      %v1007 = vunpack.c.l.b16 %v712
      %v1008 = vunpack.c.l.b16 %v713
      %v1009 = vunpack.c.l.b16 %v714
      %v1010 = vunpack.c.l.b16 %v715
      %v1011 = vunpack.c.l.b16 %v716
      %v1012 = vunpack.c.l.b16 %v717
      %v1013 = vunpack.c.l.b16 %v718
      %v1014 = vunpack.c.l.b16 %v719
      %v1015 = vunpack.c.l.b16 %v720
      %v1016 = vunpack.c.l.b16 %v721
      %v1017 = vunpack.c.l.b16 %v722
      %v1018 = vunpack.c.l.b16 %v723
      %v1019 = vunpack.c.l.b16 %v724
      %v1020 = vunpack.c.l.b16 %v725
      %v1021 = vunpack.c.l.b16 %v726
      %v1022 = vunpack.c.l.b16 %v727
      %v1023 = vunpack.c.l.b16 %v728
      %v1024 = vunpack.c.l.b16 %v729
      %v1025 = vunpack.c.l.b16 %v730
      %v1026 = vunpack.c.l.b16 %v731
      %v1027 = vunpack.c.l.b16 %v732
      %v1028 = vunpack.c.l.b16 %v733
      %v1029 = vunpack.c.l.b16 %v734
      %v1030 = vunpack.c.l.b16 %v735
      %v1031 = vunpack.c.l.b16 %v736
      %v1032 = vunpack.c.l.b16 %v737
      %v1033 = vunpack.c.l.b16 %v738
      %v1034 = vunpack.c.l.b16 %v739
      %v1035 = vunpack.c.l.b16 %v740
      %v1036 = vunpack.c.l.b16 %v741
      %v1037 = vunpack.c.l.b16 %v742
      %v1038 = vpack.c.b16 %v895, %v894
      %v1039 = vpack.c.b16 %v897, %v896
      %v1040 = vpack.c.b16 %v899, %v898
      %v1041 = vpack.c.b16 %v901, %v900
      %v1042 = vpack.c.b16 %v903, %v902
      %v1043 = vpack.c.b16 %v905, %v904
      %v1044 = vpack.c.b16 %v907, %v906
      %v1045 = vpack.c.b16 %v909, %v908
      %v1046 = vpack.c.b16 %v911, %v910
      %v1047 = vpack.c.b16 %v913, %v912
      %v1048 = vpack.c.b16 %v915, %v914
      %v1049 = vpack.c.b16 %v917, %v916
      %v1050 = vpack.c.b16 %v919, %v918
      %v1051 = vpack.c.b16 %v921, %v920
      %v1052 = vpack.c.b16 %v923, %v922
      %v1053 = vpack.c.b16 %v925, %v924
      %v1054 = vpack.c.b16 %v927, %v926
      %v1055 = vpack.c.b16 %v929, %v928
      %v1056 = vpack.c.b16 %v931, %v930
      %v1057 = vpack.c.b16 %v933, %v932
      %v1058 = vpack.c.b16 %v935, %v934
      %v1059 = vpack.c.b16 %v937, %v936
      %v1060 = vpack.c.b16 %v939, %v938
      %v1061 = vpack.c.b16 %v941, %v940
      %v1062 = vpack.c.b16 %v943, %v942
      %v1063 = vpack.c.b16 %v945, %v944
      %v1064 = vpack.c.b16 %v947, %v946
      %v1065 = vpack.c.b16 %v949, %v948
      %v1066 = vpack.c.b16 %v951, %v950
      %v1067 = vpack.c.b16 %v953, %v952
      %v1068 = vpack.c.b16 %v955, %v954
      %v1069 = vpack.c.b16 %v957, %v956
      %v1070 = vpack.c.b16 %v959, %v958
      %v1071 = vpack.c.b16 %v961, %v960
      %v1072 = vpack.c.b16 %v963, %v962
      %v1073 = vpack.c.b16 %v965, %v964
      %v1074 = vpack.c.b16 %v967, %v966
      %v1075 = vpack.c.b16 %v969, %v968
      %v1076 = vpack.c.b16 %v971, %v970
      %v1077 = vpack.c.b16 %v973, %v972
      %v1078 = vpack.c.b16 %v975, %v974
      %v1079 = vpack.c.b16 %v977, %v976
      %v1080 = vpack.c.b16 %v979, %v978
      %v1081 = vpack.c.b16 %v981, %v980
      %v1082 = vpack.c.b16 %v983, %v982
      %v1083 = vpack.c.b16 %v985, %v984
      %v1084 = vpack.c.b16 %v987, %v986
      %v1085 = vpack.c.b16 %v989, %v988
      %v1086 = vpack.c.b16 %v991, %v990
      %v1087 = vpack.c.b16 %v993, %v992
      %v1088 = vpack.c.b16 %v995, %v994
      %v1089 = vpack.c.b16 %v997, %v996
      %v1090 = vpack.c.b16 %v999, %v998
      %v1091 = vpack.c.b16 %v1001, %v1000
      %v1092 = vpack.c.b16 %v1003, %v1002
      %v1093 = vpack.c.b16 %v1005, %v1004
      %v1094 = vpack.c.b16 %v1007, %v1006
      %v1095 = vpack.c.b16 %v1009, %v1008
      %v1096 = vpack.c.b16 %v1011, %v1010
      %v1097 = vpack.c.b16 %v1013, %v1012
      %v1098 = vpack.c.b16 %v1015, %v1014
      %v1099 = vpack.c.b16 %v1017, %v1016
      %v1100 = vpack.c.b16 %v1019, %v1018
      %v1101 = vpack.c.b16 %v1021, %v1020
      %v1102 = vpack.c.b16 %v1023, %v1022
      %v1103 = vpack.c.b16 %v1025, %v1024
      %v1104 = vpack.c.b16 %v1027, %v1026
      %v1105 = vpack.c.b16 %v1029, %v1028
      %v1106 = vpack.c.b16 %v1031, %v1030
      %v1107 = vpack.c.b16 %v1033, %v1032
      %v1108 = vpack.c.b16 %v1035, %v1034
      %v1109 = vpack.c.b16 %v1037, %v1036
      %1182 = vmatprep.subr.bf16.mxu0 0
      %1183 = vmatpush1.bf16.msra.mxu0 %v1038
      %1184 = vmatprep.subr.bf16.mxu0 0
      %1185 = vmatpush1.bf16.msra.mxu0 %v1039
      %1186 = vmatprep.subr.bf16.mxu0 0
      %1187 = vmatpush1.bf16.msra.mxu0 %v1040
      %1188 = vmatprep.subr.bf16.mxu0 0
      %1189 = vmatpush1.bf16.msra.mxu0 %v1041
      %1190 = vmatprep.subr.bf16.mxu0 0
      %1191 = vmatpush1.bf16.msra.mxu0 %v1042
      %1192 = vmatprep.subr.bf16.mxu0 0
      %1193 = vmatpush1.bf16.msra.mxu0 %v1043
      %1194 = vmatprep.subr.bf16.mxu0 0
      %1195 = vmatpush1.bf16.msra.mxu0 %v1044
      %1196 = vmatprep.subr.bf16.mxu0 0
      %1197 = vmatpush1.bf16.msra.mxu0 %v1045
      %1198 = vmatprep.subr.bf16.mxu0 0
      %1199 = vmatpush1.bf16.msra.mxu0 %v1046
      %1200 = vmatprep.subr.bf16.mxu0 0
      %1201 = vmatpush1.bf16.msra.mxu0 %v1047
      %1202 = vmatprep.subr.bf16.mxu0 0
      %1203 = vmatpush1.bf16.msra.mxu0 %v1048
      %1204 = vmatprep.subr.bf16.mxu0 0
      %1205 = vmatpush1.bf16.msra.mxu0 %v1049
      %1206 = vmatprep.subr.bf16.mxu0 0
      %1207 = vmatpush1.bf16.msra.mxu0 %v1050
      %1208 = vmatprep.subr.bf16.mxu0 0
      %1209 = vmatpush1.bf16.msra.mxu0 %v1051
      %1210 = vmatprep.subr.bf16.mxu0 0
      %1211 = vmatpush1.bf16.msra.mxu0 %v1052
      %1212 = vmatprep.subr.bf16.mxu0 0
      %1213 = vmatpush1.bf16.msra.mxu0 %v1053
      %1214 = vmatprep.mubr.bf16.mxu0 %v564
      %1215 = vmatmul.mubr.bf16.gmra.mrb[0].mxu0 %v563
      %v1216 = vpop.f32.mrb[0].mxu0
      %v1217 = vadd.f32 %v748, %v1216
      %v1218 = vpop.f32.mrb[0].mxu0
      %v1219 = vpop.f32.mrb[0].mxu0
      %v1220 = vadd.f32 %v748, %v1219
      %v1221 = vpop.f32.mrb[0].mxu0
      %1222 = vmatprep.mubr.bf16.mxu0 %v573
      %1223 = vmatmul.mubr.bf16.gmra.mrb[0].mxu0 %v572
      %v1224 = vpop.f32.mrb[0].mxu0
      %v1225 = vadd.f32 %v748, %v1224
      %v1226 = vpop.f32.mrb[0].mxu0
      %v1227 = vpop.f32.mrb[0].mxu0
      %v1228 = vadd.f32 %v748, %v1227
      %v1229 = vpop.f32.mrb[0].mxu0
      %1230 = vmatprep.mubr.bf16.mxu0 %v582
      %1231 = vmatmul.mubr.bf16.gmra.mrb[0].mxu0 %v581
      %v1232 = vpop.f32.mrb[0].mxu0
      %v1233 = vadd.f32 %v748, %v1232
      %v1234 = vpop.f32.mrb[0].mxu0
      %v1235 = vpop.f32.mrb[0].mxu0
      %v1236 = vadd.f32 %v748, %v1235
      %v1237 = vpop.f32.mrb[0].mxu0
      %1238 = vmatprep.mubr.bf16.mxu0 %v591
      %1239 = vmatmul.mubr.bf16.gmra.mrb[0].mxu0 %v590
      %v1240 = vpop.f32.mrb[0].mxu0
      %v1241 = vadd.f32 %v748, %v1240
      %v1242 = vpop.f32.mrb[0].mxu0
      %v1243 = vpop.f32.mrb[0].mxu0
      %v1244 = vadd.f32 %v748, %v1243
      %v1245 = vpop.f32.mrb[0].mxu0
      %1246 = vdwg.mxu0
      %1247 = vmatprep.subr.bf16.mxu0 0
      %1248 = vmatpush1.bf16.msra.mxu0 %v1054
      %1249 = vmatprep.subr.bf16.mxu0 0
      %1250 = vmatpush1.bf16.msra.mxu0 %v1055
      %1251 = vmatprep.subr.bf16.mxu0 0
      %1252 = vmatpush1.bf16.msra.mxu0 %v1056
      %1253 = vmatprep.subr.bf16.mxu0 0
      %1254 = vmatpush1.bf16.msra.mxu0 %v1057
      %1255 = vmatprep.subr.bf16.mxu0 0
      %1256 = vmatpush1.bf16.msra.mxu0 %v1058
      %1257 = vmatprep.subr.bf16.mxu0 0
      %1258 = vmatpush1.bf16.msra.mxu0 %v1059
      %1259 = vmatprep.subr.bf16.mxu0 0
      %1260 = vmatpush1.bf16.msra.mxu0 %v1060
      %1261 = vmatprep.subr.bf16.mxu0 0
      %1262 = vmatpush1.bf16.msra.mxu0 %v1061
      %1263 = vmatprep.subr.bf16.mxu0 0
      %1264 = vmatpush1.bf16.msra.mxu0 %v1062
      %1265 = vmatprep.subr.bf16.mxu0 0
      %1266 = vmatpush1.bf16.msra.mxu0 %v1063
      %1267 = vmatprep.subr.bf16.mxu0 0
      %1268 = vmatpush1.bf16.msra.mxu0 %v1064
      %1269 = vmatprep.subr.bf16.mxu0 0
      %1270 = vmatpush1.bf16.msra.mxu0 %v1065
      %1271 = vmatprep.subr.bf16.mxu0 0
      %1272 = vmatpush1.bf16.msra.mxu0 %v1066
      %1273 = vmatprep.subr.bf16.mxu0 0
      %1274 = vmatpush1.bf16.msra.mxu0 %v1067
      %1275 = vmatprep.subr.bf16.mxu0 0
      %1276 = vmatpush1.bf16.msra.mxu0 %v1068
      %1277 = vmatprep.subr.bf16.mxu0 0
      %1278 = vmatpush1.bf16.msra.mxu0 %v1069
      %1279 = vmatprep.mubr.bf16.mxu0 %v566
      %1280 = vmatmul.mubr.bf16.gmra.mrb[0].mxu0 %v565
      %v1281 = vpop.f32.mrb[0].mxu0
      %v1282 = vadd.f32 %v1217, %v1281
      %v1283 = vpop.f32.mrb[0].mxu0
      %v1284 = vpop.f32.mrb[0].mxu0
      %v1285 = vadd.f32 %v1220, %v1284
      %v1286 = vpop.f32.mrb[0].mxu0
      %1287 = vmatprep.mubr.bf16.mxu0 %v575
      %1288 = vmatmul.mubr.bf16.gmra.mrb[0].mxu0 %v574
      %v1289 = vpop.f32.mrb[0].mxu0
      %v1290 = vadd.f32 %v1225, %v1289
      %v1291 = vpop.f32.mrb[0].mxu0
      %v1292 = vpop.f32.mrb[0].mxu0
      %v1293 = vadd.f32 %v1228, %v1292
      %v1294 = vpop.f32.mrb[0].mxu0
      %1295 = vmatprep.mubr.bf16.mxu0 %v584
      %1296 = vmatmul.mubr.bf16.gmra.mrb[0].mxu0 %v583
      %v1297 = vpop.f32.mrb[0].mxu0
      %v1298 = vadd.f32 %v1233, %v1297
      %v1299 = vpop.f32.mrb[0].mxu0
      %v1300 = vpop.f32.mrb[0].mxu0
      %v1301 = vadd.f32 %v1236, %v1300
      %v1302 = vpop.f32.mrb[0].mxu0
      %1303 = vmatprep.mubr.bf16.mxu0 %v593
      %1304 = vmatmul.mubr.bf16.gmra.mrb[0].mxu0 %v592
      %v1305 = vpop.f32.mrb[0].mxu0
      %v1306 = vadd.f32 %v1241, %v1305
      %v1307 = vpop.f32.mrb[0].mxu0
      %v1308 = vpop.f32.mrb[0].mxu0
      %v1309 = vadd.f32 %v1244, %v1308
      %v1310 = vpop.f32.mrb[0].mxu0
      %1311 = vdwg.mxu0
      %1312 = vmatprep.subr.bf16.mxu0 0
      %1313 = vmatpush1.bf16.msra.mxu0 %v1070
      %1314 = vmatprep.subr.bf16.mxu0 0
      %1315 = vmatpush1.bf16.msra.mxu0 %v1071
      %1316 = vmatprep.subr.bf16.mxu0 0
      %1317 = vmatpush1.bf16.msra.mxu0 %v1072
      %1318 = vmatprep.subr.bf16.mxu0 0
      %1319 = vmatpush1.bf16.msra.mxu0 %v1073
      %1320 = vmatprep.subr.bf16.mxu0 0
      %1321 = vmatpush1.bf16.msra.mxu0 %v1074
      %1322 = vmatprep.subr.bf16.mxu0 0
      %1323 = vmatpush1.bf16.msra.mxu0 %v1075
      %1324 = vmatprep.subr.bf16.mxu0 0
      %1325 = vmatpush1.bf16.msra.mxu0 %v1076
      %1326 = vmatprep.subr.bf16.mxu0 0
      %1327 = vmatpush1.bf16.msra.mxu0 %v1077
      %1328 = vmatprep.subr.bf16.mxu0 0
      %1329 = vmatpush1.bf16.msra.mxu0 %v1078
      %1330 = vmatprep.subr.bf16.mxu0 0
      %1331 = vmatpush1.bf16.msra.mxu0 %v1079
      %1332 = vmatprep.subr.bf16.mxu0 0
      %1333 = vmatpush1.bf16.msra.mxu0 %v1080
      %1334 = vmatprep.subr.bf16.mxu0 0
      %1335 = vmatpush1.bf16.msra.mxu0 %v1081
      %1336 = vmatprep.subr.bf16.mxu0 0
      %1337 = vmatpush1.bf16.msra.mxu0 %v1082
      %1338 = vmatprep.subr.bf16.mxu0 0
      %1339 = vmatpush1.bf16.msra.mxu0 %v1083
      %1340 = vmatprep.subr.bf16.mxu0 0
      %1341 = vmatpush1.bf16.msra.mxu0 %v1084
      %1342 = vmatprep.subr.bf16.mxu0 0
      %1343 = vmatpush1.bf16.msra.mxu0 %v1085
      %1344 = vmatprep.mubr.bf16.mxu0 %v568
      %1345 = vmatmul.mubr.bf16.gmra.mrb[0].mxu0 %v567
      %v1346 = vpop.f32.mrb[0].mxu0
      %v1347 = vadd.f32 %v1282, %v1346
      %v1348 = vpop.f32.mrb[0].mxu0
      %v1349 = vpop.f32.mrb[0].mxu0
      %v1350 = vadd.f32 %v1285, %v1349
      %v1351 = vpop.f32.mrb[0].mxu0
      %1352 = vmatprep.mubr.bf16.mxu0 %v577
      %1353 = vmatmul.mubr.bf16.gmra.mrb[0].mxu0 %v576
      %v1354 = vpop.f32.mrb[0].mxu0
      %v1355 = vadd.f32 %v1290, %v1354
      %v1356 = vpop.f32.mrb[0].mxu0
      %v1357 = vpop.f32.mrb[0].mxu0
      %v1358 = vadd.f32 %v1293, %v1357
      %v1359 = vpop.f32.mrb[0].mxu0
      %1360 = vmatprep.mubr.bf16.mxu0 %v586
      %1361 = vmatmul.mubr.bf16.gmra.mrb[0].mxu0 %v585
      %v1362 = vpop.f32.mrb[0].mxu0
      %v1363 = vadd.f32 %v1298, %v1362
      %v1364 = vpop.f32.mrb[0].mxu0
      %v1365 = vpop.f32.mrb[0].mxu0
      %v1366 = vadd.f32 %v1301, %v1365
      %v1367 = vpop.f32.mrb[0].mxu0
      %1368 = vmatprep.mubr.bf16.mxu0 %v595
      %1369 = vmatmul.mubr.bf16.gmra.mrb[0].mxu0 %v594
      %v1370 = vpop.f32.mrb[0].mxu0
      %v1371 = vadd.f32 %v1306, %v1370
      %v1372 = vpop.f32.mrb[0].mxu0
      %v1373 = vpop.f32.mrb[0].mxu0
      %v1374 = vadd.f32 %v1309, %v1373
      %v1375 = vpop.f32.mrb[0].mxu0
      %1376 = vdwg.mxu0
      %1377 = vmatprep.subr.bf16.mxu0 0
      %1378 = vmatpush1.bf16.msra.mxu0 %v1086
      %1379 = vmatprep.subr.bf16.mxu0 0
      %1380 = vmatpush1.bf16.msra.mxu0 %v1087
      %1381 = vmatprep.subr.bf16.mxu0 0
      %1382 = vmatpush1.bf16.msra.mxu0 %v1088
      %1383 = vmatprep.subr.bf16.mxu0 0
      %1384 = vmatpush1.bf16.msra.mxu0 %v1089
      %1385 = vmatprep.subr.bf16.mxu0 0
      %1386 = vmatpush1.bf16.msra.mxu0 %v1090
      %1387 = vmatprep.subr.bf16.mxu0 0
      %1388 = vmatpush1.bf16.msra.mxu0 %v1091
      %1389 = vmatprep.subr.bf16.mxu0 0
      %1390 = vmatpush1.bf16.msra.mxu0 %v1092
      %1391 = vmatprep.subr.bf16.mxu0 0
      %1392 = vmatpush1.bf16.msra.mxu0 %v1093
      %1393 = vmatprep.subr.bf16.mxu0 0
      %1394 = vmatpush1.bf16.msra.mxu0 %v1094
      %1395 = vmatprep.subr.bf16.mxu0 0
      %1396 = vmatpush1.bf16.msra.mxu0 %v1095
      %1397 = vmatprep.subr.bf16.mxu0 0
      %1398 = vmatpush1.bf16.msra.mxu0 %v1096
      %1399 = vmatprep.subr.bf16.mxu0 0
      %1400 = vmatpush1.bf16.msra.mxu0 %v1097
      %1401 = vmatprep.subr.bf16.mxu0 0
      %1402 = vmatpush1.bf16.msra.mxu0 %v1098
      %1403 = vmatprep.subr.bf16.mxu0 0
      %1404 = vmatpush1.bf16.msra.mxu0 %v1099
      %1405 = vmatprep.subr.bf16.mxu0 0
      %1406 = vmatpush1.bf16.msra.mxu0 %v1100
      %1407 = vmatprep.subr.bf16.mxu0 0
      %1408 = vmatpush1.bf16.msra.mxu0 %v1101
      %1409 = vmatprep.mubr.bf16.mxu0 %v570
      %1410 = vmatmul.mubr.bf16.gmra.mrb[0].mxu0 %v569
      %v1411 = vpop.f32.mrb[0].mxu0
      %v1412 = vadd.f32 %v1347, %v1411
      %v1413 = vpop.f32.mrb[0].mxu0
      %v1414 = vpop.f32.mrb[0].mxu0
      %v1415 = vadd.f32 %v1350, %v1414
      %v1416 = vpop.f32.mrb[0].mxu0
      %1417 = vmatprep.mubr.bf16.mxu0 %v579
      %1418 = vmatmul.mubr.bf16.gmra.mrb[0].mxu0 %v578
      %v1419 = vpop.f32.mrb[0].mxu0
      %v1420 = vadd.f32 %v1355, %v1419
      %v1421 = vpop.f32.mrb[0].mxu0
      %v1422 = vpop.f32.mrb[0].mxu0
      %v1423 = vadd.f32 %v1358, %v1422
      %v1424 = vpop.f32.mrb[0].mxu0
      %1425 = vmatprep.mubr.bf16.mxu0 %v588
      %1426 = vmatmul.mubr.bf16.gmra.mrb[0].mxu0 %v587
      %v1427 = vpop.f32.mrb[0].mxu0
      %v1428 = vadd.f32 %v1363, %v1427
      %v1429 = vpop.f32.mrb[0].mxu0
      %v1430 = vpop.f32.mrb[0].mxu0
      %v1431 = vadd.f32 %v1366, %v1430
      %v1432 = vpop.f32.mrb[0].mxu0
      %1433 = vmatprep.mubr.bf16.mxu0 %v597
      %1434 = vmatmul.mubr.bf16.gmra.mrb[0].mxu0 %v596
      %v1435 = vpop.f32.mrb[0].mxu0
      %v1436 = vadd.f32 %v1371, %v1435
      %v1437 = vpop.f32.mrb[0].mxu0
      %v1438 = vpop.f32.mrb[0].mxu0
      %v1439 = vadd.f32 %v1374, %v1438
      %v1440 = vpop.f32.mrb[0].mxu0
      %1441 = vdwg.mxu0
      %1442 = vmatprep.subr.bf16.mxu0 0
      %1443 = vmatpush1.bf16.msra.mxu0 %v1102
      %1444 = vmatprep.subr.bf16.mxu0 0
      %1445 = vmatpush1.bf16.msra.mxu0 %v1103
      %1446 = vmatprep.subr.bf16.mxu0 0
      %1447 = vmatpush1.bf16.msra.mxu0 %v1104
      %1448 = vmatprep.subr.bf16.mxu0 0
      %1449 = vmatpush1.bf16.msra.mxu0 %v1105
      %1450 = vmatprep.subr.bf16.mxu0 0
      %1451 = vmatpush1.bf16.msra.mxu0 %v1106
      %1452 = vmatprep.subr.bf16.mxu0 0
      %1453 = vmatpush1.bf16.msra.mxu0 %v1107
      %1454 = vmatprep.subr.bf16.mxu0 0
      %1455 = vmatpush1.bf16.msra.mxu0 %v1108
      %1456 = vmatprep.subr.bf16.mxu0 0
      %1457 = vmatpush1.bf16.msra.mxu0 %v1109
      %1458 = vmatprep.subr.bf16.mxu0 0
      %1459 = vmatpush1.bf16.msra.mxu0 0
      %1460 = vmatprep.subr.bf16.mxu0 0
      %1461 = vmatpush1.bf16.msra.mxu0 0
      %1462 = vmatprep.subr.bf16.mxu0 0
      %1463 = vmatpush1.bf16.msra.mxu0 0
      %1464 = vmatprep.subr.bf16.mxu0 0
      %1465 = vmatpush1.bf16.msra.mxu0 0
      %1466 = vmatprep.subr.bf16.mxu0 0
      %1467 = vmatpush1.bf16.msra.mxu0 0
      %1468 = vmatprep.subr.bf16.mxu0 0
      %1469 = vmatpush1.bf16.msra.mxu0 0
      %1470 = vmatprep.subr.bf16.mxu0 0
      %1471 = vmatpush1.bf16.msra.mxu0 0
      %1472 = vmatprep.subr.bf16.mxu0 0
      %1473 = vmatpush1.bf16.msra.mxu0 0
      %1474 = vmatprep.mubr.bf16.mxu0 0
      %1475 = vmatmul.mubr.bf16.gmra.mrb[0].mxu0 %v571
      %v1476 = vpop.f32.mrb[0].mxu0
      %v1477 = vadd.f32 %v1412, %v1476
      %v1478 = vpop.f32.mrb[0].mxu0
      %v1479 = vpop.f32.mrb[0].mxu0
      %v1480 = vadd.f32 %v1415, %v1479
      %v1481 = vpop.f32.mrb[0].mxu0
      %1482 = vmatprep.mubr.bf16.mxu0 0
      %1483 = vmatmul.mubr.bf16.gmra.mrb[0].mxu0 %v580
      %v1484 = vpop.f32.mrb[0].mxu0
      %v1485 = vadd.f32 %v1420, %v1484
      %v1486 = vpop.f32.mrb[0].mxu0
      %v1487 = vpop.f32.mrb[0].mxu0
      %v1488 = vadd.f32 %v1423, %v1487
      %v1489 = vpop.f32.mrb[0].mxu0
      %1490 = vmatprep.mubr.bf16.mxu0 0
      %1491 = vmatmul.mubr.bf16.gmra.mrb[0].mxu0 %v589
      %v1492 = vpop.f32.mrb[0].mxu0
      %v1493 = vadd.f32 %v1428, %v1492
      %v1494 = vpop.f32.mrb[0].mxu0
      %v1495 = vpop.f32.mrb[0].mxu0
      %v1496 = vadd.f32 %v1431, %v1495
      %v1497 = vpop.f32.mrb[0].mxu0
      %1498 = vmatprep.mubr.bf16.mxu0 0
      %1499 = vmatmul.mubr.bf16.gmra.mrb[0].mxu0 %v598
      %v1500 = vpop.f32.mrb[0].mxu0
      %v1501 = vadd.f32 %v1436, %v1500
      %v1502 = vpop.f32.mrb[0].mxu0
      %v1503 = vpop.f32.mrb[0].mxu0
      %v1504 = vadd.f32 %v1439, %v1503
      %v1505 = vpop.f32.mrb[0].mxu0
      %1506 = vdwg.mxu0
      %v1507 = vmax.f32 %v1477, 0.0
      %v1508 = vmax.f32 %v1480, 0.0
      %v1509 = vmax.f32 %v1485, 0.0
      %v1510 = vmax.f32 %v1488, 0.0
      %v1511 = vmax.f32 %v1493, 0.0
      %v1512 = vmax.f32 %v1496, 0.0
      %v1513 = vmax.f32 %v1501, 0.0
      %v1514 = vmax.f32 %v1504, 0.0
      %v1515 = vpack.c.bf16 %v1508, %v1507
      %v1516 = vpack.c.bf16 %v1510, %v1509
      %v1517 = vpack.c.bf16 %v1512, %v1511
      %v1518 = vpack.c.bf16 %v1514, %v1513
      %v1519 = vld [vmem:[%s5] sm:$0xf]
      %v1520 = vld [vmem:[%s5 + $0x4] sm:$0xf]
      %v1521 = vld [vmem:[%s5 + $0x8] sm:$0xf]
      %v1522 = vld [vmem:[%s5 + $0xc] sm:$0xf]
      %v1523 = vld [vmem:[%s5 + $0x10] sm:$0xf]
      %v1524 = vld [vmem:[%s5 + $0x14] sm:$0xf]
      %v1525 = vld [vmem:[%s5 + $0x18] sm:$0xf]
      %v1526 = vld [vmem:[%s5 + $0x1c] sm:$0xf]
      %v1527 = vld [vmem:[%s5 + $0x20] sm:$0xf]
      %v1528 = vld [vmem:[%s5 + $0x24] sm:$0xf]
      %v1529 = vld [vmem:[%s5 + $0x28] sm:$0xf]
      %v1530 = vld [vmem:[%s5 + $0x2c] sm:$0xf]
      %v1531 = vld [vmem:[%s5 + $0x30] sm:$0xf]
      %v1532 = vld [vmem:[%s5 + $0x34] sm:$0xf]
      %v1533 = vld [vmem:[%s5 + $0x38] sm:$0xf]
      %v1534 = vld [vmem:[%s5 + $0x3c] sm:$0xf]
      %v1535 = vld [vmem:[%s6] sm:$0x1]
      %v1537 = vlaneseq
      %v1538 = vshrl.u32 %v1537, 7
      %v1539 = vsub.s32 0, %v1538
      %v1540 = vrot.slane %v1535, %v1539
      %v1558 = vunpack.c.l.b16 %v1519
      %v1559 = vunpack.c.l.b16 %v1520
      %v1560 = vunpack.c.l.b16 %v1521
      %v1561 = vunpack.c.l.b16 %v1522
      %v1562 = vunpack.c.l.b16 %v1523
      %v1563 = vunpack.c.l.b16 %v1524
      %v1564 = vunpack.c.l.b16 %v1525
      %v1565 = vunpack.c.l.b16 %v1526
      %v1566 = vunpack.c.l.b16 %v1527
      %v1567 = vunpack.c.l.b16 %v1528
      %v1568 = vunpack.c.l.b16 %v1529
      %v1569 = vunpack.c.l.b16 %v1530
      %v1570 = vunpack.c.l.b16 %v1531
      %v1571 = vunpack.c.l.b16 %v1532
      %v1572 = vunpack.c.l.b16 %v1533
      %v1573 = vunpack.c.l.b16 %v1534
      %v1574 = vpack.c.b16 %v1559, %v1558
      %v1575 = vpack.c.b16 %v1561, %v1560
      %v1576 = vpack.c.b16 %v1563, %v1562
      %v1577 = vpack.c.b16 %v1565, %v1564
      %v1578 = vpack.c.b16 %v1567, %v1566
      %v1579 = vpack.c.b16 %v1569, %v1568
      %v1580 = vpack.c.b16 %v1571, %v1570
      %v1581 = vpack.c.b16 %v1573, %v1572
      %1590 = vmatprep.subr.bf16.mxu0 0
      %1591 = vmatpush1.bf16.msra.mxu0 %v1574
      %1592 = vmatprep.subr.bf16.mxu0 0
      %1593 = vmatpush1.bf16.msra.mxu0 %v1575
      %1594 = vmatprep.subr.bf16.mxu0 0
      %1595 = vmatpush1.bf16.msra.mxu0 %v1576
      %1596 = vmatprep.subr.bf16.mxu0 0
      %1597 = vmatpush1.bf16.msra.mxu0 %v1577
      %1598 = vmatprep.subr.bf16.mxu0 0
      %1599 = vmatpush1.bf16.msra.mxu0 %v1578
      %1600 = vmatprep.subr.bf16.mxu0 0
      %1601 = vmatpush1.bf16.msra.mxu0 %v1579
      %1602 = vmatprep.subr.bf16.mxu0 0
      %1603 = vmatpush1.bf16.msra.mxu0 %v1580
      %1604 = vmatprep.subr.bf16.mxu0 0
      %1605 = vmatpush1.bf16.msra.mxu0 %v1581
      %1606 = vmatprep.subr.bf16.mxu0 0
      %1607 = vmatpush1.bf16.msra.mxu0 0
      %1608 = vmatprep.subr.bf16.mxu0 0
      %1609 = vmatpush1.bf16.msra.mxu0 0
      %1610 = vmatprep.subr.bf16.mxu0 0
      %1611 = vmatpush1.bf16.msra.mxu0 0
      %1612 = vmatprep.subr.bf16.mxu0 0
      %1613 = vmatpush1.bf16.msra.mxu0 0
      %1614 = vmatprep.subr.bf16.mxu0 0
      %1615 = vmatpush1.bf16.msra.mxu0 0
      %1616 = vmatprep.subr.bf16.mxu0 0
      %1617 = vmatpush1.bf16.msra.mxu0 0
      %1618 = vmatprep.subr.bf16.mxu0 0
      %1619 = vmatpush1.bf16.msra.mxu0 0
      %1620 = vmatprep.subr.bf16.mxu0 0
      %1621 = vmatpush1.bf16.msra.mxu0 0
      %1622 = vmatprep.mubr.bf16.mxu0 0
      %1623 = vmatmul.mubr.bf16.gmra.mrb[0].mxu0 %v1515
      %v1624 = vpop.f32.mrb[0].mxu0
      %v1625 = vadd.f32 %v1540, %v1624
      %v1626 = vpop.f32.mrb[0].mxu0
      %v1627 = vpop.f32.mrb[0].mxu0
      %v1628 = vadd.f32 %v1540, %v1627
      %v1629 = vpop.f32.mrb[0].mxu0
      %1630 = vmatprep.mubr.bf16.mxu0 0
      %1631 = vmatmul.mubr.bf16.gmra.mrb[0].mxu0 %v1516
      %v1632 = vpop.f32.mrb[0].mxu0
      %v1633 = vadd.f32 %v1540, %v1632
      %v1634 = vpop.f32.mrb[0].mxu0
      %v1635 = vpop.f32.mrb[0].mxu0
      %v1636 = vadd.f32 %v1540, %v1635
      %v1637 = vpop.f32.mrb[0].mxu0
      %1638 = vmatprep.mubr.bf16.mxu0 0
      %1639 = vmatmul.mubr.bf16.gmra.mrb[0].mxu0 %v1517
      %v1640 = vpop.f32.mrb[0].mxu0
      %v1641 = vadd.f32 %v1540, %v1640
      %v1642 = vpop.f32.mrb[0].mxu0
      %v1643 = vpop.f32.mrb[0].mxu0
      %v1644 = vadd.f32 %v1540, %v1643
      %v1645 = vpop.f32.mrb[0].mxu0
      %1646 = vmatprep.mubr.bf16.mxu0 0
      %1647 = vmatmul.mubr.bf16.gmra.mrb[0].mxu0 %v1518
      %v1648 = vpop.f32.mrb[0].mxu0
      %v1649 = vadd.f32 %v1540, %v1648
      %v1650 = vpop.f32.mrb[0].mxu0
      %v1651 = vpop.f32.mrb[0].mxu0
      %v1652 = vadd.f32 %v1540, %v1651
      %v1653 = vpop.f32.mrb[0].mxu0
      %1654 = vdwg.mxu0
      %v1655 = vmax.f32 %v1625, 0.0
      %v1656 = vmax.f32 %v1628, 0.0
      %v1657 = vmax.f32 %v1633, 0.0
      %v1658 = vmax.f32 %v1636, 0.0
      %v1659 = vmax.f32 %v1641, 0.0
      %v1660 = vmax.f32 %v1644, 0.0
      %v1661 = vmax.f32 %v1649, 0.0
      %v1662 = vmax.f32 %v1652, 0.0
      %1663 = vst [vmem:[%s278] sm:$0xff] %v1655
      %1664 = vst [vmem:[%s278 + $0x8] sm:$0xff] %v1656
      %1665 = vst [vmem:[%s278 + $0x10] sm:$0xff] %v1657
      %1666 = vst [vmem:[%s278 + $0x18] sm:$0xff] %v1658
      %1667 = vst [vmem:[%s278 + $0x20] sm:$0xff] %v1659
      %1668 = vst [vmem:[%s278 + $0x28] sm:$0xff] %v1660
      %1669 = vst [vmem:[%s278 + $0x30] sm:$0xff] %v1661
      %1670 = vst [vmem:[%s278 + $0x38] sm:$0xff] %v1662
      %p1671 = scmp.lt.s32.totalorder %s18, 1
      %s1672 = scalar_select %p1671, %s18, 1
      %s1673 = smul.addr %s1672, 8
      %s1674 = smul.addr %s1673, 8
      %s1675 = scalar_lea.vmem %s7, %s1674
      // Predicated region
      $region49: #{simkd_forward_pallas.2} parent=47 // pred_check
        %p1676 = pneg %p188
      $region50: #{simkd_forward_pallas.2} parent=47 // pred_check_branch
        %1678 = sbr.rel (%p1676) target = $region52
      $region51: #{simkd_forward_pallas.2} parent=47 // pred_region
        _
      $region52: #{simkd_forward_pallas.2} parent=47 // pred_fallthru
        _
    $region48: #{simkd_forward_pallas.2} parent=5 // pred_fallthru
      _
    %p1679 = scmp.le.s32.totalorder 2, %s13
    // Predicated region
    $region53: #{simkd_forward_pallas.2} parent=5 // pred_check
      %p1680 = pneg %p1679
    $region54: #{simkd_forward_pallas.2} parent=5 // pred_check_branch
      %1682 = sbr.rel (%p1680) target = $region56
    $region55: #{simkd_forward_pallas.2} parent=5 // pred_region
      %s1683 = ssub.s32 %s13, 2
      // Predicated region
      $region57: #{simkd_forward_pallas.2} parent=55 // pred_check
        %p1684 = pneg %p194
      $region58: #{simkd_forward_pallas.2} parent=55 // pred_check_branch
        %1686 = sbr.rel (%p1684) target = $region60
      $region59: #{simkd_forward_pallas.2} parent=55 // pred_region
        %p1687 = scmp.lt.s32.totalorder %s19, 1
        %s1688 = scalar_select %p1687, %s19, 1
        %s1689 = smul.addr %s1688, 8
        %s1690 = smul.addr %s1689, 8
        %s1691 = scalar_lea.vmem %s7, %s1690
      $region60: #{simkd_forward_pallas.2} parent=55 // pred_fallthru
        _
    $region56: #{simkd_forward_pallas.2} parent=5 // pred_fallthru
      _
  $region6: #{simkd_forward_pallas.2} parent=0 // loop_footer
    %s17 = sadd.s32 1, %s13
  $region7: #{simkd_forward_pallas.2} parent=0 // loop_footer_branch
    %12 = sbr.rel target = $region3
  $region8: #{simkd_forward_pallas.2} parent=0 // loop_exit
    _

// kernel: simkd_forward_pallas.3
$region0: #{simkd_forward_pallas.3}
  #allocation0 [shape = 'u32[]', space=smem, size = 0x4, offset = 0x4, fixed_abs, tag = 'smem constant byte address 0x4 - core index']
  #allocation1 [shape = 'u32[144,128]{1,0:T(1,128)}', space=vmem, size = 0x12000, scoped, tag = 'internal scratch']
  #allocation2 [shape = 'f32[2,128]{1,0:T(2,128)}', space=vmem, size = 0x400, scoped, tag = 'scratch operand']
  %s0 = inlined_call_operand.vmem [shape: f32[2,8192], index: 0, kind: input, shape index: {}]
  %s1 = inlined_call_operand.vmem [shape: bf16[8192,128], index: 1, kind: input, shape index: {}]
  %s2 = inlined_call_operand.vmem [shape: f32[1,128], index: 2, kind: input, shape index: {}]
  %s3 = inlined_call_operand.hbm [shape: f32[2,128], index: 3, kind: output, shape index: {}]
  %s4 = sld [smem:[#allocation0]]
  $region53: #{simkd_forward_pallas.3} parent=0
    _
  %s6 = ssub.s32 1, %s4
  %s7 = scalar_select 0, %s6, %s4
  $region1: #{simkd_forward_pallas.3} parent=0
    #allocation3 [shape = 'u8[1024]{0}', space=vmem, size = 0x400, scoped, tag = 'output window, operand 0, single buffered']
    #allocation4 [shape = 's32[2]{0}', space=sflag, size = 0x8, scoped, tag = 'scoped memory for simkd_forward_pallas.3']
    %8 = vsyncpa [#allocation4], 0
    loop: start=0, step=1, limit=6
    $region2: #{simkd_forward_pallas.3} parent=1 // loop_pre_header
      _
    $region3: #{simkd_forward_pallas.3} parent=1 // loop_header
      %s10 = sphi 0, %s14
      %p11 = scmp.ge.s32.totalorder %s10, 6
      %s17 = sphi 0, %s29
      %s18 = sphi 0, %s25
      %s19 = sphi 0, %s17
      %s20 = sphi 0, %s18
      %s21 = sphi 0, %s19
      %s22 = sphi 0, %s20
      %s34 = sphi 0, %s36
      %s37 = sphi 0, %s34
      %s38 = sphi 0, %s37
      %s54 = sphi 0, %s38
      %s60 = sphi 0, %s62
      %s63 = sphi 0, %s60
      %s64 = sphi 0, %s63
      %s80 = sphi 0, %s64
      %s84 = sphi 0, %s84
      %s86 = sphi 0, %s84
      %s87 = sphi 0, %s86
      %s101 = sphi 0, %s87
      %s107 = sphi 0, %s109
      %s110 = sphi 0, %s107
      %s111 = sphi 0, %s110
      %s127 = sphi 0, %s111
    $region4: #{simkd_forward_pallas.3} parent=1 // loop_header_branch
      %13 = sbr.rel (%p11) target = $region8
    $region5: #{simkd_forward_pallas.3} parent=1 // loop_body
      %s15 = ssub.s32 %s10, 1
      %s16 = ssub.s32 %s10, 2
      %s23 = sadd.s32 1, %s18
      %p24 = scmp.ge.s32.totalorder %s23, 4
      %s25 = scalar_select %p24, 0, %s23
      %s26 = sadd.s32 1, %s17
      %s27 = scalar_select %p24, %s26, %s17
      %p28 = scmp.ge.s32.totalorder %s27, 1
      %s29 = scalar_select %p28, 0, %s27
      %s30 = ssub.s32 %s17, %s29
      %s31 = ssub.s32 %s18, %s25
      %s32 = sor.u32 %s30, %s31
      %p33 = scmp.eq.s32.totalorder %s32, 0
      %s35 = sadd.s32 %s34, 1
      %s36 = scalar_select %p33, %s34, %s35
      %p39 = pneg %p33
      %p40 = scmp.eq.s32.totalorder %s10, 3
      %p41 = por %p39, %p40
      %p42 = scmp.ne.s32.totalorder %s34, %s37
      %p43 = scmp.eq.s32.totalorder %s10, 0
      %p44 = por %p42, %p43
      %p45 = scmp.ne.s32.totalorder %s34, %s37
      %p46 = scmp.eq.s32.totalorder %s15, 3
      %p47 = por %p45, %p46
      %p48 = scmp.ne.s32.totalorder %s37, %s38
      %p49 = scmp.eq.s32.totalorder %s15, 0
      %p50 = por %p48, %p49
      %p51 = scmp.ne.s32.totalorder %s37, %s38
      %p52 = scmp.eq.s32.totalorder %s16, 3
      %p53 = por %p51, %p52
      %p55 = scmp.ne.s32.totalorder %s38, %s54
      %p56 = scmp.eq.s32.totalorder %s16, 0
      %p57 = por %p55, %p56
      %s58 = ssub.s32 %s18, %s25
      %p59 = scmp.eq.s32.totalorder %s58, 0
      %s61 = sadd.s32 %s60, 1
      %s62 = scalar_select %p59, %s60, %s61
      %p65 = pneg %p59
      %p66 = scmp.eq.s32.totalorder %s10, 3
      %p67 = por %p65, %p66
      %p68 = scmp.ne.s32.totalorder %s60, %s63
      %p69 = scmp.eq.s32.totalorder %s10, 0
      %p70 = por %p68, %p69
      %p71 = scmp.ne.s32.totalorder %s60, %s63
      %p72 = scmp.eq.s32.totalorder %s15, 3
      %p73 = por %p71, %p72
      %p74 = scmp.ne.s32.totalorder %s63, %s64
      %p75 = scmp.eq.s32.totalorder %s15, 0
      %p76 = por %p74, %p75
      %p77 = scmp.ne.s32.totalorder %s63, %s64
      %p78 = scmp.eq.s32.totalorder %s16, 3
      %p79 = por %p77, %p78
      %p81 = scmp.ne.s32.totalorder %s64, %s80
      %p82 = scmp.eq.s32.totalorder %s16, 0
      %p83 = por %p81, %p82
      %s85 = sadd.s32 %s84, 1
      %p88 = scmp.eq.s32.totalorder %s10, 3
      %p89 = scmp.ne.s32.totalorder %s84, %s86
      %p90 = scmp.eq.s32.totalorder %s10, 0
      %p91 = por %p89, %p90
      %p92 = scmp.ne.s32.totalorder %s84, %s86
      %p93 = scmp.eq.s32.totalorder %s15, 3
      %p94 = por %p92, %p93
      %p95 = scmp.ne.s32.totalorder %s86, %s87
      %p96 = scmp.eq.s32.totalorder %s15, 0
      %p97 = por %p95, %p96
      %p98 = scmp.ne.s32.totalorder %s86, %s87
      %p99 = scmp.eq.s32.totalorder %s16, 3
      %p100 = por %p98, %p99
      %p102 = scmp.ne.s32.totalorder %s87, %s101
      %p103 = scmp.eq.s32.totalorder %s16, 0
      %p104 = por %p102, %p103
      %s105 = ssub.s32 %s17, %s29
      %p106 = scmp.eq.s32.totalorder %s105, 0
      %s108 = sadd.s32 %s107, 1
      %s109 = scalar_select %p106, %s107, %s108
      %p112 = pneg %p106
      %p113 = scmp.eq.s32.totalorder %s10, 3
      %p114 = por %p112, %p113
      %p115 = scmp.ne.s32.totalorder %s107, %s110
      %p116 = scmp.eq.s32.totalorder %s10, 0
      %p117 = por %p115, %p116
      %p118 = scmp.ne.s32.totalorder %s107, %s110
      %p119 = scmp.eq.s32.totalorder %s15, 3
      %p120 = por %p118, %p119
      %p121 = scmp.ne.s32.totalorder %s110, %s111
      %p122 = scmp.eq.s32.totalorder %s15, 0
      %p123 = por %p121, %p122
      %p124 = scmp.ne.s32.totalorder %s110, %s111
      %p125 = scmp.eq.s32.totalorder %s16, 3
      %p126 = por %p124, %p125
      %p128 = scmp.ne.s32.totalorder %s111, %s127
      %p129 = scmp.eq.s32.totalorder %s16, 0
      %p130 = por %p128, %p129
      %p131 = scmp.le.s32.totalorder 1, %s10
      %p132 = scmp.lt.s32.totalorder %s10, 5
      %p133 = pnand %p131, %p132
      %p134 = pneg %p133
      // Predicated region
      $region9: #{simkd_forward_pallas.3} parent=5 // pred_check
        _
      $region10: #{simkd_forward_pallas.3} parent=5 // pred_check_branch
        %136 = sbr.rel (%p133) target = $region12
      $region11: #{simkd_forward_pallas.3} parent=5 // pred_region
        %s137 = ssub.s32 %s10, 1
        // Predicated region
        $region13: #{simkd_forward_pallas.3} parent=11 // pred_check
          %p138 = pneg %p97
        $region14: #{simkd_forward_pallas.3} parent=11 // pred_check_branch
          %140 = sbr.rel (%p138) target = $region16
        $region15: #{simkd_forward_pallas.3} parent=11 // pred_region
          _
        $region16: #{simkd_forward_pallas.3} parent=11 // pred_fallthru
          _
      $region12: #{simkd_forward_pallas.3} parent=5 // pred_fallthru
        _
      %p141 = scmp.lt.s32.totalorder %s10, 4
      // Predicated region
      $region17: #{simkd_forward_pallas.3} parent=5 // pred_check
        %p142 = pneg %p141
      $region18: #{simkd_forward_pallas.3} parent=5 // pred_check_branch
        %144 = sbr.rel (%p142) target = $region20
      $region19: #{simkd_forward_pallas.3} parent=5 // pred_region
        // Predicated region
        $region21: #{simkd_forward_pallas.3} parent=19 // pred_check
          %p145 = pneg %p44
        $region22: #{simkd_forward_pallas.3} parent=19 // pred_check_branch
          %147 = sbr.rel (%p145) target = $region24
        $region23: #{simkd_forward_pallas.3} parent=19 // pred_region
          %s148 = smul.u32 16, %s18
          %p149 = scmp.lt.s32.totalorder %s17, 0
          %s150 = scalar_select %p149, %s17, 0
          %p151 = scmp.lt.s32.totalorder %s148, 63
          %s152 = scalar_select %p151, %s148, 63
          %s153 = smul.addr %s150, 64
          %s154 = sadd.s32 %s152, %s153
          %s155 = smul.addr %s154, 2
          %s156 = scalar_lea.vmem %s0, %s155
          %s157 = smul.u32 16, %s18
        $region24: #{simkd_forward_pallas.3} parent=19 // pred_fallthru
          _
        // Predicated region
        $region25: #{simkd_forward_pallas.3} parent=19 // pred_check
          %p158 = pneg %p70
        $region26: #{simkd_forward_pallas.3} parent=19 // pred_check_branch
          %160 = sbr.rel (%p158) target = $region28
        $region27: #{simkd_forward_pallas.3} parent=19 // pred_region
          %s161 = smul.u32 256, %s18
          %p162 = scmp.lt.s32.totalorder %s161, 1023
          %s163 = scalar_select %p162, %s161, 1023
          %s164 = smul.addr %s163, 4
          %s165 = scalar_lea.vmem %s1, %s164
          %s166 = smul.u32 256, %s18
        $region28: #{simkd_forward_pallas.3} parent=19 // pred_fallthru
          _
      $region20: #{simkd_forward_pallas.3} parent=5 // pred_fallthru
        _
      %p167 = scmp.le.s32.totalorder 1, %s10
      %p168 = scmp.lt.s32.totalorder %s10, 5
      %p169 = pnand %p167, %p168
      %p170 = pneg %p169
      // Predicated region
      $region29: #{simkd_forward_pallas.3} parent=5 // pred_check
        _
      $region30: #{simkd_forward_pallas.3} parent=5 // pred_check_branch
        %172 = sbr.rel (%p169) target = $region32
      $region31: #{simkd_forward_pallas.3} parent=5 // pred_region
        %s173 = ssub.s32 %s10, 1
        %s174 = smul.u32 16, %s20
        %p175 = scmp.lt.s32.totalorder %s19, 0
        %s176 = scalar_select %p175, %s19, 0
        %p177 = scmp.lt.s32.totalorder %s174, 63
        %s178 = scalar_select %p177, %s174, 63
        %s179 = smul.addr %s176, 64
        %s180 = sadd.s32 %s178, %s179
        %s181 = smul.addr %s180, 2
        %s182 = scalar_lea.vmem %s0, %s181
        %p183 = pneg %p50
        %p184 = pneg %p47
        %s185 = smul.u32 256, %s20
        %p186 = scmp.lt.s32.totalorder %s185, 1023
        %s187 = scalar_select %p186, %s185, 1023
        %s188 = smul.addr %s187, 4
        %s189 = scalar_lea.vmem %s1, %s188
        %p190 = pneg %p76
        %p191 = pneg %p73
        %p192 = pneg %p97
        %p193 = pneg %p94
        %p194 = pneg %p123
        %p195 = pneg %p120
        %s196 = smul.u32 16, %s20
        %p197 = scmp.lt.s32.totalorder %s19, 0
        %s198 = scalar_select %p197, %s19, 0
        %p199 = scmp.lt.s32.totalorder %s196, 63
        %s200 = scalar_select %p199, %s196, 63
        %s201 = smul.addr %s198, 64
        %s202 = sadd.s32 %s200, %s201
        %s203 = smul.addr %s202, 2
        %s204 = scalar_lea.vmem %s0, %s203
        %s205 = smul.u32 16, %s20
        %s206 = smul.u32 256, %s20
        %p207 = scmp.lt.s32.totalorder %s206, 1023
        %s208 = scalar_select %p207, %s206, 1023
        %s209 = smul.addr %s208, 4
        %s210 = scalar_lea.vmem %s1, %s209
        %s211 = smul.u32 256, %s20
        %p213 = scmp.eq.s32.totalorder %s20, 0
        // Predicated region
        $region33: #{simkd_forward_pallas.3} parent=31 // pred_check
          %p214 = pneg %p213
        $region34: #{simkd_forward_pallas.3} parent=31 // pred_check_branch
          %216 = sbr.rel (%p214) target = $region36
        $region35: #{simkd_forward_pallas.3} parent=31 // pred_region
          %217 = vst [vmem:[#allocation2] sm:$0x3] 0.0
        $region36: #{simkd_forward_pallas.3} parent=31 // pred_fallthru
          _
        %v218 = vld [vmem:[#allocation2] sm:$0x3]
        %v219 = vld [vmem:[%s204] sm:$0xff]
        %v220 = vld [vmem:[%s204 + $0x8] sm:$0xff]
        %v221 = vld [vmem:[%s204 + $0x10] sm:$0xff]
        %v222 = vld [vmem:[%s204 + $0x18] sm:$0xff]
        %v227 = vcombine.high %v219, %v219
        %v229 = vunpack.c.l.s4 1983009808
        %v230 = vunpack.c.0.s8 %v229
        %v231 = vlaneseq
        %v232 = vshrl.u32 %v231, 7
        %v233 = vsub.s32 %v230, %v232
        %v234 = vrot.slane %v219, %v233
        %v236 = vunpack.c.l.s4 1983009808
        %v237 = vunpack.c.0.s8 %v236
        %v238 = vlaneseq
        %v239 = vshrl.u32 %v238, 7
        %v240 = vsub.s32 %v237, %v239
        %v241 = vrot.slane %v227, %v240
        %v242 = vcombine.high %v234, %v234
        %v243 = vcombine.high %v241, %v241
        %v244 = vcombine.high %v220, %v220
        %v246 = vunpack.c.l.s4 1983009808
        %v247 = vunpack.c.0.s8 %v246
        %v248 = vlaneseq
        %v249 = vshrl.u32 %v248, 7
        %v250 = vsub.s32 %v247, %v249
        %v251 = vrot.slane %v220, %v250
        %v253 = vunpack.c.l.s4 1983009808
        %v254 = vunpack.c.0.s8 %v253
        %v255 = vlaneseq
        %v256 = vshrl.u32 %v255, 7
        %v257 = vsub.s32 %v254, %v256
        %v258 = vrot.slane %v244, %v257
        %v259 = vcombine.high %v251, %v251
        %v260 = vcombine.high %v258, %v258
        %v261 = vcombine.high %v221, %v221
        %v263 = vunpack.c.l.s4 1983009808
        %v264 = vunpack.c.0.s8 %v263
        %v265 = vlaneseq
        %v266 = vshrl.u32 %v265, 7
        %v267 = vsub.s32 %v264, %v266
        %v268 = vrot.slane %v221, %v267
        %v270 = vunpack.c.l.s4 1983009808
        %v271 = vunpack.c.0.s8 %v270
        %v272 = vlaneseq
        %v273 = vshrl.u32 %v272, 7
        %v274 = vsub.s32 %v271, %v273
        %v275 = vrot.slane %v261, %v274
        %v276 = vcombine.high %v268, %v268
        %v277 = vcombine.high %v275, %v275
        %v278 = vcombine.high %v222, %v222
        %v280 = vunpack.c.l.s4 1983009808
        %v281 = vunpack.c.0.s8 %v280
        %v282 = vlaneseq
        %v283 = vshrl.u32 %v282, 7
        %v284 = vsub.s32 %v281, %v283
        %v285 = vrot.slane %v222, %v284
        %v287 = vunpack.c.l.s4 1983009808
        %v288 = vunpack.c.0.s8 %v287
        %v289 = vlaneseq
        %v290 = vshrl.u32 %v289, 7
        %v291 = vsub.s32 %v288, %v290
        %v292 = vrot.slane %v278, %v291
        %v293 = vcombine.high %v285, %v285
        %v294 = vcombine.high %v292, %v292
        %v311 = vpack.c.bf16 %v234, %v234
        %v312 = vpack.c.bf16 %v242, %v242
        %v313 = vpack.c.bf16 %v241, %v241
        %v314 = vpack.c.bf16 %v243, %v243
        %v315 = vpack.c.bf16 %v251, %v251
        %v316 = vpack.c.bf16 %v259, %v259
        %v317 = vpack.c.bf16 %v258, %v258
        %v318 = vpack.c.bf16 %v260, %v260
        %v319 = vpack.c.bf16 %v268, %v268
        %v320 = vpack.c.bf16 %v276, %v276
        %v321 = vpack.c.bf16 %v275, %v275
        %v322 = vpack.c.bf16 %v277, %v277
        %v323 = vpack.c.bf16 %v285, %v285
        %v324 = vpack.c.bf16 %v293, %v293
        %v325 = vpack.c.bf16 %v292, %v292
        %v326 = vpack.c.bf16 %v294, %v294
        %v327 = vld [vmem:[%s210] sm:$0xf]
        %v328 = vld [vmem:[%s210 + $0x4] sm:$0xf]
        %v329 = vld [vmem:[%s210 + $0x8] sm:$0xf]
        %v330 = vld [vmem:[%s210 + $0xc] sm:$0xf]
        %v331 = vld [vmem:[%s210 + $0x10] sm:$0xf]
        %v332 = vld [vmem:[%s210 + $0x14] sm:$0xf]
        %v333 = vld [vmem:[%s210 + $0x18] sm:$0xf]
        %v334 = vld [vmem:[%s210 + $0x1c] sm:$0xf]
        %v335 = vld [vmem:[%s210 + $0x20] sm:$0xf]
        %v336 = vld [vmem:[%s210 + $0x24] sm:$0xf]
        %v337 = vld [vmem:[%s210 + $0x28] sm:$0xf]
        %v338 = vld [vmem:[%s210 + $0x2c] sm:$0xf]
        %v339 = vld [vmem:[%s210 + $0x30] sm:$0xf]
        %v340 = vld [vmem:[%s210 + $0x34] sm:$0xf]
        %v341 = vld [vmem:[%s210 + $0x38] sm:$0xf]
        %v342 = vld [vmem:[%s210 + $0x3c] sm:$0xf]
        %v343 = vld [vmem:[%s210 + $0x40] sm:$0xf]
        %v344 = vld [vmem:[%s210 + $0x44] sm:$0xf]
        %v345 = vld [vmem:[%s210 + $0x48] sm:$0xf]
        %v346 = vld [vmem:[%s210 + $0x4c] sm:$0xf]
        %v347 = vld [vmem:[%s210 + $0x50] sm:$0xf]
        %v348 = vld [vmem:[%s210 + $0x54] sm:$0xf]
        %v349 = vld [vmem:[%s210 + $0x58] sm:$0xf]
        %v350 = vld [vmem:[%s210 + $0x5c] sm:$0xf]
        %v351 = vld [vmem:[%s210 + $0x60] sm:$0xf]
        %v352 = vld [vmem:[%s210 + $0x64] sm:$0xf]
        %v353 = vld [vmem:[%s210 + $0x68] sm:$0xf]
        %v354 = vld [vmem:[%s210 + $0x6c] sm:$0xf]
        %v355 = vld [vmem:[%s210 + $0x70] sm:$0xf]
        %v356 = vld [vmem:[%s210 + $0x74] sm:$0xf]
        %v357 = vld [vmem:[%s210 + $0x78] sm:$0xf]
        %v358 = vld [vmem:[%s210 + $0x7c] sm:$0xf]
        %v359 = vld [vmem:[%s210 + $0x80] sm:$0xf]
        %v360 = vld [vmem:[%s210 + $0x84] sm:$0xf]
        %v361 = vld [vmem:[%s210 + $0x88] sm:$0xf]
        %v362 = vld [vmem:[%s210 + $0x8c] sm:$0xf]
        %v363 = vld [vmem:[%s210 + $0x90] sm:$0xf]
        %v364 = vld [vmem:[%s210 + $0x94] sm:$0xf]
        %v365 = vld [vmem:[%s210 + $0x98] sm:$0xf]
        %v366 = vld [vmem:[%s210 + $0x9c] sm:$0xf]
        %v367 = vld [vmem:[%s210 + $0xa0] sm:$0xf]
        %v368 = vld [vmem:[%s210 + $0xa4] sm:$0xf]
        %v369 = vld [vmem:[%s210 + $0xa8] sm:$0xf]
        %v370 = vld [vmem:[%s210 + $0xac] sm:$0xf]
        %v371 = vld [vmem:[%s210 + $0xb0] sm:$0xf]
        %v372 = vld [vmem:[%s210 + $0xb4] sm:$0xf]
        %v373 = vld [vmem:[%s210 + $0xb8] sm:$0xf]
        %v374 = vld [vmem:[%s210 + $0xbc] sm:$0xf]
        %v375 = vld [vmem:[%s210 + $0xc0] sm:$0xf]
        %v376 = vld [vmem:[%s210 + $0xc4] sm:$0xf]
        %v377 = vld [vmem:[%s210 + $0xc8] sm:$0xf]
        %v378 = vld [vmem:[%s210 + $0xcc] sm:$0xf]
        %v379 = vld [vmem:[%s210 + $0xd0] sm:$0xf]
        %v380 = vld [vmem:[%s210 + $0xd4] sm:$0xf]
        %v381 = vld [vmem:[%s210 + $0xd8] sm:$0xf]
        %v382 = vld [vmem:[%s210 + $0xdc] sm:$0xf]
        %v383 = vld [vmem:[%s210 + $0xe0] sm:$0xf]
        %v384 = vld [vmem:[%s210 + $0xe4] sm:$0xf]
        %v385 = vld [vmem:[%s210 + $0xe8] sm:$0xf]
        %v386 = vld [vmem:[%s210 + $0xec] sm:$0xf]
        %v387 = vld [vmem:[%s210 + $0xf0] sm:$0xf]
        %v388 = vld [vmem:[%s210 + $0xf4] sm:$0xf]
        %v389 = vld [vmem:[%s210 + $0xf8] sm:$0xf]
        %v390 = vld [vmem:[%s210 + $0xfc] sm:$0xf]
        %v391 = vld [vmem:[%s210 + $0x100] sm:$0xf]
        %v392 = vld [vmem:[%s210 + $0x104] sm:$0xf]
        %v393 = vld [vmem:[%s210 + $0x108] sm:$0xf]
        %v394 = vld [vmem:[%s210 + $0x10c] sm:$0xf]
        %v395 = vld [vmem:[%s210 + $0x110] sm:$0xf]
        %v396 = vld [vmem:[%s210 + $0x114] sm:$0xf]
        %v397 = vld [vmem:[%s210 + $0x118] sm:$0xf]
        %v398 = vld [vmem:[%s210 + $0x11c] sm:$0xf]
        %v399 = vld [vmem:[%s210 + $0x120] sm:$0xf]
        %v400 = vld [vmem:[%s210 + $0x124] sm:$0xf]
        %v401 = vld [vmem:[%s210 + $0x128] sm:$0xf]
        %v402 = vld [vmem:[%s210 + $0x12c] sm:$0xf]
        %v403 = vld [vmem:[%s210 + $0x130] sm:$0xf]
        %v404 = vld [vmem:[%s210 + $0x134] sm:$0xf]
        %v405 = vld [vmem:[%s210 + $0x138] sm:$0xf]
        %v406 = vld [vmem:[%s210 + $0x13c] sm:$0xf]
        %v407 = vld [vmem:[%s210 + $0x140] sm:$0xf]
        %v408 = vld [vmem:[%s210 + $0x144] sm:$0xf]
        %v409 = vld [vmem:[%s210 + $0x148] sm:$0xf]
        %v410 = vld [vmem:[%s210 + $0x14c] sm:$0xf]
        %v411 = vld [vmem:[%s210 + $0x150] sm:$0xf]
        %v412 = vld [vmem:[%s210 + $0x154] sm:$0xf]
        %v413 = vld [vmem:[%s210 + $0x158] sm:$0xf]
        %v414 = vld [vmem:[%s210 + $0x15c] sm:$0xf]
        %v415 = vld [vmem:[%s210 + $0x160] sm:$0xf]
        %v416 = vld [vmem:[%s210 + $0x164] sm:$0xf]
        %v417 = vld [vmem:[%s210 + $0x168] sm:$0xf]
        %v418 = vld [vmem:[%s210 + $0x16c] sm:$0xf]
        %v419 = vld [vmem:[%s210 + $0x170] sm:$0xf]
        %v420 = vld [vmem:[%s210 + $0x174] sm:$0xf]
        %v421 = vld [vmem:[%s210 + $0x178] sm:$0xf]
        %v422 = vld [vmem:[%s210 + $0x17c] sm:$0xf]
        %v423 = vld [vmem:[%s210 + $0x180] sm:$0xf]
        %v424 = vld [vmem:[%s210 + $0x184] sm:$0xf]
        %v425 = vld [vmem:[%s210 + $0x188] sm:$0xf]
        %v426 = vld [vmem:[%s210 + $0x18c] sm:$0xf]
        %v427 = vld [vmem:[%s210 + $0x190] sm:$0xf]
        %v428 = vld [vmem:[%s210 + $0x194] sm:$0xf]
        %v429 = vld [vmem:[%s210 + $0x198] sm:$0xf]
        %v430 = vld [vmem:[%s210 + $0x19c] sm:$0xf]
        %v431 = vld [vmem:[%s210 + $0x1a0] sm:$0xf]
        %v432 = vld [vmem:[%s210 + $0x1a4] sm:$0xf]
        %v433 = vld [vmem:[%s210 + $0x1a8] sm:$0xf]
        %v434 = vld [vmem:[%s210 + $0x1ac] sm:$0xf]
        %v435 = vld [vmem:[%s210 + $0x1b0] sm:$0xf]
        %v436 = vld [vmem:[%s210 + $0x1b4] sm:$0xf]
        %v437 = vld [vmem:[%s210 + $0x1b8] sm:$0xf]
        %v438 = vld [vmem:[%s210 + $0x1bc] sm:$0xf]
        %v439 = vld [vmem:[%s210 + $0x1c0] sm:$0xf]
        %v440 = vld [vmem:[%s210 + $0x1c4] sm:$0xf]
        %v441 = vld [vmem:[%s210 + $0x1c8] sm:$0xf]
        %v442 = vld [vmem:[%s210 + $0x1cc] sm:$0xf]
        %v443 = vld [vmem:[%s210 + $0x1d0] sm:$0xf]
        %v444 = vld [vmem:[%s210 + $0x1d4] sm:$0xf]
        %v445 = vld [vmem:[%s210 + $0x1d8] sm:$0xf]
        %v446 = vld [vmem:[%s210 + $0x1dc] sm:$0xf]
        %v447 = vld [vmem:[%s210 + $0x1e0] sm:$0xf]
        %v448 = vld [vmem:[%s210 + $0x1e4] sm:$0xf]
        %v449 = vld [vmem:[%s210 + $0x1e8] sm:$0xf]
        %v450 = vld [vmem:[%s210 + $0x1ec] sm:$0xf]
        %v451 = vld [vmem:[%s210 + $0x1f0] sm:$0xf]
        %v452 = vld [vmem:[%s210 + $0x1f4] sm:$0xf]
        %v453 = vld [vmem:[%s210 + $0x1f8] sm:$0xf]
        %v454 = vld [vmem:[%s210 + $0x1fc] sm:$0xf]
        %v455 = vld [vmem:[%s210 + $0x200] sm:$0xf]
        %v456 = vld [vmem:[%s210 + $0x204] sm:$0xf]
        %v457 = vld [vmem:[%s210 + $0x208] sm:$0xf]
        %v458 = vld [vmem:[%s210 + $0x20c] sm:$0xf]
        %v459 = vld [vmem:[%s210 + $0x210] sm:$0xf]
        %v460 = vld [vmem:[%s210 + $0x214] sm:$0xf]
        %v461 = vld [vmem:[%s210 + $0x218] sm:$0xf]
        %v462 = vld [vmem:[%s210 + $0x21c] sm:$0xf]
        %v463 = vld [vmem:[%s210 + $0x220] sm:$0xf]
        %v464 = vld [vmem:[%s210 + $0x224] sm:$0xf]
        %v465 = vld [vmem:[%s210 + $0x228] sm:$0xf]
        %v466 = vld [vmem:[%s210 + $0x22c] sm:$0xf]
        %v467 = vld [vmem:[%s210 + $0x230] sm:$0xf]
        %v468 = vld [vmem:[%s210 + $0x234] sm:$0xf]
        %v469 = vld [vmem:[%s210 + $0x238] sm:$0xf]
        %v470 = vld [vmem:[%s210 + $0x23c] sm:$0xf]
        %v471 = vld [vmem:[%s210 + $0x240] sm:$0xf]
        %v472 = vld [vmem:[%s210 + $0x244] sm:$0xf]
        %v473 = vld [vmem:[%s210 + $0x248] sm:$0xf]
        %v474 = vld [vmem:[%s210 + $0x24c] sm:$0xf]
        %v475 = vld [vmem:[%s210 + $0x250] sm:$0xf]
        %v476 = vld [vmem:[%s210 + $0x254] sm:$0xf]
        %v477 = vld [vmem:[%s210 + $0x258] sm:$0xf]
        %v478 = vld [vmem:[%s210 + $0x25c] sm:$0xf]
        %v479 = vld [vmem:[%s210 + $0x260] sm:$0xf]
        %v480 = vld [vmem:[%s210 + $0x264] sm:$0xf]
        %v481 = vld [vmem:[%s210 + $0x268] sm:$0xf]
        %v482 = vld [vmem:[%s210 + $0x26c] sm:$0xf]
        %v483 = vld [vmem:[%s210 + $0x270] sm:$0xf]
        %v484 = vld [vmem:[%s210 + $0x274] sm:$0xf]
        %v485 = vld [vmem:[%s210 + $0x278] sm:$0xf]
        %v486 = vld [vmem:[%s210 + $0x27c] sm:$0xf]
        %v487 = vld [vmem:[%s210 + $0x280] sm:$0xf]
        %v488 = vld [vmem:[%s210 + $0x284] sm:$0xf]
        %v489 = vld [vmem:[%s210 + $0x288] sm:$0xf]
        %v490 = vld [vmem:[%s210 + $0x28c] sm:$0xf]
        %v491 = vld [vmem:[%s210 + $0x290] sm:$0xf]
        %v492 = vld [vmem:[%s210 + $0x294] sm:$0xf]
        %v493 = vld [vmem:[%s210 + $0x298] sm:$0xf]
        %v494 = vld [vmem:[%s210 + $0x29c] sm:$0xf]
        %v495 = vld [vmem:[%s210 + $0x2a0] sm:$0xf]
        %v496 = vld [vmem:[%s210 + $0x2a4] sm:$0xf]
        %v497 = vld [vmem:[%s210 + $0x2a8] sm:$0xf]
        %v498 = vld [vmem:[%s210 + $0x2ac] sm:$0xf]
        %v499 = vld [vmem:[%s210 + $0x2b0] sm:$0xf]
        %v500 = vld [vmem:[%s210 + $0x2b4] sm:$0xf]
        %v501 = vld [vmem:[%s210 + $0x2b8] sm:$0xf]
        %v502 = vld [vmem:[%s210 + $0x2bc] sm:$0xf]
        %v503 = vld [vmem:[%s210 + $0x2c0] sm:$0xf]
        %v504 = vld [vmem:[%s210 + $0x2c4] sm:$0xf]
        %v505 = vld [vmem:[%s210 + $0x2c8] sm:$0xf]
        %v506 = vld [vmem:[%s210 + $0x2cc] sm:$0xf]
        %v507 = vld [vmem:[%s210 + $0x2d0] sm:$0xf]
        %v508 = vld [vmem:[%s210 + $0x2d4] sm:$0xf]
        %v509 = vld [vmem:[%s210 + $0x2d8] sm:$0xf]
        %v510 = vld [vmem:[%s210 + $0x2dc] sm:$0xf]
        %v511 = vld [vmem:[%s210 + $0x2e0] sm:$0xf]
        %v512 = vld [vmem:[%s210 + $0x2e4] sm:$0xf]
        %v513 = vld [vmem:[%s210 + $0x2e8] sm:$0xf]
        %v514 = vld [vmem:[%s210 + $0x2ec] sm:$0xf]
        %v515 = vld [vmem:[%s210 + $0x2f0] sm:$0xf]
        %v516 = vld [vmem:[%s210 + $0x2f4] sm:$0xf]
        %v517 = vld [vmem:[%s210 + $0x2f8] sm:$0xf]
        %v518 = vld [vmem:[%s210 + $0x2fc] sm:$0xf]
        %v519 = vld [vmem:[%s210 + $0x300] sm:$0xf]
        %v520 = vld [vmem:[%s210 + $0x304] sm:$0xf]
        %v521 = vld [vmem:[%s210 + $0x308] sm:$0xf]
        %v522 = vld [vmem:[%s210 + $0x30c] sm:$0xf]
        %v523 = vld [vmem:[%s210 + $0x310] sm:$0xf]
        %v524 = vld [vmem:[%s210 + $0x314] sm:$0xf]
        %v525 = vld [vmem:[%s210 + $0x318] sm:$0xf]
        %v526 = vld [vmem:[%s210 + $0x31c] sm:$0xf]
        %v527 = vld [vmem:[%s210 + $0x320] sm:$0xf]
        %v528 = vld [vmem:[%s210 + $0x324] sm:$0xf]
        %v529 = vld [vmem:[%s210 + $0x328] sm:$0xf]
        %v530 = vld [vmem:[%s210 + $0x32c] sm:$0xf]
        %v531 = vld [vmem:[%s210 + $0x330] sm:$0xf]
        %v532 = vld [vmem:[%s210 + $0x334] sm:$0xf]
        %v533 = vld [vmem:[%s210 + $0x338] sm:$0xf]
        %v534 = vld [vmem:[%s210 + $0x33c] sm:$0xf]
        %v535 = vld [vmem:[%s210 + $0x340] sm:$0xf]
        %v536 = vld [vmem:[%s210 + $0x344] sm:$0xf]
        %v537 = vld [vmem:[%s210 + $0x348] sm:$0xf]
        %v538 = vld [vmem:[%s210 + $0x34c] sm:$0xf]
        %v539 = vld [vmem:[%s210 + $0x350] sm:$0xf]
        %v540 = vld [vmem:[%s210 + $0x354] sm:$0xf]
        %v541 = vld [vmem:[%s210 + $0x358] sm:$0xf]
        %v542 = vld [vmem:[%s210 + $0x35c] sm:$0xf]
        %v543 = vld [vmem:[%s210 + $0x360] sm:$0xf]
        %v544 = vld [vmem:[%s210 + $0x364] sm:$0xf]
        %v545 = vld [vmem:[%s210 + $0x368] sm:$0xf]
        %v546 = vld [vmem:[%s210 + $0x36c] sm:$0xf]
        %v547 = vld [vmem:[%s210 + $0x370] sm:$0xf]
        %v548 = vld [vmem:[%s210 + $0x374] sm:$0xf]
        %v549 = vld [vmem:[%s210 + $0x378] sm:$0xf]
        %v550 = vld [vmem:[%s210 + $0x37c] sm:$0xf]
        %v551 = vld [vmem:[%s210 + $0x380] sm:$0xf]
        %v552 = vld [vmem:[%s210 + $0x384] sm:$0xf]
        %v553 = vld [vmem:[%s210 + $0x388] sm:$0xf]
        %v554 = vld [vmem:[%s210 + $0x38c] sm:$0xf]
        %v555 = vld [vmem:[%s210 + $0x390] sm:$0xf]
        %v556 = vld [vmem:[%s210 + $0x394] sm:$0xf]
        %v557 = vld [vmem:[%s210 + $0x398] sm:$0xf]
        %v558 = vld [vmem:[%s210 + $0x39c] sm:$0xf]
        %v559 = vld [vmem:[%s210 + $0x3a0] sm:$0xf]
        %v560 = vld [vmem:[%s210 + $0x3a4] sm:$0xf]
        %v561 = vld [vmem:[%s210 + $0x3a8] sm:$0xf]
        %v562 = vld [vmem:[%s210 + $0x3ac] sm:$0xf]
        %v563 = vld [vmem:[%s210 + $0x3b0] sm:$0xf]
        %v564 = vld [vmem:[%s210 + $0x3b4] sm:$0xf]
        %v565 = vld [vmem:[%s210 + $0x3b8] sm:$0xf]
        %v566 = vld [vmem:[%s210 + $0x3bc] sm:$0xf]
        %v567 = vld [vmem:[%s210 + $0x3c0] sm:$0xf]
        %v568 = vld [vmem:[%s210 + $0x3c4] sm:$0xf]
        %v569 = vld [vmem:[%s210 + $0x3c8] sm:$0xf]
        %v570 = vld [vmem:[%s210 + $0x3cc] sm:$0xf]
        %v571 = vld [vmem:[%s210 + $0x3d0] sm:$0xf]
        %v572 = vld [vmem:[%s210 + $0x3d4] sm:$0xf]
        %v573 = vld [vmem:[%s210 + $0x3d8] sm:$0xf]
        %v574 = vld [vmem:[%s210 + $0x3dc] sm:$0xf]
        %v575 = vld [vmem:[%s210 + $0x3e0] sm:$0xf]
        %v576 = vld [vmem:[%s210 + $0x3e4] sm:$0xf]
        %v577 = vld [vmem:[%s210 + $0x3e8] sm:$0xf]
        %v578 = vld [vmem:[%s210 + $0x3ec] sm:$0xf]
        %v579 = vld [vmem:[%s210 + $0x3f0] sm:$0xf]
        %v580 = vld [vmem:[%s210 + $0x3f4] sm:$0xf]
        %v581 = vld [vmem:[%s210 + $0x3f8] sm:$0xf]
        %v582 = vld [vmem:[%s210 + $0x3fc] sm:$0xf]
        %v839 = vunpack.c.l.b16 %v327
        %v840 = vunpack.c.l.b16 %v328
        %v841 = vunpack.c.l.b16 %v329
        %v842 = vunpack.c.l.b16 %v330
        %v843 = vunpack.c.l.b16 %v331
        %v844 = vunpack.c.l.b16 %v332
        %v845 = vunpack.c.l.b16 %v333
        %v846 = vunpack.c.l.b16 %v334
        %v847 = vunpack.c.l.b16 %v335
        %v848 = vunpack.c.l.b16 %v336
        %v849 = vunpack.c.l.b16 %v337
        %v850 = vunpack.c.l.b16 %v338
        %v851 = vunpack.c.l.b16 %v339
        %v852 = vunpack.c.l.b16 %v340
        %v853 = vunpack.c.l.b16 %v341
        %v854 = vunpack.c.l.b16 %v342
        %v855 = vunpack.c.l.b16 %v343
        %v856 = vunpack.c.l.b16 %v344
        %v857 = vunpack.c.l.b16 %v345
        %v858 = vunpack.c.l.b16 %v346
        %v859 = vunpack.c.l.b16 %v347
        %v860 = vunpack.c.l.b16 %v348
        %v861 = vunpack.c.l.b16 %v349
        %v862 = vunpack.c.l.b16 %v350
        %v863 = vunpack.c.l.b16 %v351
        %v864 = vunpack.c.l.b16 %v352
        %v865 = vunpack.c.l.b16 %v353
        %v866 = vunpack.c.l.b16 %v354
        %v867 = vunpack.c.l.b16 %v355
        %v868 = vunpack.c.l.b16 %v356
        %v869 = vunpack.c.l.b16 %v357
        %v870 = vunpack.c.l.b16 %v358
        %v871 = vunpack.c.l.b16 %v359
        %v872 = vunpack.c.l.b16 %v360
        %v873 = vunpack.c.l.b16 %v361
        %v874 = vunpack.c.l.b16 %v362
        %v875 = vunpack.c.l.b16 %v363
        %v876 = vunpack.c.l.b16 %v364
        %v877 = vunpack.c.l.b16 %v365
        %v878 = vunpack.c.l.b16 %v366
        %v879 = vunpack.c.l.b16 %v367
        %v880 = vunpack.c.l.b16 %v368
        %v881 = vunpack.c.l.b16 %v369
        %v882 = vunpack.c.l.b16 %v370
        %v883 = vunpack.c.l.b16 %v371
        %v884 = vunpack.c.l.b16 %v372
        %v885 = vunpack.c.l.b16 %v373
        %v886 = vunpack.c.l.b16 %v374
        %v887 = vunpack.c.l.b16 %v375
        %v888 = vunpack.c.l.b16 %v376
        %v889 = vunpack.c.l.b16 %v377
        %v890 = vunpack.c.l.b16 %v378
        %v891 = vunpack.c.l.b16 %v379
        %v892 = vunpack.c.l.b16 %v380
        %v893 = vunpack.c.l.b16 %v381
        %v894 = vunpack.c.l.b16 %v382
        %v895 = vunpack.c.l.b16 %v383
        %v896 = vunpack.c.l.b16 %v384
        %v897 = vunpack.c.l.b16 %v385
        %v898 = vunpack.c.l.b16 %v386
        %v899 = vunpack.c.l.b16 %v387
        %v900 = vunpack.c.l.b16 %v388
        %v901 = vunpack.c.l.b16 %v389
        %v902 = vunpack.c.l.b16 %v390
        %v903 = vunpack.c.l.b16 %v391
        %v904 = vunpack.c.l.b16 %v392
        %v905 = vunpack.c.l.b16 %v393
        %v906 = vunpack.c.l.b16 %v394
        %v907 = vunpack.c.l.b16 %v395
        %v908 = vunpack.c.l.b16 %v396
        %v909 = vunpack.c.l.b16 %v397
        %v910 = vunpack.c.l.b16 %v398
        %v911 = vunpack.c.l.b16 %v399
        %v912 = vunpack.c.l.b16 %v400
        %v913 = vunpack.c.l.b16 %v401
        %v914 = vunpack.c.l.b16 %v402
        %v915 = vunpack.c.l.b16 %v403
        %v916 = vunpack.c.l.b16 %v404
        %v917 = vunpack.c.l.b16 %v405
        %v918 = vunpack.c.l.b16 %v406
        %v919 = vunpack.c.l.b16 %v407
        %v920 = vunpack.c.l.b16 %v408
        %v921 = vunpack.c.l.b16 %v409
        %v922 = vunpack.c.l.b16 %v410
        %v923 = vunpack.c.l.b16 %v411
        %v924 = vunpack.c.l.b16 %v412
        %v925 = vunpack.c.l.b16 %v413
        %v926 = vunpack.c.l.b16 %v414
        %v927 = vunpack.c.l.b16 %v415
        %v928 = vunpack.c.l.b16 %v416
        %v929 = vunpack.c.l.b16 %v417
        %v930 = vunpack.c.l.b16 %v418
        %v931 = vunpack.c.l.b16 %v419
        %v932 = vunpack.c.l.b16 %v420
        %v933 = vunpack.c.l.b16 %v421
        %v934 = vunpack.c.l.b16 %v422
        %v935 = vunpack.c.l.b16 %v423
        %v936 = vunpack.c.l.b16 %v424
        %v937 = vunpack.c.l.b16 %v425
        %v938 = vunpack.c.l.b16 %v426
        %v939 = vunpack.c.l.b16 %v427
        %v940 = vunpack.c.l.b16 %v428
        %v941 = vunpack.c.l.b16 %v429
        %v942 = vunpack.c.l.b16 %v430
        %v943 = vunpack.c.l.b16 %v431
        %v944 = vunpack.c.l.b16 %v432
        %v945 = vunpack.c.l.b16 %v433
        %v946 = vunpack.c.l.b16 %v434
        %v947 = vunpack.c.l.b16 %v435
        %v948 = vunpack.c.l.b16 %v436
        %v949 = vunpack.c.l.b16 %v437
        %v950 = vunpack.c.l.b16 %v438
        %v951 = vunpack.c.l.b16 %v439
        %v952 = vunpack.c.l.b16 %v440
        %v953 = vunpack.c.l.b16 %v441
        %v954 = vunpack.c.l.b16 %v442
        %v955 = vunpack.c.l.b16 %v443
        %v956 = vunpack.c.l.b16 %v444
        %v957 = vunpack.c.l.b16 %v445
        %v958 = vunpack.c.l.b16 %v446
        %v959 = vunpack.c.l.b16 %v447
        %v960 = vunpack.c.l.b16 %v448
        %v961 = vunpack.c.l.b16 %v449
        %v962 = vunpack.c.l.b16 %v450
        %v963 = vunpack.c.l.b16 %v451
        %v964 = vunpack.c.l.b16 %v452
        %v965 = vunpack.c.l.b16 %v453
        %v966 = vunpack.c.l.b16 %v454
        %v967 = vunpack.c.l.b16 %v455
        %v968 = vunpack.c.l.b16 %v456
        %v969 = vunpack.c.l.b16 %v457
        %v970 = vunpack.c.l.b16 %v458
        %v971 = vunpack.c.l.b16 %v459
        %v972 = vunpack.c.l.b16 %v460
        %v973 = vunpack.c.l.b16 %v461
        %v974 = vunpack.c.l.b16 %v462
        %v975 = vunpack.c.l.b16 %v463
        %v976 = vunpack.c.l.b16 %v464
        %v977 = vunpack.c.l.b16 %v465
        %v978 = vunpack.c.l.b16 %v466
        %v979 = vunpack.c.l.b16 %v467
        %v980 = vunpack.c.l.b16 %v468
        %v981 = vunpack.c.l.b16 %v469
        %v982 = vunpack.c.l.b16 %v470
        %v983 = vunpack.c.l.b16 %v471
        %v984 = vunpack.c.l.b16 %v472
        %v985 = vunpack.c.l.b16 %v473
        %v986 = vunpack.c.l.b16 %v474
        %v987 = vunpack.c.l.b16 %v475
        %v988 = vunpack.c.l.b16 %v476
        %v989 = vunpack.c.l.b16 %v477
        %v990 = vunpack.c.l.b16 %v478
        %v991 = vunpack.c.l.b16 %v479
        %v992 = vunpack.c.l.b16 %v480
        %v993 = vunpack.c.l.b16 %v481
        %v994 = vunpack.c.l.b16 %v482
        %v995 = vunpack.c.l.b16 %v483
        %v996 = vunpack.c.l.b16 %v484
        %v997 = vunpack.c.l.b16 %v485
        %v998 = vunpack.c.l.b16 %v486
        %v999 = vunpack.c.l.b16 %v487
        %v1000 = vunpack.c.l.b16 %v488
        %v1001 = vunpack.c.l.b16 %v489
        %v1002 = vunpack.c.l.b16 %v490
        %v1003 = vunpack.c.l.b16 %v491
        %v1004 = vunpack.c.l.b16 %v492
        %v1005 = vunpack.c.l.b16 %v493
        %v1006 = vunpack.c.l.b16 %v494
        %v1007 = vunpack.c.l.b16 %v495
        %v1008 = vunpack.c.l.b16 %v496
        %v1009 = vunpack.c.l.b16 %v497
        %v1010 = vunpack.c.l.b16 %v498
        %v1011 = vunpack.c.l.b16 %v499
        %v1012 = vunpack.c.l.b16 %v500
        %v1013 = vunpack.c.l.b16 %v501
        %v1014 = vunpack.c.l.b16 %v502
        %v1015 = vunpack.c.l.b16 %v503
        %v1016 = vunpack.c.l.b16 %v504
        %v1017 = vunpack.c.l.b16 %v505
        %v1018 = vunpack.c.l.b16 %v506
        %v1019 = vunpack.c.l.b16 %v507
        %v1020 = vunpack.c.l.b16 %v508
        %v1021 = vunpack.c.l.b16 %v509
        %v1022 = vunpack.c.l.b16 %v510
        %v1023 = vunpack.c.l.b16 %v511
        %v1024 = vunpack.c.l.b16 %v512
        %v1025 = vunpack.c.l.b16 %v513
        %v1026 = vunpack.c.l.b16 %v514
        %v1027 = vunpack.c.l.b16 %v515
        %v1028 = vunpack.c.l.b16 %v516
        %v1029 = vunpack.c.l.b16 %v517
        %v1030 = vunpack.c.l.b16 %v518
        %v1031 = vunpack.c.l.b16 %v519
        %v1032 = vunpack.c.l.b16 %v520
        %v1033 = vunpack.c.l.b16 %v521
        %v1034 = vunpack.c.l.b16 %v522
        %v1035 = vunpack.c.l.b16 %v523
        %v1036 = vunpack.c.l.b16 %v524
        %v1037 = vunpack.c.l.b16 %v525
        %v1038 = vunpack.c.l.b16 %v526
        %v1039 = vunpack.c.l.b16 %v527
        %v1040 = vunpack.c.l.b16 %v528
        %v1041 = vunpack.c.l.b16 %v529
        %v1042 = vunpack.c.l.b16 %v530
        %v1043 = vunpack.c.l.b16 %v531
        %v1044 = vunpack.c.l.b16 %v532
        %v1045 = vunpack.c.l.b16 %v533
        %v1046 = vunpack.c.l.b16 %v534
        %v1047 = vunpack.c.l.b16 %v535
        %v1048 = vunpack.c.l.b16 %v536
        %v1049 = vunpack.c.l.b16 %v537
        %v1050 = vunpack.c.l.b16 %v538
        %v1051 = vunpack.c.l.b16 %v539
        %v1052 = vunpack.c.l.b16 %v540
        %v1053 = vunpack.c.l.b16 %v541
        %v1054 = vunpack.c.l.b16 %v542
        %v1055 = vunpack.c.l.b16 %v543
        %v1056 = vunpack.c.l.b16 %v544
        %v1057 = vunpack.c.l.b16 %v545
        %v1058 = vunpack.c.l.b16 %v546
        %v1059 = vunpack.c.l.b16 %v547
        %v1060 = vunpack.c.l.b16 %v548
        %v1061 = vunpack.c.l.b16 %v549
        %v1062 = vunpack.c.l.b16 %v550
        %v1063 = vunpack.c.l.b16 %v551
        %v1064 = vunpack.c.l.b16 %v552
        %v1065 = vunpack.c.l.b16 %v553
        %v1066 = vunpack.c.l.b16 %v554
        %v1067 = vunpack.c.l.b16 %v555
        %v1068 = vunpack.c.l.b16 %v556
        %v1069 = vunpack.c.l.b16 %v557
        %v1070 = vunpack.c.l.b16 %v558
        %v1071 = vunpack.c.l.b16 %v559
        %v1072 = vunpack.c.l.b16 %v560
        %v1073 = vunpack.c.l.b16 %v561
        %v1074 = vunpack.c.l.b16 %v562
        %v1075 = vunpack.c.l.b16 %v563
        %v1076 = vunpack.c.l.b16 %v564
        %v1077 = vunpack.c.l.b16 %v565
        %v1078 = vunpack.c.l.b16 %v566
        %v1079 = vunpack.c.l.b16 %v567
        %v1080 = vunpack.c.l.b16 %v568
        %v1081 = vunpack.c.l.b16 %v569
        %v1082 = vunpack.c.l.b16 %v570
        %v1083 = vunpack.c.l.b16 %v571
        %v1084 = vunpack.c.l.b16 %v572
        %v1085 = vunpack.c.l.b16 %v573
        %v1086 = vunpack.c.l.b16 %v574
        %v1087 = vunpack.c.l.b16 %v575
        %v1088 = vunpack.c.l.b16 %v576
        %v1089 = vunpack.c.l.b16 %v577
        %v1090 = vunpack.c.l.b16 %v578
        %v1091 = vunpack.c.l.b16 %v579
        %v1092 = vunpack.c.l.b16 %v580
        %v1093 = vunpack.c.l.b16 %v581
        %v1094 = vunpack.c.l.b16 %v582
        %v1095 = vpack.c.b16 %v840, %v839
        %v1096 = vpack.c.b16 %v842, %v841
        %v1097 = vpack.c.b16 %v844, %v843
        %v1098 = vpack.c.b16 %v846, %v845
        %v1099 = vpack.c.b16 %v848, %v847
        %v1100 = vpack.c.b16 %v850, %v849
        %v1101 = vpack.c.b16 %v852, %v851
        %v1102 = vpack.c.b16 %v854, %v853
        %v1103 = vpack.c.b16 %v856, %v855
        %v1104 = vpack.c.b16 %v858, %v857
        %v1105 = vpack.c.b16 %v860, %v859
        %v1106 = vpack.c.b16 %v862, %v861
        %v1107 = vpack.c.b16 %v864, %v863
        %v1108 = vpack.c.b16 %v866, %v865
        %v1109 = vpack.c.b16 %v868, %v867
        %v1110 = vpack.c.b16 %v870, %v869
        %v1111 = vpack.c.b16 %v872, %v871
        %v1112 = vpack.c.b16 %v874, %v873
        %v1113 = vpack.c.b16 %v876, %v875
        %v1114 = vpack.c.b16 %v878, %v877
        %v1115 = vpack.c.b16 %v880, %v879
        %v1116 = vpack.c.b16 %v882, %v881
        %v1117 = vpack.c.b16 %v884, %v883
        %v1118 = vpack.c.b16 %v886, %v885
        %v1119 = vpack.c.b16 %v888, %v887
        %v1120 = vpack.c.b16 %v890, %v889
        %v1121 = vpack.c.b16 %v892, %v891
        %v1122 = vpack.c.b16 %v894, %v893
        %v1123 = vpack.c.b16 %v896, %v895
        %v1124 = vpack.c.b16 %v898, %v897
        %v1125 = vpack.c.b16 %v900, %v899
        %v1126 = vpack.c.b16 %v902, %v901
        %v1127 = vpack.c.b16 %v904, %v903
        %v1128 = vpack.c.b16 %v906, %v905
        %v1129 = vpack.c.b16 %v908, %v907
        %v1130 = vpack.c.b16 %v910, %v909
        %v1131 = vpack.c.b16 %v912, %v911
        %v1132 = vpack.c.b16 %v914, %v913
        %v1133 = vpack.c.b16 %v916, %v915
        %v1134 = vpack.c.b16 %v918, %v917
        %v1135 = vpack.c.b16 %v920, %v919
        %v1136 = vpack.c.b16 %v922, %v921
        %v1137 = vpack.c.b16 %v924, %v923
        %v1138 = vpack.c.b16 %v926, %v925
        %v1139 = vpack.c.b16 %v928, %v927
        %v1140 = vpack.c.b16 %v930, %v929
        %v1141 = vpack.c.b16 %v932, %v931
        %v1142 = vpack.c.b16 %v934, %v933
        %v1143 = vpack.c.b16 %v936, %v935
        %v1144 = vpack.c.b16 %v938, %v937
        %v1145 = vpack.c.b16 %v940, %v939
        %v1146 = vpack.c.b16 %v942, %v941
        %v1147 = vpack.c.b16 %v944, %v943
        %v1148 = vpack.c.b16 %v946, %v945
        %v1149 = vpack.c.b16 %v948, %v947
        %v1150 = vpack.c.b16 %v950, %v949
        %v1151 = vpack.c.b16 %v952, %v951
        %v1152 = vpack.c.b16 %v954, %v953
        %v1153 = vpack.c.b16 %v956, %v955
        %v1154 = vpack.c.b16 %v958, %v957
        %v1155 = vpack.c.b16 %v960, %v959
        %v1156 = vpack.c.b16 %v962, %v961
        %v1157 = vpack.c.b16 %v964, %v963
        %v1158 = vpack.c.b16 %v966, %v965
        %v1159 = vpack.c.b16 %v968, %v967
        %v1160 = vpack.c.b16 %v970, %v969
        %v1161 = vpack.c.b16 %v972, %v971
        %v1162 = vpack.c.b16 %v974, %v973
        %v1163 = vpack.c.b16 %v976, %v975
        %v1164 = vpack.c.b16 %v978, %v977
        %v1165 = vpack.c.b16 %v980, %v979
        %v1166 = vpack.c.b16 %v982, %v981
        %v1167 = vpack.c.b16 %v984, %v983
        %v1168 = vpack.c.b16 %v986, %v985
        %v1169 = vpack.c.b16 %v988, %v987
        %v1170 = vpack.c.b16 %v990, %v989
        %v1171 = vpack.c.b16 %v992, %v991
        %v1172 = vpack.c.b16 %v994, %v993
        %v1173 = vpack.c.b16 %v996, %v995
        %v1174 = vpack.c.b16 %v998, %v997
        %v1175 = vpack.c.b16 %v1000, %v999
        %v1176 = vpack.c.b16 %v1002, %v1001
        %v1177 = vpack.c.b16 %v1004, %v1003
        %v1178 = vpack.c.b16 %v1006, %v1005
        %v1179 = vpack.c.b16 %v1008, %v1007
        %v1180 = vpack.c.b16 %v1010, %v1009
        %v1181 = vpack.c.b16 %v1012, %v1011
        %v1182 = vpack.c.b16 %v1014, %v1013
        %v1183 = vpack.c.b16 %v1016, %v1015
        %v1184 = vpack.c.b16 %v1018, %v1017
        %v1185 = vpack.c.b16 %v1020, %v1019
        %v1186 = vpack.c.b16 %v1022, %v1021
        %v1187 = vpack.c.b16 %v1024, %v1023
        %v1188 = vpack.c.b16 %v1026, %v1025
        %v1189 = vpack.c.b16 %v1028, %v1027
        %v1190 = vpack.c.b16 %v1030, %v1029
        %v1191 = vpack.c.b16 %v1032, %v1031
        %v1192 = vpack.c.b16 %v1034, %v1033
        %v1193 = vpack.c.b16 %v1036, %v1035
        %v1194 = vpack.c.b16 %v1038, %v1037
        %v1195 = vpack.c.b16 %v1040, %v1039
        %v1196 = vpack.c.b16 %v1042, %v1041
        %v1197 = vpack.c.b16 %v1044, %v1043
        %v1198 = vpack.c.b16 %v1046, %v1045
        %v1199 = vpack.c.b16 %v1048, %v1047
        %v1200 = vpack.c.b16 %v1050, %v1049
        %v1201 = vpack.c.b16 %v1052, %v1051
        %v1202 = vpack.c.b16 %v1054, %v1053
        %v1203 = vpack.c.b16 %v1056, %v1055
        %v1204 = vpack.c.b16 %v1058, %v1057
        %v1205 = vpack.c.b16 %v1060, %v1059
        %v1206 = vpack.c.b16 %v1062, %v1061
        %v1207 = vpack.c.b16 %v1064, %v1063
        %v1208 = vpack.c.b16 %v1066, %v1065
        %v1209 = vpack.c.b16 %v1068, %v1067
        %v1210 = vpack.c.b16 %v1070, %v1069
        %v1211 = vpack.c.b16 %v1072, %v1071
        %v1212 = vpack.c.b16 %v1074, %v1073
        %v1213 = vpack.c.b16 %v1076, %v1075
        %v1214 = vpack.c.b16 %v1078, %v1077
        %v1215 = vpack.c.b16 %v1080, %v1079
        %v1216 = vpack.c.b16 %v1082, %v1081
        %v1217 = vpack.c.b16 %v1084, %v1083
        %v1218 = vpack.c.b16 %v1086, %v1085
        %v1219 = vpack.c.b16 %v1088, %v1087
        %v1220 = vpack.c.b16 %v1090, %v1089
        %v1221 = vpack.c.b16 %v1092, %v1091
        %v1222 = vpack.c.b16 %v1094, %v1093
        %1351 = vmatprep.subr.bf16.mxu0 0
        %1352 = vmatpush1.bf16.msra.mxu0 %v1095
        %1353 = vmatprep.subr.bf16.mxu0 0
        %1354 = vmatpush1.bf16.msra.mxu0 %v1096
        %1355 = vmatprep.subr.bf16.mxu0 0
        %1356 = vmatpush1.bf16.msra.mxu0 %v1097
        %1357 = vmatprep.subr.bf16.mxu0 0
        %1358 = vmatpush1.bf16.msra.mxu0 %v1098
        %1359 = vmatprep.subr.bf16.mxu0 0
        %1360 = vmatpush1.bf16.msra.mxu0 %v1099
        %1361 = vmatprep.subr.bf16.mxu0 0
        %1362 = vmatpush1.bf16.msra.mxu0 %v1100
        %1363 = vmatprep.subr.bf16.mxu0 0
        %1364 = vmatpush1.bf16.msra.mxu0 %v1101
        %1365 = vmatprep.subr.bf16.mxu0 0
        %1366 = vmatpush1.bf16.msra.mxu0 %v1102
        %1367 = vmatprep.subr.bf16.mxu0 0
        %1368 = vmatpush1.bf16.msra.mxu0 %v1103
        %1369 = vmatprep.subr.bf16.mxu0 0
        %1370 = vmatpush1.bf16.msra.mxu0 %v1104
        %1371 = vmatprep.subr.bf16.mxu0 0
        %1372 = vmatpush1.bf16.msra.mxu0 %v1105
        %1373 = vmatprep.subr.bf16.mxu0 0
        %1374 = vmatpush1.bf16.msra.mxu0 %v1106
        %1375 = vmatprep.subr.bf16.mxu0 0
        %1376 = vmatpush1.bf16.msra.mxu0 %v1107
        %1377 = vmatprep.subr.bf16.mxu0 0
        %1378 = vmatpush1.bf16.msra.mxu0 %v1108
        %1379 = vmatprep.subr.bf16.mxu0 0
        %1380 = vmatpush1.bf16.msra.mxu0 %v1109
        %1381 = vmatprep.subr.bf16.mxu0 0
        %1382 = vmatpush1.bf16.msra.mxu0 %v1110
        %1383 = vmatprep.mubr.bf16.mxu0 %v312
        %1384 = vmatmul.mubr.bf16.gmra.mrb[0].mxu0 %v311
        %v1385 = vpop.f32.mrb[0].mxu0
        %v1386 = vadd.f32 0.0, %v1385
        %v1387 = vpop.f32.mrb[0].mxu0
        %v1388 = vpop.f32.mrb[0].mxu0
        %v1389 = vpop.f32.mrb[0].mxu0
        %1390 = vdwg.mxu0
        %1391 = vmatprep.subr.bf16.mxu0 0
        %1392 = vmatpush1.bf16.msra.mxu0 %v1111
        %1393 = vmatprep.subr.bf16.mxu0 0
        %1394 = vmatpush1.bf16.msra.mxu0 %v1112
        %1395 = vmatprep.subr.bf16.mxu0 0
        %1396 = vmatpush1.bf16.msra.mxu0 %v1113
        %1397 = vmatprep.subr.bf16.mxu0 0
        %1398 = vmatpush1.bf16.msra.mxu0 %v1114
        %1399 = vmatprep.subr.bf16.mxu0 0
        %1400 = vmatpush1.bf16.msra.mxu0 %v1115
        %1401 = vmatprep.subr.bf16.mxu0 0
        %1402 = vmatpush1.bf16.msra.mxu0 %v1116
        %1403 = vmatprep.subr.bf16.mxu0 0
        %1404 = vmatpush1.bf16.msra.mxu0 %v1117
        %1405 = vmatprep.subr.bf16.mxu0 0
        %1406 = vmatpush1.bf16.msra.mxu0 %v1118
        %1407 = vmatprep.subr.bf16.mxu0 0
        %1408 = vmatpush1.bf16.msra.mxu0 %v1119
        %1409 = vmatprep.subr.bf16.mxu0 0
        %1410 = vmatpush1.bf16.msra.mxu0 %v1120
        %1411 = vmatprep.subr.bf16.mxu0 0
        %1412 = vmatpush1.bf16.msra.mxu0 %v1121
        %1413 = vmatprep.subr.bf16.mxu0 0
        %1414 = vmatpush1.bf16.msra.mxu0 %v1122
        %1415 = vmatprep.subr.bf16.mxu0 0
        %1416 = vmatpush1.bf16.msra.mxu0 %v1123
        %1417 = vmatprep.subr.bf16.mxu0 0
        %1418 = vmatpush1.bf16.msra.mxu0 %v1124
        %1419 = vmatprep.subr.bf16.mxu0 0
        %1420 = vmatpush1.bf16.msra.mxu0 %v1125
        %1421 = vmatprep.subr.bf16.mxu0 0
        %1422 = vmatpush1.bf16.msra.mxu0 %v1126
        %1423 = vmatprep.mubr.bf16.mxu0 %v314
        %1424 = vmatmul.mubr.bf16.gmra.mrb[0].mxu0 %v313
        %v1425 = vpop.f32.mrb[0].mxu0
        %v1426 = vadd.f32 %v1386, %v1425
        %v1427 = vpop.f32.mrb[0].mxu0
        %v1428 = vpop.f32.mrb[0].mxu0
        %v1429 = vpop.f32.mrb[0].mxu0
        %1430 = vdwg.mxu0
        %1431 = vmatprep.subr.bf16.mxu0 0
        %1432 = vmatpush1.bf16.msra.mxu0 %v1127
        %1433 = vmatprep.subr.bf16.mxu0 0
        %1434 = vmatpush1.bf16.msra.mxu0 %v1128
        %1435 = vmatprep.subr.bf16.mxu0 0
        %1436 = vmatpush1.bf16.msra.mxu0 %v1129
        %1437 = vmatprep.subr.bf16.mxu0 0
        %1438 = vmatpush1.bf16.msra.mxu0 %v1130
        %1439 = vmatprep.subr.bf16.mxu0 0
        %1440 = vmatpush1.bf16.msra.mxu0 %v1131
        %1441 = vmatprep.subr.bf16.mxu0 0
        %1442 = vmatpush1.bf16.msra.mxu0 %v1132
        %1443 = vmatprep.subr.bf16.mxu0 0
        %1444 = vmatpush1.bf16.msra.mxu0 %v1133
        %1445 = vmatprep.subr.bf16.mxu0 0
        %1446 = vmatpush1.bf16.msra.mxu0 %v1134
        %1447 = vmatprep.subr.bf16.mxu0 0
        %1448 = vmatpush1.bf16.msra.mxu0 %v1135
        %1449 = vmatprep.subr.bf16.mxu0 0
        %1450 = vmatpush1.bf16.msra.mxu0 %v1136
        %1451 = vmatprep.subr.bf16.mxu0 0
        %1452 = vmatpush1.bf16.msra.mxu0 %v1137
        %1453 = vmatprep.subr.bf16.mxu0 0
        %1454 = vmatpush1.bf16.msra.mxu0 %v1138
        %1455 = vmatprep.subr.bf16.mxu0 0
        %1456 = vmatpush1.bf16.msra.mxu0 %v1139
        %1457 = vmatprep.subr.bf16.mxu0 0
        %1458 = vmatpush1.bf16.msra.mxu0 %v1140
        %1459 = vmatprep.subr.bf16.mxu0 0
        %1460 = vmatpush1.bf16.msra.mxu0 %v1141
        %1461 = vmatprep.subr.bf16.mxu0 0
        %1462 = vmatpush1.bf16.msra.mxu0 %v1142
        %1463 = vmatprep.mubr.bf16.mxu0 %v316
        %1464 = vmatmul.mubr.bf16.gmra.mrb[0].mxu0 %v315
        %v1465 = vpop.f32.mrb[0].mxu0
        %v1466 = vadd.f32 %v1426, %v1465
        %v1467 = vpop.f32.mrb[0].mxu0
        %v1468 = vpop.f32.mrb[0].mxu0
        %v1469 = vpop.f32.mrb[0].mxu0
        %1470 = vdwg.mxu0
        %1471 = vmatprep.subr.bf16.mxu0 0
        %1472 = vmatpush1.bf16.msra.mxu0 %v1143
        %1473 = vmatprep.subr.bf16.mxu0 0
        %1474 = vmatpush1.bf16.msra.mxu0 %v1144
        %1475 = vmatprep.subr.bf16.mxu0 0
        %1476 = vmatpush1.bf16.msra.mxu0 %v1145
        %1477 = vmatprep.subr.bf16.mxu0 0
        %1478 = vmatpush1.bf16.msra.mxu0 %v1146
        %1479 = vmatprep.subr.bf16.mxu0 0
        %1480 = vmatpush1.bf16.msra.mxu0 %v1147
        %1481 = vmatprep.subr.bf16.mxu0 0
        %1482 = vmatpush1.bf16.msra.mxu0 %v1148
        %1483 = vmatprep.subr.bf16.mxu0 0
        %1484 = vmatpush1.bf16.msra.mxu0 %v1149
        %1485 = vmatprep.subr.bf16.mxu0 0
        %1486 = vmatpush1.bf16.msra.mxu0 %v1150
        %1487 = vmatprep.subr.bf16.mxu0 0
        %1488 = vmatpush1.bf16.msra.mxu0 %v1151
        %1489 = vmatprep.subr.bf16.mxu0 0
        %1490 = vmatpush1.bf16.msra.mxu0 %v1152
        %1491 = vmatprep.subr.bf16.mxu0 0
        %1492 = vmatpush1.bf16.msra.mxu0 %v1153
        %1493 = vmatprep.subr.bf16.mxu0 0
        %1494 = vmatpush1.bf16.msra.mxu0 %v1154
        %1495 = vmatprep.subr.bf16.mxu0 0
        %1496 = vmatpush1.bf16.msra.mxu0 %v1155
        %1497 = vmatprep.subr.bf16.mxu0 0
        %1498 = vmatpush1.bf16.msra.mxu0 %v1156
        %1499 = vmatprep.subr.bf16.mxu0 0
        %1500 = vmatpush1.bf16.msra.mxu0 %v1157
        %1501 = vmatprep.subr.bf16.mxu0 0
        %1502 = vmatpush1.bf16.msra.mxu0 %v1158
        %1503 = vmatprep.mubr.bf16.mxu0 %v318
        %1504 = vmatmul.mubr.bf16.gmra.mrb[0].mxu0 %v317
        %v1505 = vpop.f32.mrb[0].mxu0
        %v1506 = vadd.f32 %v1466, %v1505
        %v1507 = vpop.f32.mrb[0].mxu0
        %v1508 = vpop.f32.mrb[0].mxu0
        %v1509 = vpop.f32.mrb[0].mxu0
        %1510 = vdwg.mxu0
        %1511 = vmatprep.subr.bf16.mxu0 0
        %1512 = vmatpush1.bf16.msra.mxu0 %v1159
        %1513 = vmatprep.subr.bf16.mxu0 0
        %1514 = vmatpush1.bf16.msra.mxu0 %v1160
        %1515 = vmatprep.subr.bf16.mxu0 0
        %1516 = vmatpush1.bf16.msra.mxu0 %v1161
        %1517 = vmatprep.subr.bf16.mxu0 0
        %1518 = vmatpush1.bf16.msra.mxu0 %v1162
        %1519 = vmatprep.subr.bf16.mxu0 0
        %1520 = vmatpush1.bf16.msra.mxu0 %v1163
        %1521 = vmatprep.subr.bf16.mxu0 0
        %1522 = vmatpush1.bf16.msra.mxu0 %v1164
        %1523 = vmatprep.subr.bf16.mxu0 0
        %1524 = vmatpush1.bf16.msra.mxu0 %v1165
        %1525 = vmatprep.subr.bf16.mxu0 0
        %1526 = vmatpush1.bf16.msra.mxu0 %v1166
        %1527 = vmatprep.subr.bf16.mxu0 0
        %1528 = vmatpush1.bf16.msra.mxu0 %v1167
        %1529 = vmatprep.subr.bf16.mxu0 0
        %1530 = vmatpush1.bf16.msra.mxu0 %v1168
        %1531 = vmatprep.subr.bf16.mxu0 0
        %1532 = vmatpush1.bf16.msra.mxu0 %v1169
        %1533 = vmatprep.subr.bf16.mxu0 0
        %1534 = vmatpush1.bf16.msra.mxu0 %v1170
        %1535 = vmatprep.subr.bf16.mxu0 0
        %1536 = vmatpush1.bf16.msra.mxu0 %v1171
        %1537 = vmatprep.subr.bf16.mxu0 0
        %1538 = vmatpush1.bf16.msra.mxu0 %v1172
        %1539 = vmatprep.subr.bf16.mxu0 0
        %1540 = vmatpush1.bf16.msra.mxu0 %v1173
        %1541 = vmatprep.subr.bf16.mxu0 0
        %1542 = vmatpush1.bf16.msra.mxu0 %v1174
        %1543 = vmatprep.mubr.bf16.mxu0 %v320
        %1544 = vmatmul.mubr.bf16.gmra.mrb[0].mxu0 %v319
        %v1545 = vpop.f32.mrb[0].mxu0
        %v1546 = vadd.f32 %v1506, %v1545
        %v1547 = vpop.f32.mrb[0].mxu0
        %v1548 = vpop.f32.mrb[0].mxu0
        %v1549 = vpop.f32.mrb[0].mxu0
        %1550 = vdwg.mxu0
        %1551 = vmatprep.subr.bf16.mxu0 0
        %1552 = vmatpush1.bf16.msra.mxu0 %v1175
        %1553 = vmatprep.subr.bf16.mxu0 0
        %1554 = vmatpush1.bf16.msra.mxu0 %v1176
        %1555 = vmatprep.subr.bf16.mxu0 0
        %1556 = vmatpush1.bf16.msra.mxu0 %v1177
        %1557 = vmatprep.subr.bf16.mxu0 0
        %1558 = vmatpush1.bf16.msra.mxu0 %v1178
        %1559 = vmatprep.subr.bf16.mxu0 0
        %1560 = vmatpush1.bf16.msra.mxu0 %v1179
        %1561 = vmatprep.subr.bf16.mxu0 0
        %1562 = vmatpush1.bf16.msra.mxu0 %v1180
        %1563 = vmatprep.subr.bf16.mxu0 0
        %1564 = vmatpush1.bf16.msra.mxu0 %v1181
        %1565 = vmatprep.subr.bf16.mxu0 0
        %1566 = vmatpush1.bf16.msra.mxu0 %v1182
        %1567 = vmatprep.subr.bf16.mxu0 0
        %1568 = vmatpush1.bf16.msra.mxu0 %v1183
        %1569 = vmatprep.subr.bf16.mxu0 0
        %1570 = vmatpush1.bf16.msra.mxu0 %v1184
        %1571 = vmatprep.subr.bf16.mxu0 0
        %1572 = vmatpush1.bf16.msra.mxu0 %v1185
        %1573 = vmatprep.subr.bf16.mxu0 0
        %1574 = vmatpush1.bf16.msra.mxu0 %v1186
        %1575 = vmatprep.subr.bf16.mxu0 0
        %1576 = vmatpush1.bf16.msra.mxu0 %v1187
        %1577 = vmatprep.subr.bf16.mxu0 0
        %1578 = vmatpush1.bf16.msra.mxu0 %v1188
        %1579 = vmatprep.subr.bf16.mxu0 0
        %1580 = vmatpush1.bf16.msra.mxu0 %v1189
        %1581 = vmatprep.subr.bf16.mxu0 0
        %1582 = vmatpush1.bf16.msra.mxu0 %v1190
        %1583 = vmatprep.mubr.bf16.mxu0 %v322
        %1584 = vmatmul.mubr.bf16.gmra.mrb[0].mxu0 %v321
        %v1585 = vpop.f32.mrb[0].mxu0
        %v1586 = vadd.f32 %v1546, %v1585
        %v1587 = vpop.f32.mrb[0].mxu0
        %v1588 = vpop.f32.mrb[0].mxu0
        %v1589 = vpop.f32.mrb[0].mxu0
        %1590 = vdwg.mxu0
        %1591 = vmatprep.subr.bf16.mxu0 0
        %1592 = vmatpush1.bf16.msra.mxu0 %v1191
        %1593 = vmatprep.subr.bf16.mxu0 0
        %1594 = vmatpush1.bf16.msra.mxu0 %v1192
        %1595 = vmatprep.subr.bf16.mxu0 0
        %1596 = vmatpush1.bf16.msra.mxu0 %v1193
        %1597 = vmatprep.subr.bf16.mxu0 0
        %1598 = vmatpush1.bf16.msra.mxu0 %v1194
        %1599 = vmatprep.subr.bf16.mxu0 0
        %1600 = vmatpush1.bf16.msra.mxu0 %v1195
        %1601 = vmatprep.subr.bf16.mxu0 0
        %1602 = vmatpush1.bf16.msra.mxu0 %v1196
        %1603 = vmatprep.subr.bf16.mxu0 0
        %1604 = vmatpush1.bf16.msra.mxu0 %v1197
        %1605 = vmatprep.subr.bf16.mxu0 0
        %1606 = vmatpush1.bf16.msra.mxu0 %v1198
        %1607 = vmatprep.subr.bf16.mxu0 0
        %1608 = vmatpush1.bf16.msra.mxu0 %v1199
        %1609 = vmatprep.subr.bf16.mxu0 0
        %1610 = vmatpush1.bf16.msra.mxu0 %v1200
        %1611 = vmatprep.subr.bf16.mxu0 0
        %1612 = vmatpush1.bf16.msra.mxu0 %v1201
        %1613 = vmatprep.subr.bf16.mxu0 0
        %1614 = vmatpush1.bf16.msra.mxu0 %v1202
        %1615 = vmatprep.subr.bf16.mxu0 0
        %1616 = vmatpush1.bf16.msra.mxu0 %v1203
        %1617 = vmatprep.subr.bf16.mxu0 0
        %1618 = vmatpush1.bf16.msra.mxu0 %v1204
        %1619 = vmatprep.subr.bf16.mxu0 0
        %1620 = vmatpush1.bf16.msra.mxu0 %v1205
        %1621 = vmatprep.subr.bf16.mxu0 0
        %1622 = vmatpush1.bf16.msra.mxu0 %v1206
        %1623 = vmatprep.mubr.bf16.mxu0 %v324
        %1624 = vmatmul.mubr.bf16.gmra.mrb[0].mxu0 %v323
        %v1625 = vpop.f32.mrb[0].mxu0
        %v1626 = vadd.f32 %v1586, %v1625
        %v1627 = vpop.f32.mrb[0].mxu0
        %v1628 = vpop.f32.mrb[0].mxu0
        %v1629 = vpop.f32.mrb[0].mxu0
        %1630 = vdwg.mxu0
        %1631 = vmatprep.subr.bf16.mxu0 0
        %1632 = vmatpush1.bf16.msra.mxu0 %v1207
        %1633 = vmatprep.subr.bf16.mxu0 0
        %1634 = vmatpush1.bf16.msra.mxu0 %v1208
        %1635 = vmatprep.subr.bf16.mxu0 0
        %1636 = vmatpush1.bf16.msra.mxu0 %v1209
        %1637 = vmatprep.subr.bf16.mxu0 0
        %1638 = vmatpush1.bf16.msra.mxu0 %v1210
        %1639 = vmatprep.subr.bf16.mxu0 0
        %1640 = vmatpush1.bf16.msra.mxu0 %v1211
        %1641 = vmatprep.subr.bf16.mxu0 0
        %1642 = vmatpush1.bf16.msra.mxu0 %v1212
        %1643 = vmatprep.subr.bf16.mxu0 0
        %1644 = vmatpush1.bf16.msra.mxu0 %v1213
        %1645 = vmatprep.subr.bf16.mxu0 0
        %1646 = vmatpush1.bf16.msra.mxu0 %v1214
        %1647 = vmatprep.subr.bf16.mxu0 0
        %1648 = vmatpush1.bf16.msra.mxu0 %v1215
        %1649 = vmatprep.subr.bf16.mxu0 0
        %1650 = vmatpush1.bf16.msra.mxu0 %v1216
        %1651 = vmatprep.subr.bf16.mxu0 0
        %1652 = vmatpush1.bf16.msra.mxu0 %v1217
        %1653 = vmatprep.subr.bf16.mxu0 0
        %1654 = vmatpush1.bf16.msra.mxu0 %v1218
        %1655 = vmatprep.subr.bf16.mxu0 0
        %1656 = vmatpush1.bf16.msra.mxu0 %v1219
        %1657 = vmatprep.subr.bf16.mxu0 0
        %1658 = vmatpush1.bf16.msra.mxu0 %v1220
        %1659 = vmatprep.subr.bf16.mxu0 0
        %1660 = vmatpush1.bf16.msra.mxu0 %v1221
        %1661 = vmatprep.subr.bf16.mxu0 0
        %1662 = vmatpush1.bf16.msra.mxu0 %v1222
        %1663 = vmatprep.mubr.bf16.mxu0 %v326
        %1664 = vmatmul.mubr.bf16.gmra.mrb[0].mxu0 %v325
        %v1665 = vpop.f32.mrb[0].mxu0
        %v1666 = vadd.f32 %v1626, %v1665
        %v1667 = vpop.f32.mrb[0].mxu0
        %v1668 = vpop.f32.mrb[0].mxu0
        %v1669 = vpop.f32.mrb[0].mxu0
        %1670 = vdwg.mxu0
        %v1671 = vadd.f32 %v218, %v1666
        %1672 = vst [vmem:[#allocation2] sm:$0x3] %v1671
        %p1673 = scmp.eq.s32.totalorder %s20, 3
        // Predicated region
        $region37: #{simkd_forward_pallas.3} parent=31 // pred_check
          %p1674 = pneg %p1673
        $region38: #{simkd_forward_pallas.3} parent=31 // pred_check_branch
          %1676 = sbr.rel (%p1674) target = $region40
        $region39: #{simkd_forward_pallas.3} parent=31 // pred_region
          %v1677 = vld [vmem:[#allocation2] sm:$0x3]
          %v1678 = vld [vmem:[%s2] sm:$0x1]
          %v1680 = vlaneseq
          %v1681 = vshrl.u32 %v1680, 7
          %v1682 = vsub.s32 0, %v1681
          %v1683 = vrot.slane %v1678, %v1682
          %v1685 = vadd.f32 %v1677, %v1683
          %1686 = vst [vmem:[#allocation3] sm:$0x3] %v1685
        $region40: #{simkd_forward_pallas.3} parent=31 // pred_fallthru
          _
        // Predicated region
        $region41: #{simkd_forward_pallas.3} parent=31 // pred_check
          %p1687 = pneg %p120
        $region42: #{simkd_forward_pallas.3} parent=31 // pred_check_branch
          %1689 = sbr.rel (%p1687) target = $region44
        $region43: #{simkd_forward_pallas.3} parent=31 // pred_region
          %s1691 = ssub.s32 32, 32
          %1692 = vsyncadd [#allocation4], %s1691
          %s1693 = smul.addr %s19, 32
          %s1694 = scalar_lea.hbm %s3, %s1693
          %s1696 = sshll.u32 [#allocation3], 4
          %s1697 = int_to_ptr.vmem [resolvable:$true] %s1696
          %1699 = dma.vmem_to_hbm [thread:$0]  %s1697, 32, %s1694, [#allocation4]
        $region44: #{simkd_forward_pallas.3} parent=31 // pred_fallthru
          _
        // Predicated region
        $region45: #{simkd_forward_pallas.3} parent=31 // pred_check
          %p1700 = pneg %p120
        $region46: #{simkd_forward_pallas.3} parent=31 // pred_check_branch
          %1702 = sbr.rel (%p1700) target = $region48
        $region47: #{simkd_forward_pallas.3} parent=31 // pred_region
          %1703 = dma.done [#allocation4], 32
        $region48: #{simkd_forward_pallas.3} parent=31 // pred_fallthru
          _
      $region32: #{simkd_forward_pallas.3} parent=5 // pred_fallthru
        _
      %p1704 = scmp.le.s32.totalorder 2, %s10
      // Predicated region
      $region49: #{simkd_forward_pallas.3} parent=5 // pred_check
        %p1705 = pneg %p1704
      $region50: #{simkd_forward_pallas.3} parent=5 // pred_check_branch
        %1707 = sbr.rel (%p1705) target = $region52
      $region51: #{simkd_forward_pallas.3} parent=5 // pred_region
        %s1708 = ssub.s32 %s10, 2
      $region52: #{simkd_forward_pallas.3} parent=5 // pred_fallthru
        _
    $region6: #{simkd_forward_pallas.3} parent=1 // loop_footer
      %s14 = sadd.s32 1, %s10
    $region7: #{simkd_forward_pallas.3} parent=1 // loop_footer_branch
      %9 = sbr.rel target = $region3
    $region8: #{simkd_forward_pallas.3} parent=1 // loop_exit
      _
    %1709 = vsyncpa [#allocation4], 1
    %s1710 = scalar_lea.sflag [#allocation4], 1
    %1711 = vsyncpa %s1710, 1

</llo_original>
